<compile_context>
chip_gen: v5e
topology: v5e:2x2
jax: 0.10.0
libtpu: 0.0.40
codegen_flags: <defaults>
</compile_context>

<pallas_src>
import jax
import jax.numpy as jnp
import numpy as np
from jax.experimental import pallas as pl
from jax.experimental.pallas import tpu as pltpu

# ---------------- configuration (small synthetic shapes) ----------------
B = 2          # batch
T = 16         # visual_snippets
D = 32         # visual_dim == embed_dim
H = 4          # visual_head
HD = D // H    # head dim
LAYERS = 2     # visual_layers
WIN = 8        # attn_window
C = 4          # number of text classes
N_NOUNS = 4    # nouns per class (fixed for the synthetic setup)
DH = D // 2    # GCN hidden width
OUT_W = 128    # lane-dense packed output width
EPS_LN = 1e-5
NEG_BIG = -1e30   # finite mask sentinel (avoids exp(-inf - -inf) NaN)

# ---- packed vector-slab row layout (f32, (VEC_ROWS, 4D)) ----
VROWS_PER_LAYER = 7          # g1 b1 g2 b2 b_att bfc bpr
GBL_ROW = VROWS_PER_LAYER * LAYERS      # linear bias
EB_ROW = GBL_ROW + 1                     # entity [bq*s | bk | bv]
BC_ROW = GBL_ROW + 2                     # classifier bias (lane 0)
MBFC_ROW = GBL_ROW + 3                   # mlp1 c_fc bias
MBPR_ROW = GBL_ROW + 4                   # mlp1 c_proj bias
TEXT_ROW = GBL_ROW + 5                   # C rows of text features
VEC_ROWS = 24                            # padded row count

# ---- packed big-weight-slab index layout (bf16, (WBIG_N, D, 4D)) ----
#  idx 2l   : A_pack layer l   [A_0|A_1|A_2|A_3], A_h = (Wq_h/sqrt(hd)) Wk_h^T
#  idx 2l+1 : B_pack layer l   [B_0|B_1|B_2|B_3], B_h = Wv_h Wo_h
WFC_BASE = 2 * LAYERS                    # resblock c_fc weights
MLP1_FC_IDX = 3 * LAYERS                 # mlp1 c_fc
ENT_IDX = MLP1_FC_IDX + 1                # [Wq_e*s | Wk_e | Wv_e | W_linear]
GCN_IDX = MLP1_FC_IDX + 2                # [w1|wr1|w3|wr3|w2|w4|wc_col|0]
WBIG_N = MLP1_FC_IDX + 3


# ===================== fused CLIPVAD forward kernel =====================
def clipvad_kernel(vis_ref, const_ref, wbig_ref, wproj_ref, vec_ref, ent_ref,
                   out_ref):
    f32 = jnp.float32
    bf16 = jnp.bfloat16

    def dotf(a, b):
        return jnp.dot(a.astype(bf16), b.astype(bf16),
                       preferred_element_type=f32)

    def nt(a, b):  # a @ b.T, contracting the last dims (no explicit transpose)
        return jax.lax.dot_general(
            a.astype(bf16), b.astype(bf16),
            (((1,), (1,)), ((), ())), preferred_element_type=f32)

    def layernorm(v, g, b):
        # E[x^2]-E[x]^2: the two lane reductions are independent -> pipeline.
        mu = jnp.mean(v, axis=-1, keepdims=True)
        ms = jnp.mean(v * v, axis=-1, keepdims=True)
        return (v - mu) * jax.lax.rsqrt(ms - mu * mu + EPS_LN) * g + b

    def softmax_last(s):
        e = jnp.exp(s - jnp.max(s, axis=-1, keepdims=True))
        return e * pl.reciprocal(jnp.sum(e, axis=-1, keepdims=True), approx=True)

    def qgelu(v):
        return v * jax.nn.sigmoid(1.702 * v)

    def l2norm(v):
        return v * jax.lax.rsqrt(jnp.sum(v * v, axis=-1, keepdims=True) + 1e-12)

    V = vec_ref[...]                                   # (VEC_ROWS, 4D) f32
    consts = const_ref[...]                            # (3, T, D)
    pos = consts[0]                                    # (T, D)
    mask = consts[1][:, :T]                            # (T, T) window mask
    dis = consts[2][:, :T]                             # (T, T) distance adj

    # ---------------- temporal transformer (LAYERS resblocks) ----------------
    x = vis_ref[0].astype(f32) + pos                   # (T, D)

    for l in range(LAYERS):                            # static unroll
        vb = VROWS_PER_LAYER * l
        g1, b1 = V[vb + 0:vb + 1, :D], V[vb + 1:vb + 2, :D]
        g2, b2 = V[vb + 2:vb + 3, :D], V[vb + 3:vb + 4, :D]
        b_att = V[vb + 4:vb + 5, :D]
        bfc = V[vb + 5:vb + 6, :]
        bpr = V[vb + 6:vb + 7, :D]

        a_pack = wbig_ref[2 * l]                       # (D, H*D) bf16
        b_pack = wbig_ref[2 * l + 1]                   # (D, H*D) bf16

        # --- multi-head self attention (scale & out-proj folded into A/B) ---
        h = layernorm(x, g1, b1)
        hA = dotf(h, a_pack)                           # (T, H*D), K=32
        hB = dotf(h, b_pack)                           # (T, H*D), K=32
        acc = None
        for hi in range(H):                            # static, 32-lane slices
            lo = hi * D
            s = nt(hA[:, lo:lo + D], h) + mask         # (T, T), K=32
            p = softmax_last(s)
            o = dotf(p, hB[:, lo:lo + D])              # (T, D), K=T
            acc = o if acc is None else acc + o
        x = x + acc + b_att

        # --- MLP (QuickGELU) ---
        h2 = layernorm(x, g2, b2)
        fc = qgelu(dotf(h2, wbig_ref[WFC_BASE + l]) + bfc)
        x = x + dotf(fc, wproj_ref[l]) + bpr

    # ---------------- GCN: cosine + distance adjacency ----------------
    xn = l2norm(x)
    cos = nt(xn, xn)                                   # cosine similarity
    adj = softmax_last(jnp.where(cos > 0.7, cos, 0.0))  # F.threshold + softmax

    gs = wbig_ref[GCN_IDX]                             # (D, 4D) bf16
    w1, wr1 = gs[:, 0:DH], gs[:, DH:2 * DH]
    w3, wr3 = gs[:, 2 * DH:3 * DH], gs[:, 3 * DH:4 * DH]
    w2 = gs[:DH, 4 * DH:5 * DH]
    w4 = gs[:DH, 5 * DH:6 * DH]

    def gc(inp, a, w, wres=None):
        out = dotf(a, dotf(inp, w))
        res = inp if wres is None else dotf(inp, wres)
        return out + res

    x1 = qgelu(gc(qgelu(gc(x, adj, w1, wr1)), adj, w2))
    x2 = qgelu(gc(qgelu(gc(x, dis, w3, wr3)), dis, w4))

    es = wbig_ref[ENT_IDX]                             # (D, 4D) bf16
    wl = es[:, 3 * D:]                                 # self.linear weight
    g_bl = V[GBL_ROW:GBL_ROW + 1, :D]
    vf = dotf(jnp.concatenate([x1, x2], axis=-1), wl) + g_bl      # (T, D)

    # ---------------- entity cross-attention + classifier ----------------
    ent = ent_ref[0]                                   # (N+1, D)
    E = ent[:N_NOUNS]                                  # (N, D) noun feats
    nw = ent[N_NOUNS:N_NOUNS + 1, :N_NOUNS]            # (1, N) noun weights
    eb = V[EB_ROW:EB_ROW + 1, :]                       # [bq*s | bk | bv | 0]
    Q = dotf(vf, es[:, :D]) + eb[:, :D]                # (T, D)
    KV = dotf(E, es[:, D:3 * D]) + eb[:, D:3 * D]      # (N, 2D)
    K_e, V_e = KV[:, :D], KV[:, D:]
    attn = softmax_last(nt(Q, K_e))                    # (T, N)  (1/sqrt(D) folded)
    wattn = attn * nw
    wattn = wattn * pl.reciprocal(
        jnp.sum(wattn, axis=-1, keepdims=True) + 1e-6, approx=True)
    mod = vf + dotf(wattn, V_e)                        # entity_modulated_vis

    bc = V[BC_ROW:BC_ROW + 1, 0:1]                     # (1, 1)
    # classifier reduction on the MXU: wc lives in column 0 of a zero block
    scores = dotf(mod, gs[:, 6 * DH:7 * DH])[:, 0:1] + bc          # (T, 1)

    # ---------------- text fusion + mlp1 + similarity matrix ----------------
    va = l2norm(jnp.sum(scores * vf, axis=0, keepdims=True))       # (1, D)
    text = V[TEXT_ROW:TEXT_ROW + C, :D]                             # (C, D)
    tf = text + va
    fc = qgelu(dotf(tf, wbig_ref[MLP1_FC_IDX]) + V[MBFC_ROW:MBFC_ROW + 1, :])
    tf = tf + dotf(fc, wproj_ref[LAYERS]) + V[MBPR_ROW:MBPR_ROW + 1, :D]
    sim = nt(l2norm(vf), l2norm(tf)) * (1.0 / 0.07)                 # (T, C)

    # lane-dense packed output: cols [0:C] = sim, col C = scores, rest zero
    pad = jnp.zeros((T, OUT_W - C - 1), f32)
    out_ref[0] = jnp.concatenate([sim, scores, pad], axis=-1)


# ===================== pallas_call wrapper =====================
def run_fused(visual, consts, wbig, wproj, vecs, ent):
    def shared(a):
        zeros = (0,) * a.ndim
        return pl.BlockSpec(a.shape, lambda b, _z=zeros: _z)

    return pl.pallas_call(
        clipvad_kernel,
        out_shape=jax.ShapeDtypeStruct((B, T, OUT_W), jnp.float32),
        grid_spec=pltpu.PrefetchScalarGridSpec(
            num_scalar_prefetch=0, grid=(B,),
            in_specs=[
                pl.BlockSpec((1, T, D), lambda b: (b, 0, 0)),          # visual
                shared(consts), shared(wbig), shared(wproj), shared(vecs),
                pl.BlockSpec((1, N_NOUNS + 1, D), lambda b: (b, 0, 0)),  # entity
            ],
            out_specs=pl.BlockSpec((1, T, OUT_W), lambda b: (b, 0, 0))),
        compiler_params=pltpu.CompilerParams(
            dimension_semantics=("parallel",)),   # B shards over v7x's 2 TCs
    )(visual, consts, wbig, wproj, vecs, ent)


# ===================== glue: masks, params, forward =====================
def build_attention_mask(t, window):
    mask = np.full((t, t), NEG_BIG, dtype=np.float32)
    for i in range(t // window):
        lo = i * window
        hi = (i + 1) * window if (i + 1) * window < t else t
        mask[lo:hi, lo:hi] = 0.0
    return mask


def distance_adj(t):
    idx = np.arange(t)
    dist = np.abs(idx[:, None] - idx[None, :]).astype(np.float32)
    return np.exp(-dist / np.exp(1.0)).astype(np.float32)


def init_params(key):
    keys = iter(jax.random.split(key, 64))

    def nrm(shape, std=0.02):
        return np.asarray(jax.random.normal(next(keys), shape,
                                            dtype=jnp.float32)) * std

    scale_h = 1.0 / np.sqrt(HD)
    scale_e = 1.0 / np.sqrt(D)

    # ---- constants slab: frame-pos embedding, window mask, distance adj ----
    consts = np.zeros((3, T, D), np.float32)
    consts[0] = nrm((T, D), 0.01)                    # nn.Embedding, std=0.01
    consts[1, :, :T] = build_attention_mask(T, WIN)
    consts[2, :, :T] = distance_adj(T)

    wbig = np.zeros((WBIG_N, D, 4 * D), np.float32)
    wproj = np.zeros((LAYERS + 1, 4 * D, D), np.float32)
    vecs = np.zeros((VEC_ROWS, 4 * D), np.float32)

    # ---- transformer resblocks: fold per-head QK / V-out products ----
    for l in range(LAYERS):
        wq, wk, wv, wo = nrm((D, D)), nrm((D, D)), nrm((D, D)), nrm((D, D))
        bv = np.zeros((D,), np.float32)
        bo = np.zeros((D,), np.float32)
        for h in range(H):
            sl = slice(h * HD, (h + 1) * HD)
            wbig[2 * l, :, h * D:(h + 1) * D] = (wq[:, sl] * scale_h) @ wk[:, sl].T
            wbig[2 * l + 1, :, h * D:(h + 1) * D] = wv[:, sl] @ wo[sl, :]
        vb = VROWS_PER_LAYER * l
        vecs[vb + 0, :D] = 1.0                        # ln_1 gamma
        vecs[vb + 2, :D] = 1.0                        # ln_2 gamma
        vecs[vb + 4, :D] = bo + bv @ wo               # folded attn output bias
        wbig[WFC_BASE + l] = nrm((D, 4 * D))          # c_fc weight
        wproj[l] = nrm((4 * D, D))                    # c_proj weight
        # ln betas / c_fc / c_proj biases stay zero rows.

    # ---- GCN + classifier column ----
    wbig[GCN_IDX, :, 0:DH] = nrm((D, DH))             # gc1 weight
    wbig[GCN_IDX, :, DH:2 * DH] = nrm((D, DH))        # gc1 residual proj
    wbig[GCN_IDX, :, 2 * DH:3 * DH] = nrm((D, DH))    # gc3 weight
    wbig[GCN_IDX, :, 3 * DH:4 * DH] = nrm((D, DH))    # gc3 residual proj
    wbig[GCN_IDX, :DH, 4 * DH:5 * DH] = nrm((DH, DH))  # gc2 weight
    wbig[GCN_IDX, :DH, 5 * DH:6 * DH] = nrm((DH, DH))  # gc4 weight
    wbig[GCN_IDX, :, 6 * DH] = nrm((D,))               # classifier weight col

    # ---- entity cross-attn (out_proj unused in torch forward) + linear ----
    wbig[ENT_IDX, :, 0:D] = nrm((D, D)) * scale_e      # Wq_e (1/sqrt(D) folded)
    wbig[ENT_IDX, :, D:2 * D] = nrm((D, D))            # Wk_e
    wbig[ENT_IDX, :, 2 * D:3 * D] = nrm((D, D))        # Wv_e
    wbig[ENT_IDX, :, 3 * D:] = nrm((D, D))             # self.linear weight

    # ---- mlp1 ----
    wbig[MLP1_FC_IDX] = nrm((D, 4 * D))
    wproj[LAYERS] = nrm((4 * D, D))

    # ---- synthetic stand-ins for the frozen CLIP text encoder ----
    text_feats = nrm((C, D), 1.0)
    vecs[TEXT_ROW:TEXT_ROW + C, :D] = text_feats

    return {
        'consts': jnp.asarray(consts),
        'wbig': jnp.asarray(wbig, dtype=jnp.bfloat16),
        'wproj': jnp.asarray(wproj, dtype=jnp.bfloat16),
        'vecs': jnp.asarray(vecs),
        'noun_feats': jnp.asarray(nrm((C, N_NOUNS, D), 1.0)),
        'noun_weights': jnp.ones((C, N_NOUNS), dtype=jnp.float32),
        'text_feats': jnp.asarray(text_feats),
    }


@jax.jit
def clipvad_forward(visual, params, text_labels):
    """Mirrors CLIPVAD.forward with args.feat_encoder != 'vit14',
    args.fusion == 'cross_attn', test=True (no contrastive / topk branch)."""
    E_b = params['noun_feats'][text_labels]                     # (B, N, D)
    nw_b = params['noun_weights'][text_labels]                  # (B, N)
    nw_row = jnp.zeros((B, 1, D), jnp.float32).at[:, 0, :N_NOUNS].set(nw_b)
    ent = jnp.concatenate([E_b, nw_row], axis=1)                # (B, N+1, D)

    out = run_fused(visual.astype(jnp.float32), params['consts'],
                    params['wbig'], params['wproj'], params['vecs'], ent)
    sim = out[:, :, :C]                                         # (B, T, C)
    scores = out[:, :, C:C + 1]                                 # (B, T, 1)
    return params['text_feats'], scores, sim, None, None


if __name__ == "__main__":
    key = jax.random.PRNGKey(0)
    k_in, k_par = jax.random.split(key)
    visual = jax.random.normal(k_in, (B, T, D), dtype=jnp.float32)
    params = init_params(k_par)
    text_labels = jnp.array([0, 2], dtype=jnp.int32)

    tf_ori, scores, sim, _, _ = clipvad_forward(visual, params, text_labels)
    jax.block_until_ready((tf_ori, scores, sim))

    assert tf_ori.shape == (C, D)
    assert scores.shape == (B, T, 1)
    assert sim.shape == (B, T, C)
    assert bool(jnp.all(jnp.isfinite(scores))) and bool(jnp.all(jnp.isfinite(sim)))
    print("KERNEL_OK")
</pallas_src>

<mosaic_0001>
module attributes {stable_mosaic.version = 11 : i64} {
  func.func @clipvad_kernel(%arg0: i32, %arg1: memref<1x16x32xf32, #tpu.memory_space<vmem>>, %arg2: memref<3x16x32xf32, #tpu.memory_space<vmem>>, %arg3: memref<9x32x128xbf16, #tpu.memory_space<vmem>>, %arg4: memref<3x128x32xbf16, #tpu.memory_space<vmem>>, %arg5: memref<24x128xf32, #tpu.memory_space<vmem>>, %arg6: memref<1x5x32xf32, #tpu.memory_space<vmem>>, %arg7: memref<1x16x128xf32, #tpu.memory_space<vmem>>) attributes {dimension_semantics = [#tpu.dimension_semantics<parallel>], iteration_bounds = array<i64: 2>, scalar_prefetch = 0 : i64, scratch_operands = 0 : i64, tpu.core_type = #tpu.core_type<tc>, window_params = [{transform_indices = @transform_0, window_bounds = array<i64: 1, 16, 32>}, {pipeline_mode = #tpu.pipeline_mode<synchronous>, transform_indices = @transform_1, window_bounds = array<i64: 3, 16, 32>}, {pipeline_mode = #tpu.pipeline_mode<synchronous>, transform_indices = @transform_2, window_bounds = array<i64: 9, 32, 128>}, {pipeline_mode = #tpu.pipeline_mode<synchronous>, transform_indices = @transform_3, window_bounds = array<i64: 3, 128, 32>}, {pipeline_mode = #tpu.pipeline_mode<synchronous>, transform_indices = @transform_4, window_bounds = array<i64: 24, 128>}, {transform_indices = @transform_5, window_bounds = array<i64: 1, 5, 32>}, {transform_indices = @transform_6, window_bounds = array<i64: 1, 16, 128>}]} {
    %c0 = arith.constant 0 : index
    %c0_0 = arith.constant 0 : index
    %0 = vector.load %arg5[%c0, %c0_0] : memref<24x128xf32, #tpu.memory_space<vmem>>, vector<24x128xf32>
    %c0_1 = arith.constant 0 : index
    %c0_2 = arith.constant 0 : index
    %c0_3 = arith.constant 0 : index
    %1 = vector.load %arg2[%c0_1, %c0_2, %c0_3] : memref<3x16x32xf32, #tpu.memory_space<vmem>>, vector<3x16x32xf32>
    %2 = vector.extract_strided_slice %1 {offsets = [0, 0, 0], sizes = [1, 16, 32], strides = [1, 1, 1]} : vector<3x16x32xf32> to vector<1x16x32xf32>
    %3 = vector.shape_cast %2 : vector<1x16x32xf32> to vector<16x32xf32>
    %4 = vector.extract_strided_slice %1 {offsets = [1, 0, 0], sizes = [1, 16, 32], strides = [1, 1, 1]} : vector<3x16x32xf32> to vector<1x16x32xf32>
    %5 = vector.shape_cast %4 : vector<1x16x32xf32> to vector<16x32xf32>
    %6 = vector.extract_strided_slice %5 {offsets = [0, 0], sizes = [16, 16], strides = [1, 1]} : vector<16x32xf32> to vector<16x16xf32>
    %7 = vector.extract_strided_slice %1 {offsets = [2, 0, 0], sizes = [1, 16, 32], strides = [1, 1, 1]} : vector<3x16x32xf32> to vector<1x16x32xf32>
    %8 = vector.shape_cast %7 : vector<1x16x32xf32> to vector<16x32xf32>
    %9 = vector.extract_strided_slice %8 {offsets = [0, 0], sizes = [16, 16], strides = [1, 1]} : vector<16x32xf32> to vector<16x16xf32>
    %c0_4 = arith.constant 0 : index
    %c0_5 = arith.constant 0 : index
    %c0_6 = arith.constant 0 : index
    %10 = vector.load %arg1[%c0_4, %c0_5, %c0_6] : memref<1x16x32xf32, #tpu.memory_space<vmem>>, vector<1x16x32xf32>
    %11 = vector.shape_cast %10 : vector<1x16x32xf32> to vector<16x32xf32>
    %12 = arith.addf %11, %3 : vector<16x32xf32>
    %13 = vector.extract_strided_slice %0 {offsets = [0, 0], sizes = [1, 32], strides = [1, 1]} : vector<24x128xf32> to vector<1x32xf32>
    %14 = vector.extract_strided_slice %0 {offsets = [1, 0], sizes = [1, 32], strides = [1, 1]} : vector<24x128xf32> to vector<1x32xf32>
    %15 = vector.extract_strided_slice %0 {offsets = [2, 0], sizes = [1, 32], strides = [1, 1]} : vector<24x128xf32> to vector<1x32xf32>
    %16 = vector.extract_strided_slice %0 {offsets = [3, 0], sizes = [1, 32], strides = [1, 1]} : vector<24x128xf32> to vector<1x32xf32>
    %17 = vector.extract_strided_slice %0 {offsets = [4, 0], sizes = [1, 32], strides = [1, 1]} : vector<24x128xf32> to vector<1x32xf32>
    %18 = vector.extract_strided_slice %0 {offsets = [5, 0], sizes = [1, 128], strides = [1, 1]} : vector<24x128xf32> to vector<1x128xf32>
    %19 = vector.extract_strided_slice %0 {offsets = [6, 0], sizes = [1, 32], strides = [1, 1]} : vector<24x128xf32> to vector<1x32xf32>
    %c0_7 = arith.constant 0 : index
    %c0_8 = arith.constant 0 : index
    %c0_9 = arith.constant 0 : index
    %20 = vector.load %arg3[%c0_7, %c0_8, %c0_9] : memref<9x32x128xbf16, #tpu.memory_space<vmem>>, vector<1x32x128xbf16>
    %21 = vector.shape_cast %20 : vector<1x32x128xbf16> to vector<32x128xbf16>
    %c1 = arith.constant 1 : index
    %c0_10 = arith.constant 0 : index
    %c0_11 = arith.constant 0 : index
    %22 = vector.load %arg3[%c1, %c0_10, %c0_11] : memref<9x32x128xbf16, #tpu.memory_space<vmem>>, vector<1x32x128xbf16>
    %23 = vector.shape_cast %22 : vector<1x32x128xbf16> to vector<32x128xbf16>
    %cst = arith.constant dense<0.000000e+00> : vector<16xf32>
    %24 = vector.multi_reduction <add>, %12, %cst [1] : vector<16x32xf32> to vector<16xf32>
    %25 = vector.shape_cast %24 : vector<16xf32> to vector<16x1xf32>
    %cst_12 = arith.constant 3.200000e+01 : f32
    %26 = vector.broadcast %cst_12 : f32 to vector<16x1xf32>
    %27 = arith.divf %25, %26 : vector<16x1xf32>
    %28 = arith.mulf %12, %12 : vector<16x32xf32>
    %cst_13 = arith.constant dense<0.000000e+00> : vector<16xf32>
    %29 = vector.multi_reduction <add>, %28, %cst_13 [1] : vector<16x32xf32> to vector<16xf32>
    %30 = vector.shape_cast %29 : vector<16xf32> to vector<16x1xf32>
    %cst_14 = arith.constant 3.200000e+01 : f32
    %31 = vector.broadcast %cst_14 : f32 to vector<16x1xf32>
    %32 = arith.divf %30, %31 : vector<16x1xf32>
    %33 = vector.broadcast %27 : vector<16x1xf32> to vector<16x32xf32>
    %34 = arith.subf %12, %33 : vector<16x32xf32>
    %35 = arith.mulf %27, %27 : vector<16x1xf32>
    %36 = arith.subf %32, %35 : vector<16x1xf32>
    %cst_15 = arith.constant 9.99999974E-6 : f32
    %37 = vector.broadcast %cst_15 : f32 to vector<16x1xf32>
    %38 = arith.addf %36, %37 : vector<16x1xf32>
    %39 = math.rsqrt %38 : vector<16x1xf32>
    %40 = vector.broadcast %39 : vector<16x1xf32> to vector<16x32xf32>
    %41 = arith.mulf %34, %40 : vector<16x32xf32>
    %42 = vector.broadcast %13 : vector<1x32xf32> to vector<16x32xf32>
    %43 = arith.mulf %41, %42 : vector<16x32xf32>
    %44 = vector.broadcast %14 : vector<1x32xf32> to vector<16x32xf32>
    %45 = arith.addf %43, %44 : vector<16x32xf32>
    %46 = arith.truncf %45 : vector<16x32xf32> to vector<16x32xbf16>
    %cst_16 = arith.constant dense<0.000000e+00> : vector<16x128xf32>
    %47 = tpu.matmul %46, %21, %cst_16 {dimension_numbers = #tpu.dot_dimension_numbers<[1], [0], [0], [1], [0, 0, 1, 1], [], []>} : vector<16x32xbf16>, vector<32x128xbf16>, vector<16x128xf32> -> vector<16x128xf32>
    %48 = arith.truncf %45 : vector<16x32xf32> to vector<16x32xbf16>
    %cst_17 = arith.constant dense<0.000000e+00> : vector<16x128xf32>
    %49 = tpu.matmul %48, %23, %cst_17 {dimension_numbers = #tpu.dot_dimension_numbers<[1], [0], [0], [1], [0, 0, 1, 1], [], []>} : vector<16x32xbf16>, vector<32x128xbf16>, vector<16x128xf32> -> vector<16x128xf32>
    %50 = vector.extract_strided_slice %47 {offsets = [0, 0], sizes = [16, 32], strides = [1, 1]} : vector<16x128xf32> to vector<16x32xf32>
    %51 = arith.truncf %50 : vector<16x32xf32> to vector<16x32xbf16>
    %52 = arith.truncf %45 : vector<16x32xf32> to vector<16x32xbf16>
    %cst_18 = arith.constant dense<0.000000e+00> : vector<16x16xf32>
    %53 = tpu.matmul %51, %52, %cst_18 {dimension_numbers = #tpu.dot_dimension_numbers<[1], [1], [0], [0], [0, 0, 1, 0], [], []>} : vector<16x32xbf16>, vector<16x32xbf16>, vector<16x16xf32> -> vector<16x16xf32>
    %54 = arith.addf %53, %6 : vector<16x16xf32>
    %cst_19 = arith.constant dense<0xFF800000> : vector<16xf32>
    %55 = vector.multi_reduction <maximumf>, %54, %cst_19 [1] : vector<16x16xf32> to vector<16xf32>
    %56 = vector.shape_cast %55 : vector<16xf32> to vector<16x1xf32>
    %57 = vector.broadcast %56 : vector<16x1xf32> to vector<16x16xf32>
    %58 = arith.subf %54, %57 : vector<16x16xf32>
    %59 = math.exp %58 : vector<16x16xf32>
    %cst_20 = arith.constant dense<0.000000e+00> : vector<16xf32>
    %60 = vector.multi_reduction <add>, %59, %cst_20 [1] : vector<16x16xf32> to vector<16xf32>
    %61 = vector.shape_cast %60 : vector<16xf32> to vector<16x1xf32>
    %62 = tpu.reciprocal %61 {approx = true} : vector<16x1xf32> -> vector<16x1xf32>
    %63 = vector.broadcast %62 : vector<16x1xf32> to vector<16x16xf32>
    %64 = arith.mulf %59, %63 : vector<16x16xf32>
    %65 = vector.extract_strided_slice %49 {offsets = [0, 0], sizes = [16, 32], strides = [1, 1]} : vector<16x128xf32> to vector<16x32xf32>
    %66 = arith.truncf %64 : vector<16x16xf32> to vector<16x16xbf16>
    %67 = arith.truncf %65 : vector<16x32xf32> to vector<16x32xbf16>
    %cst_21 = arith.constant dense<0.000000e+00> : vector<16x32xf32>
    %68 = tpu.matmul %66, %67, %cst_21 {dimension_numbers = #tpu.dot_dimension_numbers<[1], [0], [0], [1], [0, 0, 1, 1], [], []>} : vector<16x16xbf16>, vector<16x32xbf16>, vector<16x32xf32> -> vector<16x32xf32>
    %69 = vector.extract_strided_slice %47 {offsets = [0, 32], sizes = [16, 32], strides = [1, 1]} : vector<16x128xf32> to vector<16x32xf32>
    %70 = arith.truncf %69 : vector<16x32xf32> to vector<16x32xbf16>
    %71 = arith.truncf %45 : vector<16x32xf32> to vector<16x32xbf16>
    %cst_22 = arith.constant dense<0.000000e+00> : vector<16x16xf32>
    %72 = tpu.matmul %70, %71, %cst_22 {dimension_numbers = #tpu.dot_dimension_numbers<[1], [1], [0], [0], [0, 0, 1, 0], [], []>} : vector<16x32xbf16>, vector<16x32xbf16>, vector<16x16xf32> -> vector<16x16xf32>
    %73 = arith.addf %72, %6 : vector<16x16xf32>
    %cst_23 = arith.constant dense<0xFF800000> : vector<16xf32>
    %74 = vector.multi_reduction <maximumf>, %73, %cst_23 [1] : vector<16x16xf32> to vector<16xf32>
    %75 = vector.shape_cast %74 : vector<16xf32> to vector<16x1xf32>
    %76 = vector.broadcast %75 : vector<16x1xf32> to vector<16x16xf32>
    %77 = arith.subf %73, %76 : vector<16x16xf32>
    %78 = math.exp %77 : vector<16x16xf32>
    %cst_24 = arith.constant dense<0.000000e+00> : vector<16xf32>
    %79 = vector.multi_reduction <add>, %78, %cst_24 [1] : vector<16x16xf32> to vector<16xf32>
    %80 = vector.shape_cast %79 : vector<16xf32> to vector<16x1xf32>
    %81 = tpu.reciprocal %80 {approx = true} : vector<16x1xf32> -> vector<16x1xf32>
    %82 = vector.broadcast %81 : vector<16x1xf32> to vector<16x16xf32>
    %83 = arith.mulf %78, %82 : vector<16x16xf32>
    %84 = vector.extract_strided_slice %49 {offsets = [0, 32], sizes = [16, 32], strides = [1, 1]} : vector<16x128xf32> to vector<16x32xf32>
    %85 = arith.truncf %83 : vector<16x16xf32> to vector<16x16xbf16>
    %86 = arith.truncf %84 : vector<16x32xf32> to vector<16x32xbf16>
    %cst_25 = arith.constant dense<0.000000e+00> : vector<16x32xf32>
    %87 = tpu.matmul %85, %86, %cst_25 {dimension_numbers = #tpu.dot_dimension_numbers<[1], [0], [0], [1], [0, 0, 1, 1], [], []>} : vector<16x16xbf16>, vector<16x32xbf16>, vector<16x32xf32> -> vector<16x32xf32>
    %88 = arith.addf %68, %87 : vector<16x32xf32>
    %89 = vector.extract_strided_slice %47 {offsets = [0, 64], sizes = [16, 32], strides = [1, 1]} : vector<16x128xf32> to vector<16x32xf32>
    %90 = arith.truncf %89 : vector<16x32xf32> to vector<16x32xbf16>
    %91 = arith.truncf %45 : vector<16x32xf32> to vector<16x32xbf16>
    %cst_26 = arith.constant dense<0.000000e+00> : vector<16x16xf32>
    %92 = tpu.matmul %90, %91, %cst_26 {dimension_numbers = #tpu.dot_dimension_numbers<[1], [1], [0], [0], [0, 0, 1, 0], [], []>} : vector<16x32xbf16>, vector<16x32xbf16>, vector<16x16xf32> -> vector<16x16xf32>
    %93 = arith.addf %92, %6 : vector<16x16xf32>
    %cst_27 = arith.constant dense<0xFF800000> : vector<16xf32>
    %94 = vector.multi_reduction <maximumf>, %93, %cst_27 [1] : vector<16x16xf32> to vector<16xf32>
    %95 = vector.shape_cast %94 : vector<16xf32> to vector<16x1xf32>
    %96 = vector.broadcast %95 : vector<16x1xf32> to vector<16x16xf32>
    %97 = arith.subf %93, %96 : vector<16x16xf32>
    %98 = math.exp %97 : vector<16x16xf32>
    %cst_28 = arith.constant dense<0.000000e+00> : vector<16xf32>
    %99 = vector.multi_reduction <add>, %98, %cst_28 [1] : vector<16x16xf32> to vector<16xf32>
    %100 = vector.shape_cast %99 : vector<16xf32> to vector<16x1xf32>
    %101 = tpu.reciprocal %100 {approx = true} : vector<16x1xf32> -> vector<16x1xf32>
    %102 = vector.broadcast %101 : vector<16x1xf32> to vector<16x16xf32>
    %103 = arith.mulf %98, %102 : vector<16x16xf32>
    %104 = vector.extract_strided_slice %49 {offsets = [0, 64], sizes = [16, 32], strides = [1, 1]} : vector<16x128xf32> to vector<16x32xf32>
    %105 = arith.truncf %103 : vector<16x16xf32> to vector<16x16xbf16>
    %106 = arith.truncf %104 : vector<16x32xf32> to vector<16x32xbf16>
    %cst_29 = arith.constant dense<0.000000e+00> : vector<16x32xf32>
    %107 = tpu.matmul %105, %106, %cst_29 {dimension_numbers = #tpu.dot_dimension_numbers<[1], [0], [0], [1], [0, 0, 1, 1], [], []>} : vector<16x16xbf16>, vector<16x32xbf16>, vector<16x32xf32> -> vector<16x32xf32>
    %108 = arith.addf %88, %107 : vector<16x32xf32>
    %109 = vector.extract_strided_slice %47 {offsets = [0, 96], sizes = [16, 32], strides = [1, 1]} : vector<16x128xf32> to vector<16x32xf32>
    %110 = arith.truncf %109 : vector<16x32xf32> to vector<16x32xbf16>
    %111 = arith.truncf %45 : vector<16x32xf32> to vector<16x32xbf16>
    %cst_30 = arith.constant dense<0.000000e+00> : vector<16x16xf32>
    %112 = tpu.matmul %110, %111, %cst_30 {dimension_numbers = #tpu.dot_dimension_numbers<[1], [1], [0], [0], [0, 0, 1, 0], [], []>} : vector<16x32xbf16>, vector<16x32xbf16>, vector<16x16xf32> -> vector<16x16xf32>
    %113 = arith.addf %112, %6 : vector<16x16xf32>
    %cst_31 = arith.constant dense<0xFF800000> : vector<16xf32>
    %114 = vector.multi_reduction <maximumf>, %113, %cst_31 [1] : vector<16x16xf32> to vector<16xf32>
    %115 = vector.shape_cast %114 : vector<16xf32> to vector<16x1xf32>
    %116 = vector.broadcast %115 : vector<16x1xf32> to vector<16x16xf32>
    %117 = arith.subf %113, %116 : vector<16x16xf32>
    %118 = math.exp %117 : vector<16x16xf32>
    %cst_32 = arith.constant dense<0.000000e+00> : vector<16xf32>
    %119 = vector.multi_reduction <add>, %118, %cst_32 [1] : vector<16x16xf32> to vector<16xf32>
    %120 = vector.shape_cast %119 : vector<16xf32> to vector<16x1xf32>
    %121 = tpu.reciprocal %120 {approx = true} : vector<16x1xf32> -> vector<16x1xf32>
    %122 = vector.broadcast %121 : vector<16x1xf32> to vector<16x16xf32>
    %123 = arith.mulf %118, %122 : vector<16x16xf32>
    %124 = vector.extract_strided_slice %49 {offsets = [0, 96], sizes = [16, 32], strides = [1, 1]} : vector<16x128xf32> to vector<16x32xf32>
    %125 = arith.truncf %123 : vector<16x16xf32> to vector<16x16xbf16>
    %126 = arith.truncf %124 : vector<16x32xf32> to vector<16x32xbf16>
    %cst_33 = arith.constant dense<0.000000e+00> : vector<16x32xf32>
    %127 = tpu.matmul %125, %126, %cst_33 {dimension_numbers = #tpu.dot_dimension_numbers<[1], [0], [0], [1], [0, 0, 1, 1], [], []>} : vector<16x16xbf16>, vector<16x32xbf16>, vector<16x32xf32> -> vector<16x32xf32>
    %128 = arith.addf %108, %127 : vector<16x32xf32>
    %129 = arith.addf %12, %128 : vector<16x32xf32>
    %130 = vector.broadcast %17 : vector<1x32xf32> to vector<16x32xf32>
    %131 = arith.addf %129, %130 : vector<16x32xf32>
    %cst_34 = arith.constant dense<0.000000e+00> : vector<16xf32>
    %132 = vector.multi_reduction <add>, %131, %cst_34 [1] : vector<16x32xf32> to vector<16xf32>
    %133 = vector.shape_cast %132 : vector<16xf32> to vector<16x1xf32>
    %cst_35 = arith.constant 3.200000e+01 : f32
    %134 = vector.broadcast %cst_35 : f32 to vector<16x1xf32>
    %135 = arith.divf %133, %134 : vector<16x1xf32>
    %136 = arith.mulf %131, %131 : vector<16x32xf32>
    %cst_36 = arith.constant dense<0.000000e+00> : vector<16xf32>
    %137 = vector.multi_reduction <add>, %136, %cst_36 [1] : vector<16x32xf32> to vector<16xf32>
    %138 = vector.shape_cast %137 : vector<16xf32> to vector<16x1xf32>
    %cst_37 = arith.constant 3.200000e+01 : f32
    %139 = vector.broadcast %cst_37 : f32 to vector<16x1xf32>
    %140 = arith.divf %138, %139 : vector<16x1xf32>
    %141 = vector.broadcast %135 : vector<16x1xf32> to vector<16x32xf32>
    %142 = arith.subf %131, %141 : vector<16x32xf32>
    %143 = arith.mulf %135, %135 : vector<16x1xf32>
    %144 = arith.subf %140, %143 : vector<16x1xf32>
    %cst_38 = arith.constant 9.99999974E-6 : f32
    %145 = vector.broadcast %cst_38 : f32 to vector<16x1xf32>
    %146 = arith.addf %144, %145 : vector<16x1xf32>
    %147 = math.rsqrt %146 : vector<16x1xf32>
    %148 = vector.broadcast %147 : vector<16x1xf32> to vector<16x32xf32>
    %149 = arith.mulf %142, %148 : vector<16x32xf32>
    %150 = vector.broadcast %15 : vector<1x32xf32> to vector<16x32xf32>
    %151 = arith.mulf %149, %150 : vector<16x32xf32>
    %152 = vector.broadcast %16 : vector<1x32xf32> to vector<16x32xf32>
    %153 = arith.addf %151, %152 : vector<16x32xf32>
    %c4 = arith.constant 4 : index
    %c0_39 = arith.constant 0 : index
    %c0_40 = arith.constant 0 : index
    %154 = vector.load %arg3[%c4, %c0_39, %c0_40] : memref<9x32x128xbf16, #tpu.memory_space<vmem>>, vector<1x32x128xbf16>
    %155 = vector.shape_cast %154 : vector<1x32x128xbf16> to vector<32x128xbf16>
    %156 = arith.truncf %153 : vector<16x32xf32> to vector<16x32xbf16>
    %cst_41 = arith.constant dense<0.000000e+00> : vector<16x128xf32>
    %157 = tpu.matmul %156, %155, %cst_41 {dimension_numbers = #tpu.dot_dimension_numbers<[1], [0], [0], [1], [0, 0, 1, 1], [], []>} : vector<16x32xbf16>, vector<32x128xbf16>, vector<16x128xf32> -> vector<16x128xf32>
    %158 = vector.broadcast %18 : vector<1x128xf32> to vector<16x128xf32>
    %159 = arith.addf %157, %158 : vector<16x128xf32>
    %cst_42 = arith.constant 1.702000e+00 : f32
    %160 = vector.broadcast %cst_42 : f32 to vector<16x128xf32>
    %161 = arith.mulf %160, %159 : vector<16x128xf32>
    %162 = arith.negf %161 : vector<16x128xf32>
    %163 = math.exp %162 : vector<16x128xf32>
    %cst_43 = arith.constant 1.000000e+00 : f32
    %164 = vector.broadcast %cst_43 : f32 to vector<16x128xf32>
    %165 = arith.addf %164, %163 : vector<16x128xf32>
    %166 = arith.divf %164, %165 : vector<16x128xf32>
    %167 = arith.mulf %159, %166 : vector<16x128xf32>
    %c0_44 = arith.constant 0 : index
    %c0_45 = arith.constant 0 : index
    %c0_46 = arith.constant 0 : index
    %168 = vector.load %arg4[%c0_44, %c0_45, %c0_46] : memref<3x128x32xbf16, #tpu.memory_space<vmem>>, vector<1x128x32xbf16>
    %169 = vector.shape_cast %168 : vector<1x128x32xbf16> to vector<128x32xbf16>
    %170 = arith.truncf %167 : vector<16x128xf32> to vector<16x128xbf16>
    %cst_47 = arith.constant dense<0.000000e+00> : vector<16x32xf32>
    %171 = tpu.matmul %170, %169, %cst_47 {dimension_numbers = #tpu.dot_dimension_numbers<[1], [0], [0], [1], [0, 0, 1, 1], [], []>} : vector<16x128xbf16>, vector<128x32xbf16>, vector<16x32xf32> -> vector<16x32xf32>
    %172 = arith.addf %131, %171 : vector<16x32xf32>
    %173 = vector.broadcast %19 : vector<1x32xf32> to vector<16x32xf32>
    %174 = arith.addf %172, %173 : vector<16x32xf32>
    %175 = vector.extract_strided_slice %0 {offsets = [7, 0], sizes = [1, 32], strides = [1, 1]} : vector<24x128xf32> to vector<1x32xf32>
    %176 = vector.extract_strided_slice %0 {offsets = [8, 0], sizes = [1, 32], strides = [1, 1]} : vector<24x128xf32> to vector<1x32xf32>
    %177 = vector.extract_strided_slice %0 {offsets = [9, 0], sizes = [1, 32], strides = [1, 1]} : vector<24x128xf32> to vector<1x32xf32>
    %178 = vector.extract_strided_slice %0 {offsets = [10, 0], sizes = [1, 32], strides = [1, 1]} : vector<24x128xf32> to vector<1x32xf32>
    %179 = vector.extract_strided_slice %0 {offsets = [11, 0], sizes = [1, 32], strides = [1, 1]} : vector<24x128xf32> to vector<1x32xf32>
    %180 = vector.extract_strided_slice %0 {offsets = [12, 0], sizes = [1, 128], strides = [1, 1]} : vector<24x128xf32> to vector<1x128xf32>
    %181 = vector.extract_strided_slice %0 {offsets = [13, 0], sizes = [1, 32], strides = [1, 1]} : vector<24x128xf32> to vector<1x32xf32>
    %c2 = arith.constant 2 : index
    %c0_48 = arith.constant 0 : index
    %c0_49 = arith.constant 0 : index
    %182 = vector.load %arg3[%c2, %c0_48, %c0_49] : memref<9x32x128xbf16, #tpu.memory_space<vmem>>, vector<1x32x128xbf16>
    %183 = vector.shape_cast %182 : vector<1x32x128xbf16> to vector<32x128xbf16>
    %c3 = arith.constant 3 : index
    %c0_50 = arith.constant 0 : index
    %c0_51 = arith.constant 0 : index
    %184 = vector.load %arg3[%c3, %c0_50, %c0_51] : memref<9x32x128xbf16, #tpu.memory_space<vmem>>, vector<1x32x128xbf16>
    %185 = vector.shape_cast %184 : vector<1x32x128xbf16> to vector<32x128xbf16>
    %cst_52 = arith.constant dense<0.000000e+00> : vector<16xf32>
    %186 = vector.multi_reduction <add>, %174, %cst_52 [1] : vector<16x32xf32> to vector<16xf32>
    %187 = vector.shape_cast %186 : vector<16xf32> to vector<16x1xf32>
    %cst_53 = arith.constant 3.200000e+01 : f32
    %188 = vector.broadcast %cst_53 : f32 to vector<16x1xf32>
    %189 = arith.divf %187, %188 : vector<16x1xf32>
    %190 = arith.mulf %174, %174 : vector<16x32xf32>
    %cst_54 = arith.constant dense<0.000000e+00> : vector<16xf32>
    %191 = vector.multi_reduction <add>, %190, %cst_54 [1] : vector<16x32xf32> to vector<16xf32>
    %192 = vector.shape_cast %191 : vector<16xf32> to vector<16x1xf32>
    %cst_55 = arith.constant 3.200000e+01 : f32
    %193 = vector.broadcast %cst_55 : f32 to vector<16x1xf32>
    %194 = arith.divf %192, %193 : vector<16x1xf32>
    %195 = vector.broadcast %189 : vector<16x1xf32> to vector<16x32xf32>
    %196 = arith.subf %174, %195 : vector<16x32xf32>
    %197 = arith.mulf %189, %189 : vector<16x1xf32>
    %198 = arith.subf %194, %197 : vector<16x1xf32>
    %cst_56 = arith.constant 9.99999974E-6 : f32
    %199 = vector.broadcast %cst_56 : f32 to vector<16x1xf32>
    %200 = arith.addf %198, %199 : vector<16x1xf32>
    %201 = math.rsqrt %200 : vector<16x1xf32>
    %202 = vector.broadcast %201 : vector<16x1xf32> to vector<16x32xf32>
    %203 = arith.mulf %196, %202 : vector<16x32xf32>
    %204 = vector.broadcast %175 : vector<1x32xf32> to vector<16x32xf32>
    %205 = arith.mulf %203, %204 : vector<16x32xf32>
    %206 = vector.broadcast %176 : vector<1x32xf32> to vector<16x32xf32>
    %207 = arith.addf %205, %206 : vector<16x32xf32>
    %208 = arith.truncf %207 : vector<16x32xf32> to vector<16x32xbf16>
    %cst_57 = arith.constant dense<0.000000e+00> : vector<16x128xf32>
    %209 = tpu.matmul %208, %183, %cst_57 {dimension_numbers = #tpu.dot_dimension_numbers<[1], [0], [0], [1], [0, 0, 1, 1], [], []>} : vector<16x32xbf16>, vector<32x128xbf16>, vector<16x128xf32> -> vector<16x128xf32>
    %210 = arith.truncf %207 : vector<16x32xf32> to vector<16x32xbf16>
    %cst_58 = arith.constant dense<0.000000e+00> : vector<16x128xf32>
    %211 = tpu.matmul %210, %185, %cst_58 {dimension_numbers = #tpu.dot_dimension_numbers<[1], [0], [0], [1], [0, 0, 1, 1], [], []>} : vector<16x32xbf16>, vector<32x128xbf16>, vector<16x128xf32> -> vector<16x128xf32>
    %212 = vector.extract_strided_slice %209 {offsets = [0, 0], sizes = [16, 32], strides = [1, 1]} : vector<16x128xf32> to vector<16x32xf32>
    %213 = arith.truncf %212 : vector<16x32xf32> to vector<16x32xbf16>
    %214 = arith.truncf %207 : vector<16x32xf32> to vector<16x32xbf16>
    %cst_59 = arith.constant dense<0.000000e+00> : vector<16x16xf32>
    %215 = tpu.matmul %213, %214, %cst_59 {dimension_numbers = #tpu.dot_dimension_numbers<[1], [1], [0], [0], [0, 0, 1, 0], [], []>} : vector<16x32xbf16>, vector<16x32xbf16>, vector<16x16xf32> -> vector<16x16xf32>
    %216 = arith.addf %215, %6 : vector<16x16xf32>
    %cst_60 = arith.constant dense<0xFF800000> : vector<16xf32>
    %217 = vector.multi_reduction <maximumf>, %216, %cst_60 [1] : vector<16x16xf32> to vector<16xf32>
    %218 = vector.shape_cast %217 : vector<16xf32> to vector<16x1xf32>
    %219 = vector.broadcast %218 : vector<16x1xf32> to vector<16x16xf32>
    %220 = arith.subf %216, %219 : vector<16x16xf32>
    %221 = math.exp %220 : vector<16x16xf32>
    %cst_61 = arith.constant dense<0.000000e+00> : vector<16xf32>
    %222 = vector.multi_reduction <add>, %221, %cst_61 [1] : vector<16x16xf32> to vector<16xf32>
    %223 = vector.shape_cast %222 : vector<16xf32> to vector<16x1xf32>
    %224 = tpu.reciprocal %223 {approx = true} : vector<16x1xf32> -> vector<16x1xf32>
    %225 = vector.broadcast %224 : vector<16x1xf32> to vector<16x16xf32>
    %226 = arith.mulf %221, %225 : vector<16x16xf32>
    %227 = vector.extract_strided_slice %211 {offsets = [0, 0], sizes = [16, 32], strides = [1, 1]} : vector<16x128xf32> to vector<16x32xf32>
    %228 = arith.truncf %226 : vector<16x16xf32> to vector<16x16xbf16>
    %229 = arith.truncf %227 : vector<16x32xf32> to vector<16x32xbf16>
    %cst_62 = arith.constant dense<0.000000e+00> : vector<16x32xf32>
    %230 = tpu.matmul %228, %229, %cst_62 {dimension_numbers = #tpu.dot_dimension_numbers<[1], [0], [0], [1], [0, 0, 1, 1], [], []>} : vector<16x16xbf16>, vector<16x32xbf16>, vector<16x32xf32> -> vector<16x32xf32>
    %231 = vector.extract_strided_slice %209 {offsets = [0, 32], sizes = [16, 32], strides = [1, 1]} : vector<16x128xf32> to vector<16x32xf32>
    %232 = arith.truncf %231 : vector<16x32xf32> to vector<16x32xbf16>
    %233 = arith.truncf %207 : vector<16x32xf32> to vector<16x32xbf16>
    %cst_63 = arith.constant dense<0.000000e+00> : vector<16x16xf32>
    %234 = tpu.matmul %232, %233, %cst_63 {dimension_numbers = #tpu.dot_dimension_numbers<[1], [1], [0], [0], [0, 0, 1, 0], [], []>} : vector<16x32xbf16>, vector<16x32xbf16>, vector<16x16xf32> -> vector<16x16xf32>
    %235 = arith.addf %234, %6 : vector<16x16xf32>
    %cst_64 = arith.constant dense<0xFF800000> : vector<16xf32>
    %236 = vector.multi_reduction <maximumf>, %235, %cst_64 [1] : vector<16x16xf32> to vector<16xf32>
    %237 = vector.shape_cast %236 : vector<16xf32> to vector<16x1xf32>
    %238 = vector.broadcast %237 : vector<16x1xf32> to vector<16x16xf32>
    %239 = arith.subf %235, %238 : vector<16x16xf32>
    %240 = math.exp %239 : vector<16x16xf32>
    %cst_65 = arith.constant dense<0.000000e+00> : vector<16xf32>
    %241 = vector.multi_reduction <add>, %240, %cst_65 [1] : vector<16x16xf32> to vector<16xf32>
    %242 = vector.shape_cast %241 : vector<16xf32> to vector<16x1xf32>
    %243 = tpu.reciprocal %242 {approx = true} : vector<16x1xf32> -> vector<16x1xf32>
    %244 = vector.broadcast %243 : vector<16x1xf32> to vector<16x16xf32>
    %245 = arith.mulf %240, %244 : vector<16x16xf32>
    %246 = vector.extract_strided_slice %211 {offsets = [0, 32], sizes = [16, 32], strides = [1, 1]} : vector<16x128xf32> to vector<16x32xf32>
    %247 = arith.truncf %245 : vector<16x16xf32> to vector<16x16xbf16>
    %248 = arith.truncf %246 : vector<16x32xf32> to vector<16x32xbf16>
    %cst_66 = arith.constant dense<0.000000e+00> : vector<16x32xf32>
    %249 = tpu.matmul %247, %248, %cst_66 {dimension_numbers = #tpu.dot_dimension_numbers<[1], [0], [0], [1], [0, 0, 1, 1], [], []>} : vector<16x16xbf16>, vector<16x32xbf16>, vector<16x32xf32> -> vector<16x32xf32>
    %250 = arith.addf %230, %249 : vector<16x32xf32>
    %251 = vector.extract_strided_slice %209 {offsets = [0, 64], sizes = [16, 32], strides = [1, 1]} : vector<16x128xf32> to vector<16x32xf32>
    %252 = arith.truncf %251 : vector<16x32xf32> to vector<16x32xbf16>
    %253 = arith.truncf %207 : vector<16x32xf32> to vector<16x32xbf16>
    %cst_67 = arith.constant dense<0.000000e+00> : vector<16x16xf32>
    %254 = tpu.matmul %252, %253, %cst_67 {dimension_numbers = #tpu.dot_dimension_numbers<[1], [1], [0], [0], [0, 0, 1, 0], [], []>} : vector<16x32xbf16>, vector<16x32xbf16>, vector<16x16xf32> -> vector<16x16xf32>
    %255 = arith.addf %254, %6 : vector<16x16xf32>
    %cst_68 = arith.constant dense<0xFF800000> : vector<16xf32>
    %256 = vector.multi_reduction <maximumf>, %255, %cst_68 [1] : vector<16x16xf32> to vector<16xf32>
    %257 = vector.shape_cast %256 : vector<16xf32> to vector<16x1xf32>
    %258 = vector.broadcast %257 : vector<16x1xf32> to vector<16x16xf32>
    %259 = arith.subf %255, %258 : vector<16x16xf32>
    %260 = math.exp %259 : vector<16x16xf32>
    %cst_69 = arith.constant dense<0.000000e+00> : vector<16xf32>
    %261 = vector.multi_reduction <add>, %260, %cst_69 [1] : vector<16x16xf32> to vector<16xf32>
    %262 = vector.shape_cast %261 : vector<16xf32> to vector<16x1xf32>
    %263 = tpu.reciprocal %262 {approx = true} : vector<16x1xf32> -> vector<16x1xf32>
    %264 = vector.broadcast %263 : vector<16x1xf32> to vector<16x16xf32>
    %265 = arith.mulf %260, %264 : vector<16x16xf32>
    %266 = vector.extract_strided_slice %211 {offsets = [0, 64], sizes = [16, 32], strides = [1, 1]} : vector<16x128xf32> to vector<16x32xf32>
    %267 = arith.truncf %265 : vector<16x16xf32> to vector<16x16xbf16>
    %268 = arith.truncf %266 : vector<16x32xf32> to vector<16x32xbf16>
    %cst_70 = arith.constant dense<0.000000e+00> : vector<16x32xf32>
    %269 = tpu.matmul %267, %268, %cst_70 {dimension_numbers = #tpu.dot_dimension_numbers<[1], [0], [0], [1], [0, 0, 1, 1], [], []>} : vector<16x16xbf16>, vector<16x32xbf16>, vector<16x32xf32> -> vector<16x32xf32>
    %270 = arith.addf %250, %269 : vector<16x32xf32>
    %271 = vector.extract_strided_slice %209 {offsets = [0, 96], sizes = [16, 32], strides = [1, 1]} : vector<16x128xf32> to vector<16x32xf32>
    %272 = arith.truncf %271 : vector<16x32xf32> to vector<16x32xbf16>
    %273 = arith.truncf %207 : vector<16x32xf32> to vector<16x32xbf16>
    %cst_71 = arith.constant dense<0.000000e+00> : vector<16x16xf32>
    %274 = tpu.matmul %272, %273, %cst_71 {dimension_numbers = #tpu.dot_dimension_numbers<[1], [1], [0], [0], [0, 0, 1, 0], [], []>} : vector<16x32xbf16>, vector<16x32xbf16>, vector<16x16xf32> -> vector<16x16xf32>
    %275 = arith.addf %274, %6 : vector<16x16xf32>
    %cst_72 = arith.constant dense<0xFF800000> : vector<16xf32>
    %276 = vector.multi_reduction <maximumf>, %275, %cst_72 [1] : vector<16x16xf32> to vector<16xf32>
    %277 = vector.shape_cast %276 : vector<16xf32> to vector<16x1xf32>
    %278 = vector.broadcast %277 : vector<16x1xf32> to vector<16x16xf32>
    %279 = arith.subf %275, %278 : vector<16x16xf32>
    %280 = math.exp %279 : vector<16x16xf32>
    %cst_73 = arith.constant dense<0.000000e+00> : vector<16xf32>
    %281 = vector.multi_reduction <add>, %280, %cst_73 [1] : vector<16x16xf32> to vector<16xf32>
    %282 = vector.shape_cast %281 : vector<16xf32> to vector<16x1xf32>
    %283 = tpu.reciprocal %282 {approx = true} : vector<16x1xf32> -> vector<16x1xf32>
    %284 = vector.broadcast %283 : vector<16x1xf32> to vector<16x16xf32>
    %285 = arith.mulf %280, %284 : vector<16x16xf32>
    %286 = vector.extract_strided_slice %211 {offsets = [0, 96], sizes = [16, 32], strides = [1, 1]} : vector<16x128xf32> to vector<16x32xf32>
    %287 = arith.truncf %285 : vector<16x16xf32> to vector<16x16xbf16>
    %288 = arith.truncf %286 : vector<16x32xf32> to vector<16x32xbf16>
    %cst_74 = arith.constant dense<0.000000e+00> : vector<16x32xf32>
    %289 = tpu.matmul %287, %288, %cst_74 {dimension_numbers = #tpu.dot_dimension_numbers<[1], [0], [0], [1], [0, 0, 1, 1], [], []>} : vector<16x16xbf16>, vector<16x32xbf16>, vector<16x32xf32> -> vector<16x32xf32>
    %290 = arith.addf %270, %289 : vector<16x32xf32>
    %291 = arith.addf %174, %290 : vector<16x32xf32>
    %292 = vector.broadcast %179 : vector<1x32xf32> to vector<16x32xf32>
    %293 = arith.addf %291, %292 : vector<16x32xf32>
    %cst_75 = arith.constant dense<0.000000e+00> : vector<16xf32>
    %294 = vector.multi_reduction <add>, %293, %cst_75 [1] : vector<16x32xf32> to vector<16xf32>
    %295 = vector.shape_cast %294 : vector<16xf32> to vector<16x1xf32>
    %cst_76 = arith.constant 3.200000e+01 : f32
    %296 = vector.broadcast %cst_76 : f32 to vector<16x1xf32>
    %297 = arith.divf %295, %296 : vector<16x1xf32>
    %298 = arith.mulf %293, %293 : vector<16x32xf32>
    %cst_77 = arith.constant dense<0.000000e+00> : vector<16xf32>
    %299 = vector.multi_reduction <add>, %298, %cst_77 [1] : vector<16x32xf32> to vector<16xf32>
    %300 = vector.shape_cast %299 : vector<16xf32> to vector<16x1xf32>
    %cst_78 = arith.constant 3.200000e+01 : f32
    %301 = vector.broadcast %cst_78 : f32 to vector<16x1xf32>
    %302 = arith.divf %300, %301 : vector<16x1xf32>
    %303 = vector.broadcast %297 : vector<16x1xf32> to vector<16x32xf32>
    %304 = arith.subf %293, %303 : vector<16x32xf32>
    %305 = arith.mulf %297, %297 : vector<16x1xf32>
    %306 = arith.subf %302, %305 : vector<16x1xf32>
    %cst_79 = arith.constant 9.99999974E-6 : f32
    %307 = vector.broadcast %cst_79 : f32 to vector<16x1xf32>
    %308 = arith.addf %306, %307 : vector<16x1xf32>
    %309 = math.rsqrt %308 : vector<16x1xf32>
    %310 = vector.broadcast %309 : vector<16x1xf32> to vector<16x32xf32>
    %311 = arith.mulf %304, %310 : vector<16x32xf32>
    %312 = vector.broadcast %177 : vector<1x32xf32> to vector<16x32xf32>
    %313 = arith.mulf %311, %312 : vector<16x32xf32>
    %314 = vector.broadcast %178 : vector<1x32xf32> to vector<16x32xf32>
    %315 = arith.addf %313, %314 : vector<16x32xf32>
    %c5 = arith.constant 5 : index
    %c0_80 = arith.constant 0 : index
    %c0_81 = arith.constant 0 : index
    %316 = vector.load %arg3[%c5, %c0_80, %c0_81] : memref<9x32x128xbf16, #tpu.memory_space<vmem>>, vector<1x32x128xbf16>
    %317 = vector.shape_cast %316 : vector<1x32x128xbf16> to vector<32x128xbf16>
    %318 = arith.truncf %315 : vector<16x32xf32> to vector<16x32xbf16>
    %cst_82 = arith.constant dense<0.000000e+00> : vector<16x128xf32>
    %319 = tpu.matmul %318, %317, %cst_82 {dimension_numbers = #tpu.dot_dimension_numbers<[1], [0], [0], [1], [0, 0, 1, 1], [], []>} : vector<16x32xbf16>, vector<32x128xbf16>, vector<16x128xf32> -> vector<16x128xf32>
    %320 = vector.broadcast %180 : vector<1x128xf32> to vector<16x128xf32>
    %321 = arith.addf %319, %320 : vector<16x128xf32>
    %cst_83 = arith.constant 1.702000e+00 : f32
    %322 = vector.broadcast %cst_83 : f32 to vector<16x128xf32>
    %323 = arith.mulf %322, %321 : vector<16x128xf32>
    %324 = arith.negf %323 : vector<16x128xf32>
    %325 = math.exp %324 : vector<16x128xf32>
    %cst_84 = arith.constant 1.000000e+00 : f32
    %326 = vector.broadcast %cst_84 : f32 to vector<16x128xf32>
    %327 = arith.addf %326, %325 : vector<16x128xf32>
    %328 = arith.divf %326, %327 : vector<16x128xf32>
    %329 = arith.mulf %321, %328 : vector<16x128xf32>
    %c1_85 = arith.constant 1 : index
    %c0_86 = arith.constant 0 : index
    %c0_87 = arith.constant 0 : index
    %330 = vector.load %arg4[%c1_85, %c0_86, %c0_87] : memref<3x128x32xbf16, #tpu.memory_space<vmem>>, vector<1x128x32xbf16>
    %331 = vector.shape_cast %330 : vector<1x128x32xbf16> to vector<128x32xbf16>
    %332 = arith.truncf %329 : vector<16x128xf32> to vector<16x128xbf16>
    %cst_88 = arith.constant dense<0.000000e+00> : vector<16x32xf32>
    %333 = tpu.matmul %332, %331, %cst_88 {dimension_numbers = #tpu.dot_dimension_numbers<[1], [0], [0], [1], [0, 0, 1, 1], [], []>} : vector<16x128xbf16>, vector<128x32xbf16>, vector<16x32xf32> -> vector<16x32xf32>
    %334 = arith.addf %293, %333 : vector<16x32xf32>
    %335 = vector.broadcast %181 : vector<1x32xf32> to vector<16x32xf32>
    %336 = arith.addf %334, %335 : vector<16x32xf32>
    %337 = arith.mulf %336, %336 : vector<16x32xf32>
    %cst_89 = arith.constant dense<0.000000e+00> : vector<16xf32>
    %338 = vector.multi_reduction <add>, %337, %cst_89 [1] : vector<16x32xf32> to vector<16xf32>
    %339 = vector.shape_cast %338 : vector<16xf32> to vector<16x1xf32>
    %cst_90 = arith.constant 9.99999996E-13 : f32
    %340 = vector.broadcast %cst_90 : f32 to vector<16x1xf32>
    %341 = arith.addf %339, %340 : vector<16x1xf32>
    %342 = math.rsqrt %341 : vector<16x1xf32>
    %343 = vector.broadcast %342 : vector<16x1xf32> to vector<16x32xf32>
    %344 = arith.mulf %336, %343 : vector<16x32xf32>
    %345 = arith.truncf %344 : vector<16x32xf32> to vector<16x32xbf16>
    %346 = arith.truncf %344 : vector<16x32xf32> to vector<16x32xbf16>
    %cst_91 = arith.constant dense<0.000000e+00> : vector<16x16xf32>
    %347 = tpu.matmul %345, %346, %cst_91 {dimension_numbers = #tpu.dot_dimension_numbers<[1], [1], [0], [0], [0, 0, 1, 0], [], []>} : vector<16x32xbf16>, vector<16x32xbf16>, vector<16x16xf32> -> vector<16x16xf32>
    %cst_92 = arith.constant 0.699999988 : f32
    %348 = vector.broadcast %cst_92 : f32 to vector<16x16xf32>
    %349 = arith.cmpf ogt, %347, %348 : vector<16x16xf32>
    %cst_93 = arith.constant 0.000000e+00 : f32
    %350 = vector.broadcast %cst_93 : f32 to vector<16x16xf32>
    %351 = arith.select %349, %347, %350 : vector<16x16xi1>, vector<16x16xf32>
    %cst_94 = arith.constant dense<0xFF800000> : vector<16xf32>
    %352 = vector.multi_reduction <maximumf>, %351, %cst_94 [1] : vector<16x16xf32> to vector<16xf32>
    %353 = vector.shape_cast %352 : vector<16xf32> to vector<16x1xf32>
    %354 = vector.broadcast %353 : vector<16x1xf32> to vector<16x16xf32>
    %355 = arith.subf %351, %354 : vector<16x16xf32>
    %356 = math.exp %355 : vector<16x16xf32>
    %cst_95 = arith.constant dense<0.000000e+00> : vector<16xf32>
    %357 = vector.multi_reduction <add>, %356, %cst_95 [1] : vector<16x16xf32> to vector<16xf32>
    %358 = vector.shape_cast %357 : vector<16xf32> to vector<16x1xf32>
    %359 = tpu.reciprocal %358 {approx = true} : vector<16x1xf32> -> vector<16x1xf32>
    %360 = vector.broadcast %359 : vector<16x1xf32> to vector<16x16xf32>
    %361 = arith.mulf %356, %360 : vector<16x16xf32>
    %c8 = arith.constant 8 : index
    %c0_96 = arith.constant 0 : index
    %c0_97 = arith.constant 0 : index
    %362 = vector.load %arg3[%c8, %c0_96, %c0_97] : memref<9x32x128xbf16, #tpu.memory_space<vmem>>, vector<1x32x128xbf16>
    %363 = vector.shape_cast %362 : vector<1x32x128xbf16> to vector<32x128xbf16>
    %364 = vector.extract_strided_slice %363 {offsets = [0, 0], sizes = [32, 16], strides = [1, 1]} : vector<32x128xbf16> to vector<32x16xbf16>
    %365 = vector.extract_strided_slice %363 {offsets = [0, 16], sizes = [32, 16], strides = [1, 1]} : vector<32x128xbf16> to vector<32x16xbf16>
    %366 = vector.extract_strided_slice %363 {offsets = [0, 32], sizes = [32, 16], strides = [1, 1]} : vector<32x128xbf16> to vector<32x16xbf16>
    %367 = vector.extract_strided_slice %363 {offsets = [0, 48], sizes = [32, 16], strides = [1, 1]} : vector<32x128xbf16> to vector<32x16xbf16>
    %368 = vector.extract_strided_slice %363 {offsets = [0, 64], sizes = [16, 16], strides = [1, 1]} : vector<32x128xbf16> to vector<16x16xbf16>
    %369 = vector.extract_strided_slice %363 {offsets = [0, 80], sizes = [16, 16], strides = [1, 1]} : vector<32x128xbf16> to vector<16x16xbf16>
    %370 = arith.truncf %336 : vector<16x32xf32> to vector<16x32xbf16>
    %cst_98 = arith.constant dense<0.000000e+00> : vector<16x16xf32>
    %371 = tpu.matmul %370, %364, %cst_98 {dimension_numbers = #tpu.dot_dimension_numbers<[1], [0], [0], [1], [0, 0, 1, 1], [], []>} : vector<16x32xbf16>, vector<32x16xbf16>, vector<16x16xf32> -> vector<16x16xf32>
    %372 = arith.truncf %361 : vector<16x16xf32> to vector<16x16xbf16>
    %373 = arith.truncf %371 : vector<16x16xf32> to vector<16x16xbf16>
    %cst_99 = arith.constant dense<0.000000e+00> : vector<16x16xf32>
    %374 = tpu.matmul %372, %373, %cst_99 {dimension_numbers = #tpu.dot_dimension_numbers<[1], [0], [0], [1], [0, 0, 1, 1], [], []>} : vector<16x16xbf16>, vector<16x16xbf16>, vector<16x16xf32> -> vector<16x16xf32>
    %375 = arith.truncf %336 : vector<16x32xf32> to vector<16x32xbf16>
    %cst_100 = arith.constant dense<0.000000e+00> : vector<16x16xf32>
    %376 = tpu.matmul %375, %365, %cst_100 {dimension_numbers = #tpu.dot_dimension_numbers<[1], [0], [0], [1], [0, 0, 1, 1], [], []>} : vector<16x32xbf16>, vector<32x16xbf16>, vector<16x16xf32> -> vector<16x16xf32>
    %377 = arith.addf %374, %376 : vector<16x16xf32>
    %cst_101 = arith.constant 1.702000e+00 : f32
    %378 = vector.broadcast %cst_101 : f32 to vector<16x16xf32>
    %379 = arith.mulf %378, %377 : vector<16x16xf32>
    %380 = arith.negf %379 : vector<16x16xf32>
    %381 = math.exp %380 : vector<16x16xf32>
    %cst_102 = arith.constant 1.000000e+00 : f32
    %382 = vector.broadcast %cst_102 : f32 to vector<16x16xf32>
    %383 = arith.addf %382, %381 : vector<16x16xf32>
    %384 = arith.divf %382, %383 : vector<16x16xf32>
    %385 = arith.mulf %377, %384 : vector<16x16xf32>
    %386 = arith.truncf %385 : vector<16x16xf32> to vector<16x16xbf16>
    %cst_103 = arith.constant dense<0.000000e+00> : vector<16x16xf32>
    %387 = tpu.matmul %386, %368, %cst_103 {dimension_numbers = #tpu.dot_dimension_numbers<[1], [0], [0], [1], [0, 0, 1, 1], [], []>} : vector<16x16xbf16>, vector<16x16xbf16>, vector<16x16xf32> -> vector<16x16xf32>
    %388 = arith.truncf %361 : vector<16x16xf32> to vector<16x16xbf16>
    %389 = arith.truncf %387 : vector<16x16xf32> to vector<16x16xbf16>
    %cst_104 = arith.constant dense<0.000000e+00> : vector<16x16xf32>
    %390 = tpu.matmul %388, %389, %cst_104 {dimension_numbers = #tpu.dot_dimension_numbers<[1], [0], [0], [1], [0, 0, 1, 1], [], []>} : vector<16x16xbf16>, vector<16x16xbf16>, vector<16x16xf32> -> vector<16x16xf32>
    %391 = arith.addf %390, %385 : vector<16x16xf32>
    %cst_105 = arith.constant 1.702000e+00 : f32
    %392 = vector.broadcast %cst_105 : f32 to vector<16x16xf32>
    %393 = arith.mulf %392, %391 : vector<16x16xf32>
    %394 = arith.negf %393 : vector<16x16xf32>
    %395 = math.exp %394 : vector<16x16xf32>
    %cst_106 = arith.constant 1.000000e+00 : f32
    %396 = vector.broadcast %cst_106 : f32 to vector<16x16xf32>
    %397 = arith.addf %396, %395 : vector<16x16xf32>
    %398 = arith.divf %396, %397 : vector<16x16xf32>
    %399 = arith.mulf %391, %398 : vector<16x16xf32>
    %400 = arith.truncf %336 : vector<16x32xf32> to vector<16x32xbf16>
    %cst_107 = arith.constant dense<0.000000e+00> : vector<16x16xf32>
    %401 = tpu.matmul %400, %366, %cst_107 {dimension_numbers = #tpu.dot_dimension_numbers<[1], [0], [0], [1], [0, 0, 1, 1], [], []>} : vector<16x32xbf16>, vector<32x16xbf16>, vector<16x16xf32> -> vector<16x16xf32>
    %402 = arith.truncf %9 : vector<16x16xf32> to vector<16x16xbf16>
    %403 = arith.truncf %401 : vector<16x16xf32> to vector<16x16xbf16>
    %cst_108 = arith.constant dense<0.000000e+00> : vector<16x16xf32>
    %404 = tpu.matmul %402, %403, %cst_108 {dimension_numbers = #tpu.dot_dimension_numbers<[1], [0], [0], [1], [0, 0, 1, 1], [], []>} : vector<16x16xbf16>, vector<16x16xbf16>, vector<16x16xf32> -> vector<16x16xf32>
    %405 = arith.truncf %336 : vector<16x32xf32> to vector<16x32xbf16>
    %cst_109 = arith.constant dense<0.000000e+00> : vector<16x16xf32>
    %406 = tpu.matmul %405, %367, %cst_109 {dimension_numbers = #tpu.dot_dimension_numbers<[1], [0], [0], [1], [0, 0, 1, 1], [], []>} : vector<16x32xbf16>, vector<32x16xbf16>, vector<16x16xf32> -> vector<16x16xf32>
    %407 = arith.addf %404, %406 : vector<16x16xf32>
    %cst_110 = arith.constant 1.702000e+00 : f32
    %408 = vector.broadcast %cst_110 : f32 to vector<16x16xf32>
    %409 = arith.mulf %408, %407 : vector<16x16xf32>
    %410 = arith.negf %409 : vector<16x16xf32>
    %411 = math.exp %410 : vector<16x16xf32>
    %cst_111 = arith.constant 1.000000e+00 : f32
    %412 = vector.broadcast %cst_111 : f32 to vector<16x16xf32>
    %413 = arith.addf %412, %411 : vector<16x16xf32>
    %414 = arith.divf %412, %413 : vector<16x16xf32>
    %415 = arith.mulf %407, %414 : vector<16x16xf32>
    %416 = arith.truncf %415 : vector<16x16xf32> to vector<16x16xbf16>
    %cst_112 = arith.constant dense<0.000000e+00> : vector<16x16xf32>
    %417 = tpu.matmul %416, %369, %cst_112 {dimension_numbers = #tpu.dot_dimension_numbers<[1], [0], [0], [1], [0, 0, 1, 1], [], []>} : vector<16x16xbf16>, vector<16x16xbf16>, vector<16x16xf32> -> vector<16x16xf32>
    %418 = arith.truncf %9 : vector<16x16xf32> to vector<16x16xbf16>
    %419 = arith.truncf %417 : vector<16x16xf32> to vector<16x16xbf16>
    %cst_113 = arith.constant dense<0.000000e+00> : vector<16x16xf32>
    %420 = tpu.matmul %418, %419, %cst_113 {dimension_numbers = #tpu.dot_dimension_numbers<[1], [0], [0], [1], [0, 0, 1, 1], [], []>} : vector<16x16xbf16>, vector<16x16xbf16>, vector<16x16xf32> -> vector<16x16xf32>
    %421 = arith.addf %420, %415 : vector<16x16xf32>
    %cst_114 = arith.constant 1.702000e+00 : f32
    %422 = vector.broadcast %cst_114 : f32 to vector<16x16xf32>
    %423 = arith.mulf %422, %421 : vector<16x16xf32>
    %424 = arith.negf %423 : vector<16x16xf32>
    %425 = math.exp %424 : vector<16x16xf32>
    %cst_115 = arith.constant 1.000000e+00 : f32
    %426 = vector.broadcast %cst_115 : f32 to vector<16x16xf32>
    %427 = arith.addf %426, %425 : vector<16x16xf32>
    %428 = arith.divf %426, %427 : vector<16x16xf32>
    %429 = arith.mulf %421, %428 : vector<16x16xf32>
    %c7 = arith.constant 7 : index
    %c0_116 = arith.constant 0 : index
    %c0_117 = arith.constant 0 : index
    %430 = vector.load %arg3[%c7, %c0_116, %c0_117] : memref<9x32x128xbf16, #tpu.memory_space<vmem>>, vector<1x32x128xbf16>
    %431 = vector.shape_cast %430 : vector<1x32x128xbf16> to vector<32x128xbf16>
    %432 = vector.extract_strided_slice %431 {offsets = [0, 96], sizes = [32, 32], strides = [1, 1]} : vector<32x128xbf16> to vector<32x32xbf16>
    %433 = vector.extract_strided_slice %0 {offsets = [14, 0], sizes = [1, 32], strides = [1, 1]} : vector<24x128xf32> to vector<1x32xf32>
    %434 = tpu.concatenate %399, %429 in 1 : vector<16x16xf32>, vector<16x16xf32> -> vector<16x32xf32>
    %435 = arith.truncf %434 : vector<16x32xf32> to vector<16x32xbf16>
    %cst_118 = arith.constant dense<0.000000e+00> : vector<16x32xf32>
    %436 = tpu.matmul %435, %432, %cst_118 {dimension_numbers = #tpu.dot_dimension_numbers<[1], [0], [0], [1], [0, 0, 1, 1], [], []>} : vector<16x32xbf16>, vector<32x32xbf16>, vector<16x32xf32> -> vector<16x32xf32>
    %437 = vector.broadcast %433 : vector<1x32xf32> to vector<16x32xf32>
    %438 = arith.addf %436, %437 : vector<16x32xf32>
    %c0_119 = arith.constant 0 : index
    %c0_120 = arith.constant 0 : index
    %c0_121 = arith.constant 0 : index
    %439 = vector.load %arg6[%c0_119, %c0_120, %c0_121] : memref<1x5x32xf32, #tpu.memory_space<vmem>>, vector<1x5x32xf32>
    %440 = vector.shape_cast %439 : vector<1x5x32xf32> to vector<5x32xf32>
    %441 = vector.extract_strided_slice %440 {offsets = [0, 0], sizes = [4, 32], strides = [1, 1]} : vector<5x32xf32> to vector<4x32xf32>
    %442 = vector.extract_strided_slice %440 {offsets = [4, 0], sizes = [1, 4], strides = [1, 1]} : vector<5x32xf32> to vector<1x4xf32>
    %443 = vector.extract_strided_slice %0 {offsets = [15, 0], sizes = [1, 128], strides = [1, 1]} : vector<24x128xf32> to vector<1x128xf32>
    %444 = vector.extract_strided_slice %431 {offsets = [0, 0], sizes = [32, 32], strides = [1, 1]} : vector<32x128xbf16> to vector<32x32xbf16>
    %445 = arith.truncf %438 : vector<16x32xf32> to vector<16x32xbf16>
    %cst_122 = arith.constant dense<0.000000e+00> : vector<16x32xf32>
    %446 = tpu.matmul %445, %444, %cst_122 {dimension_numbers = #tpu.dot_dimension_numbers<[1], [0], [0], [1], [0, 0, 1, 1], [], []>} : vector<16x32xbf16>, vector<32x32xbf16>, vector<16x32xf32> -> vector<16x32xf32>
    %447 = vector.extract_strided_slice %443 {offsets = [0, 0], sizes = [1, 32], strides = [1, 1]} : vector<1x128xf32> to vector<1x32xf32>
    %448 = vector.broadcast %447 : vector<1x32xf32> to vector<16x32xf32>
    %449 = arith.addf %446, %448 : vector<16x32xf32>
    %450 = vector.extract_strided_slice %431 {offsets = [0, 32], sizes = [32, 64], strides = [1, 1]} : vector<32x128xbf16> to vector<32x64xbf16>
    %451 = arith.truncf %441 : vector<4x32xf32> to vector<4x32xbf16>
    %cst_123 = arith.constant dense<0.000000e+00> : vector<4x64xf32>
    %452 = tpu.matmul %451, %450, %cst_123 {dimension_numbers = #tpu.dot_dimension_numbers<[1], [0], [0], [1], [0, 0, 1, 1], [], []>} : vector<4x32xbf16>, vector<32x64xbf16>, vector<4x64xf32> -> vector<4x64xf32>
    %453 = vector.extract_strided_slice %443 {offsets = [0, 32], sizes = [1, 64], strides = [1, 1]} : vector<1x128xf32> to vector<1x64xf32>
    %454 = vector.broadcast %453 : vector<1x64xf32> to vector<4x64xf32>
    %455 = arith.addf %452, %454 : vector<4x64xf32>
    %456 = vector.extract_strided_slice %455 {offsets = [0, 0], sizes = [4, 32], strides = [1, 1]} : vector<4x64xf32> to vector<4x32xf32>
    %457 = vector.extract_strided_slice %455 {offsets = [0, 32], sizes = [4, 32], strides = [1, 1]} : vector<4x64xf32> to vector<4x32xf32>
    %458 = arith.truncf %449 : vector<16x32xf32> to vector<16x32xbf16>
    %459 = arith.truncf %456 : vector<4x32xf32> to vector<4x32xbf16>
    %cst_124 = arith.constant dense<0.000000e+00> : vector<16x4xf32>
    %460 = tpu.matmul %458, %459, %cst_124 {dimension_numbers = #tpu.dot_dimension_numbers<[1], [1], [0], [0], [0, 0, 1, 0], [], []>} : vector<16x32xbf16>, vector<4x32xbf16>, vector<16x4xf32> -> vector<16x4xf32>
    %cst_125 = arith.constant dense<0xFF800000> : vector<16xf32>
    %461 = vector.multi_reduction <maximumf>, %460, %cst_125 [1] : vector<16x4xf32> to vector<16xf32>
    %462 = vector.shape_cast %461 : vector<16xf32> to vector<16x1xf32>
    %463 = vector.broadcast %462 : vector<16x1xf32> to vector<16x4xf32>
    %464 = arith.subf %460, %463 : vector<16x4xf32>
    %465 = math.exp %464 : vector<16x4xf32>
    %cst_126 = arith.constant dense<0.000000e+00> : vector<16xf32>
    %466 = vector.multi_reduction <add>, %465, %cst_126 [1] : vector<16x4xf32> to vector<16xf32>
    %467 = vector.shape_cast %466 : vector<16xf32> to vector<16x1xf32>
    %468 = tpu.reciprocal %467 {approx = true} : vector<16x1xf32> -> vector<16x1xf32>
    %469 = vector.broadcast %468 : vector<16x1xf32> to vector<16x4xf32>
    %470 = arith.mulf %465, %469 : vector<16x4xf32>
    %471 = vector.broadcast %442 : vector<1x4xf32> to vector<16x4xf32>
    %472 = arith.mulf %470, %471 : vector<16x4xf32>
    %cst_127 = arith.constant dense<0.000000e+00> : vector<16xf32>
    %473 = vector.multi_reduction <add>, %472, %cst_127 [1] : vector<16x4xf32> to vector<16xf32>
    %474 = vector.shape_cast %473 : vector<16xf32> to vector<16x1xf32>
    %cst_128 = arith.constant 9.99999997E-7 : f32
    %475 = vector.broadcast %cst_128 : f32 to vector<16x1xf32>
    %476 = arith.addf %474, %475 : vector<16x1xf32>
    %477 = tpu.reciprocal %476 {approx = true} : vector<16x1xf32> -> vector<16x1xf32>
    %478 = vector.broadcast %477 : vector<16x1xf32> to vector<16x4xf32>
    %479 = arith.mulf %472, %478 : vector<16x4xf32>
    %480 = arith.truncf %479 : vector<16x4xf32> to vector<16x4xbf16>
    %481 = arith.truncf %457 : vector<4x32xf32> to vector<4x32xbf16>
    %cst_129 = arith.constant dense<0.000000e+00> : vector<16x32xf32>
    %482 = tpu.matmul %480, %481, %cst_129 {dimension_numbers = #tpu.dot_dimension_numbers<[1], [0], [0], [1], [0, 0, 1, 1], [], []>} : vector<16x4xbf16>, vector<4x32xbf16>, vector<16x32xf32> -> vector<16x32xf32>
    %483 = arith.addf %438, %482 : vector<16x32xf32>
    %484 = vector.extract_strided_slice %0 {offsets = [16, 0], sizes = [1, 1], strides = [1, 1]} : vector<24x128xf32> to vector<1x1xf32>
    %485 = vector.extract_strided_slice %363 {offsets = [0, 96], sizes = [32, 16], strides = [1, 1]} : vector<32x128xbf16> to vector<32x16xbf16>
    %486 = arith.truncf %483 : vector<16x32xf32> to vector<16x32xbf16>
    %cst_130 = arith.constant dense<0.000000e+00> : vector<16x16xf32>
    %487 = tpu.matmul %486, %485, %cst_130 {dimension_numbers = #tpu.dot_dimension_numbers<[1], [0], [0], [1], [0, 0, 1, 1], [], []>} : vector<16x32xbf16>, vector<32x16xbf16>, vector<16x16xf32> -> vector<16x16xf32>
    %488 = vector.extract_strided_slice %487 {offsets = [0, 0], sizes = [16, 1], strides = [1, 1]} : vector<16x16xf32> to vector<16x1xf32>
    %489 = vector.broadcast %484 : vector<1x1xf32> to vector<16x1xf32>
    %490 = arith.addf %488, %489 : vector<16x1xf32>
    %491 = vector.broadcast %490 : vector<16x1xf32> to vector<16x32xf32>
    %492 = arith.mulf %491, %438 : vector<16x32xf32>
    %cst_131 = arith.constant dense<0.000000e+00> : vector<32xf32>
    %493 = vector.multi_reduction <add>, %492, %cst_131 [0] : vector<16x32xf32> to vector<32xf32>
    %494 = vector.shape_cast %493 : vector<32xf32> to vector<1x32xf32>
    %495 = arith.mulf %494, %494 : vector<1x32xf32>
    %cst_132 = arith.constant dense<0.000000e+00> : vector<1xf32>
    %496 = vector.multi_reduction <add>, %495, %cst_132 [1] : vector<1x32xf32> to vector<1xf32>
    %497 = vector.shape_cast %496 : vector<1xf32> to vector<1x1xf32>
    %cst_133 = arith.constant 9.99999996E-13 : f32
    %498 = vector.broadcast %cst_133 : f32 to vector<1x1xf32>
    %499 = arith.addf %497, %498 : vector<1x1xf32>
    %500 = math.rsqrt %499 : vector<1x1xf32>
    %501 = vector.broadcast %500 : vector<1x1xf32> to vector<1x32xf32>
    %502 = arith.mulf %494, %501 : vector<1x32xf32>
    %503 = vector.extract_strided_slice %0 {offsets = [19, 0], sizes = [4, 32], strides = [1, 1]} : vector<24x128xf32> to vector<4x32xf32>
    %504 = vector.broadcast %502 : vector<1x32xf32> to vector<4x32xf32>
    %505 = arith.addf %503, %504 : vector<4x32xf32>
    %c6 = arith.constant 6 : index
    %c0_134 = arith.constant 0 : index
    %c0_135 = arith.constant 0 : index
    %506 = vector.load %arg3[%c6, %c0_134, %c0_135] : memref<9x32x128xbf16, #tpu.memory_space<vmem>>, vector<1x32x128xbf16>
    %507 = vector.shape_cast %506 : vector<1x32x128xbf16> to vector<32x128xbf16>
    %508 = arith.truncf %505 : vector<4x32xf32> to vector<4x32xbf16>
    %cst_136 = arith.constant dense<0.000000e+00> : vector<4x128xf32>
    %509 = tpu.matmul %508, %507, %cst_136 {dimension_numbers = #tpu.dot_dimension_numbers<[1], [0], [0], [1], [0, 0, 1, 1], [], []>} : vector<4x32xbf16>, vector<32x128xbf16>, vector<4x128xf32> -> vector<4x128xf32>
    %510 = vector.extract_strided_slice %0 {offsets = [17, 0], sizes = [1, 128], strides = [1, 1]} : vector<24x128xf32> to vector<1x128xf32>
    %511 = vector.broadcast %510 : vector<1x128xf32> to vector<4x128xf32>
    %512 = arith.addf %509, %511 : vector<4x128xf32>
    %cst_137 = arith.constant 1.702000e+00 : f32
    %513 = vector.broadcast %cst_137 : f32 to vector<4x128xf32>
    %514 = arith.mulf %513, %512 : vector<4x128xf32>
    %515 = arith.negf %514 : vector<4x128xf32>
    %516 = math.exp %515 : vector<4x128xf32>
    %cst_138 = arith.constant 1.000000e+00 : f32
    %517 = vector.broadcast %cst_138 : f32 to vector<4x128xf32>
    %518 = arith.addf %517, %516 : vector<4x128xf32>
    %519 = arith.divf %517, %518 : vector<4x128xf32>
    %520 = arith.mulf %512, %519 : vector<4x128xf32>
    %c2_139 = arith.constant 2 : index
    %c0_140 = arith.constant 0 : index
    %c0_141 = arith.constant 0 : index
    %521 = vector.load %arg4[%c2_139, %c0_140, %c0_141] : memref<3x128x32xbf16, #tpu.memory_space<vmem>>, vector<1x128x32xbf16>
    %522 = vector.shape_cast %521 : vector<1x128x32xbf16> to vector<128x32xbf16>
    %523 = arith.truncf %520 : vector<4x128xf32> to vector<4x128xbf16>
    %cst_142 = arith.constant dense<0.000000e+00> : vector<4x32xf32>
    %524 = tpu.matmul %523, %522, %cst_142 {dimension_numbers = #tpu.dot_dimension_numbers<[1], [0], [0], [1], [0, 0, 1, 1], [], []>} : vector<4x128xbf16>, vector<128x32xbf16>, vector<4x32xf32> -> vector<4x32xf32>
    %525 = arith.addf %505, %524 : vector<4x32xf32>
    %526 = vector.extract_strided_slice %0 {offsets = [18, 0], sizes = [1, 32], strides = [1, 1]} : vector<24x128xf32> to vector<1x32xf32>
    %527 = vector.broadcast %526 : vector<1x32xf32> to vector<4x32xf32>
    %528 = arith.addf %525, %527 : vector<4x32xf32>
    %529 = arith.mulf %438, %438 : vector<16x32xf32>
    %cst_143 = arith.constant dense<0.000000e+00> : vector<16xf32>
    %530 = vector.multi_reduction <add>, %529, %cst_143 [1] : vector<16x32xf32> to vector<16xf32>
    %531 = vector.shape_cast %530 : vector<16xf32> to vector<16x1xf32>
    %cst_144 = arith.constant 9.99999996E-13 : f32
    %532 = vector.broadcast %cst_144 : f32 to vector<16x1xf32>
    %533 = arith.addf %531, %532 : vector<16x1xf32>
    %534 = math.rsqrt %533 : vector<16x1xf32>
    %535 = vector.broadcast %534 : vector<16x1xf32> to vector<16x32xf32>
    %536 = arith.mulf %438, %535 : vector<16x32xf32>
    %537 = arith.mulf %528, %528 : vector<4x32xf32>
    %cst_145 = arith.constant dense<0.000000e+00> : vector<4xf32>
    %538 = vector.multi_reduction <add>, %537, %cst_145 [1] : vector<4x32xf32> to vector<4xf32>
    %539 = vector.shape_cast %538 : vector<4xf32> to vector<4x1xf32>
    %cst_146 = arith.constant 9.99999996E-13 : f32
    %540 = vector.broadcast %cst_146 : f32 to vector<4x1xf32>
    %541 = arith.addf %539, %540 : vector<4x1xf32>
    %542 = math.rsqrt %541 : vector<4x1xf32>
    %543 = vector.broadcast %542 : vector<4x1xf32> to vector<4x32xf32>
    %544 = arith.mulf %528, %543 : vector<4x32xf32>
    %545 = arith.truncf %536 : vector<16x32xf32> to vector<16x32xbf16>
    %546 = arith.truncf %544 : vector<4x32xf32> to vector<4x32xbf16>
    %cst_147 = arith.constant dense<0.000000e+00> : vector<16x4xf32>
    %547 = tpu.matmul %545, %546, %cst_147 {dimension_numbers = #tpu.dot_dimension_numbers<[1], [1], [0], [0], [0, 0, 1, 0], [], []>} : vector<16x32xbf16>, vector<4x32xbf16>, vector<16x4xf32> -> vector<16x4xf32>
    %cst_148 = arith.constant 14.2857141 : f32
    %548 = vector.broadcast %cst_148 : f32 to vector<16x4xf32>
    %549 = arith.mulf %547, %548 : vector<16x4xf32>
    %cst_149 = arith.constant 0.000000e+00 : f32
    %550 = vector.broadcast %cst_149 : f32 to vector<16x123xf32>
    %551 = tpu.concatenate %549, %490, %550 in 1 : vector<16x4xf32>, vector<16x1xf32>, vector<16x123xf32> -> vector<16x128xf32>
    %c0_150 = arith.constant 0 : index
    %c0_151 = arith.constant 0 : index
    %c0_152 = arith.constant 0 : index
    %552 = vector.load %arg7[%c0_150, %c0_151, %c0_152] : memref<1x16x128xf32, #tpu.memory_space<vmem>>, vector<1x16x128xf32>
    %553 = vector.shape_cast %552 : vector<1x16x128xf32> to vector<16x128xf32>
    %554 = vector.shape_cast %551 : vector<16x128xf32> to vector<1x16x128xf32>
    tpu.vector_store %arg7[%c0_150, %c0_151, %c0_152], %554 {strides = array<i32>} : memref<1x16x128xf32, #tpu.memory_space<vmem>>, vector<1x16x128xf32>,
    return
  }
  func.func @transform_0(%arg0: i32) -> (i32, i32, i32) {
    %c0_i32 = arith.constant 0 : i32
    %c0_i32_0 = arith.constant 0 : i32
    %c0_i32_1 = arith.constant 0 : i32
    return %arg0, %c0_i32, %c0_i32_0 : i32, i32, i32
  }
  func.func @transform_1(%arg0: i32) -> (i32, i32, i32) {
    %c0_i32 = arith.constant 0 : i32
    %c0_i32_0 = arith.constant 0 : i32
    %c0_i32_1 = arith.constant 0 : i32
    %c0_i32_2 = arith.constant 0 : i32
    return %c0_i32, %c0_i32_0, %c0_i32_1 : i32, i32, i32
  }
  func.func @transform_2(%arg0: i32) -> (i32, i32, i32) {
    %c0_i32 = arith.constant 0 : i32
    %c0_i32_0 = arith.constant 0 : i32
    %c0_i32_1 = arith.constant 0 : i32
    %c0_i32_2 = arith.constant 0 : i32
    return %c0_i32, %c0_i32_0, %c0_i32_1 : i32, i32, i32
  }
  func.func @transform_3(%arg0: i32) -> (i32, i32, i32) {
    %c0_i32 = arith.constant 0 : i32
    %c0_i32_0 = arith.constant 0 : i32
    %c0_i32_1 = arith.constant 0 : i32
    %c0_i32_2 = arith.constant 0 : i32
    return %c0_i32, %c0_i32_0, %c0_i32_1 : i32, i32, i32
  }
  func.func @transform_4(%arg0: i32) -> (i32, i32) {
    %c0_i32 = arith.constant 0 : i32
    %c0_i32_0 = arith.constant 0 : i32
    %c0_i32_1 = arith.constant 0 : i32
    return %c0_i32, %c0_i32_0 : i32, i32
  }
  func.func @transform_5(%arg0: i32) -> (i32, i32, i32) {
    %c0_i32 = arith.constant 0 : i32
    %c0_i32_0 = arith.constant 0 : i32
    %c0_i32_1 = arith.constant 0 : i32
    return %arg0, %c0_i32, %c0_i32_0 : i32, i32, i32
  }
  func.func @transform_6(%arg0: i32) -> (i32, i32, i32) {
    %c0_i32 = arith.constant 0 : i32
    %c0_i32_0 = arith.constant 0 : i32
    %c0_i32_1 = arith.constant 0 : i32
    return %arg0, %c0_i32, %c0_i32_0 : i32, i32, i32
  }
}

</mosaic_0001>

<llo_original>
// kernel: clipvad_forward.1
$region0: #{clipvad_forward.1}
  #allocation0 [shape = 'u32[]', space=smem, size = 0x4, offset = 0x4, fixed_abs, tag = 'smem constant byte address 0x4 - core index']
  #allocation1 [shape = 'u32[72,128]{1,0:T(1,128)}', space=vmem, size = 0x9000, scoped, tag = 'internal scratch']
  %s0 = inlined_call_operand.vmem [shape: f32[2,16,32], index: 0, kind: input, shape index: {}]
  %s1 = inlined_call_operand.vmem [shape: f32[3,16,32], index: 1, kind: input, shape index: {}]
  %s2 = inlined_call_operand.vmem [shape: bf16[9,32,128], index: 2, kind: input, shape index: {}]
  %s3 = inlined_call_operand.vmem [shape: bf16[3,128,32], index: 3, kind: input, shape index: {}]
  %s4 = inlined_call_operand.vmem [shape: f32[24,128], index: 4, kind: input, shape index: {}]
  %s5 = inlined_call_operand.vmem [shape: f32[2,5,32], index: 5, kind: input, shape index: {}]
  %s6 = inlined_call_operand.vmem [shape: f32[2,16,128], index: 6, kind: output, shape index: {}]
  %s7 = sld [smem:[#allocation0]]
  $region57: #{clipvad_forward.1} parent=0
    _
  %s9 = ssub.s32 1, %s7
  %s10 = scalar_select 0, %s9, %s7
  loop: start=0, step=1, limit=4
  $region2: #{clipvad_forward.1} parent=0 // loop_pre_header
    _
  $region3: #{clipvad_forward.1} parent=0 // loop_header
    %s12 = sphi 0, %s16
    %p13 = scmp.ge.s32.totalorder %s12, 4
    %s22 = sphi 0, %s24
    %s25 = sphi 0, %s22
    %s26 = sphi 0, %s25
    %s42 = sphi 0, %s26
    %s46 = sphi 0, %s46
    %s48 = sphi 0, %s46
    %s49 = sphi 0, %s48
    %s63 = sphi 0, %s49
    %s67 = sphi 0, %s67
    %s69 = sphi 0, %s67
    %s70 = sphi 0, %s69
    %s84 = sphi 0, %s70
    %s88 = sphi 0, %s88
    %s90 = sphi 0, %s88
    %s91 = sphi 0, %s90
    %s105 = sphi 0, %s91
    %s109 = sphi 0, %s109
    %s111 = sphi 0, %s109
    %s112 = sphi 0, %s111
    %s126 = sphi 0, %s112
    %s132 = sphi 0, %s134
    %s135 = sphi 0, %s132
    %s136 = sphi 0, %s135
    %s152 = sphi 0, %s136
    %s158 = sphi 0, %s160
    %s161 = sphi 0, %s158
    %s162 = sphi 0, %s161
    %s178 = sphi 0, %s162
  $region4: #{clipvad_forward.1} parent=0 // loop_header_branch
    %15 = sbr.rel (%p13) target = $region8
  $region5: #{clipvad_forward.1} parent=0 // loop_body
    %s17 = ssub.s32 %s12, 1
    %s18 = ssub.s32 %s12, 2
    %s19 = sadd.s32 %s12, 1
    %s20 = ssub.s32 %s12, %s19
    %p21 = scmp.eq.s32.totalorder %s20, 0
    %s23 = sadd.s32 %s22, 1
    %s24 = scalar_select %p21, %s22, %s23
    %p27 = pneg %p21
    %p28 = scmp.eq.s32.totalorder %s12, 1
    %p29 = por %p27, %p28
    %p30 = scmp.ne.s32.totalorder %s22, %s25
    %p31 = scmp.eq.s32.totalorder %s12, 0
    %p32 = por %p30, %p31
    %p33 = scmp.ne.s32.totalorder %s22, %s25
    %p34 = scmp.eq.s32.totalorder %s17, 1
    %p35 = por %p33, %p34
    %p36 = scmp.ne.s32.totalorder %s25, %s26
    %p37 = scmp.eq.s32.totalorder %s17, 0
    %p38 = por %p36, %p37
    %p39 = scmp.ne.s32.totalorder %s25, %s26
    %p40 = scmp.eq.s32.totalorder %s18, 1
    %p41 = por %p39, %p40
    %p43 = scmp.ne.s32.totalorder %s26, %s42
    %p44 = scmp.eq.s32.totalorder %s18, 0
    %p45 = por %p43, %p44
    %s47 = sadd.s32 %s46, 1
    %p50 = scmp.eq.s32.totalorder %s12, 1
    %p51 = scmp.ne.s32.totalorder %s46, %s48
    %p52 = scmp.eq.s32.totalorder %s12, 0
    %p53 = por %p51, %p52
    %p54 = scmp.ne.s32.totalorder %s46, %s48
    %p55 = scmp.eq.s32.totalorder %s17, 1
    %p56 = por %p54, %p55
    %p57 = scmp.ne.s32.totalorder %s48, %s49
    %p58 = scmp.eq.s32.totalorder %s17, 0
    %p59 = por %p57, %p58
    %p60 = scmp.ne.s32.totalorder %s48, %s49
    %p61 = scmp.eq.s32.totalorder %s18, 1
    %p62 = por %p60, %p61
    %p64 = scmp.ne.s32.totalorder %s49, %s63
    %p65 = scmp.eq.s32.totalorder %s18, 0
    %p66 = por %p64, %p65
    %s68 = sadd.s32 %s67, 1
    %p71 = scmp.eq.s32.totalorder %s12, 1
    %p72 = scmp.ne.s32.totalorder %s67, %s69
    %p73 = scmp.eq.s32.totalorder %s12, 0
    %p74 = por %p72, %p73
    %p75 = scmp.ne.s32.totalorder %s67, %s69
    %p76 = scmp.eq.s32.totalorder %s17, 1
    %p77 = por %p75, %p76
    %p78 = scmp.ne.s32.totalorder %s69, %s70
    %p79 = scmp.eq.s32.totalorder %s17, 0
    %p80 = por %p78, %p79
    %p81 = scmp.ne.s32.totalorder %s69, %s70
    %p82 = scmp.eq.s32.totalorder %s18, 1
    %p83 = por %p81, %p82
    %p85 = scmp.ne.s32.totalorder %s70, %s84
    %p86 = scmp.eq.s32.totalorder %s18, 0
    %p87 = por %p85, %p86
    %s89 = sadd.s32 %s88, 1
    %p92 = scmp.eq.s32.totalorder %s12, 1
    %p93 = scmp.ne.s32.totalorder %s88, %s90
    %p94 = scmp.eq.s32.totalorder %s12, 0
    %p95 = por %p93, %p94
    %p96 = scmp.ne.s32.totalorder %s88, %s90
    %p97 = scmp.eq.s32.totalorder %s17, 1
    %p98 = por %p96, %p97
    %p99 = scmp.ne.s32.totalorder %s90, %s91
    %p100 = scmp.eq.s32.totalorder %s17, 0
    %p101 = por %p99, %p100
    %p102 = scmp.ne.s32.totalorder %s90, %s91
    %p103 = scmp.eq.s32.totalorder %s18, 1
    %p104 = por %p102, %p103
    %p106 = scmp.ne.s32.totalorder %s91, %s105
    %p107 = scmp.eq.s32.totalorder %s18, 0
    %p108 = por %p106, %p107
    %s110 = sadd.s32 %s109, 1
    %p113 = scmp.eq.s32.totalorder %s12, 1
    %p114 = scmp.ne.s32.totalorder %s109, %s111
    %p115 = scmp.eq.s32.totalorder %s12, 0
    %p116 = por %p114, %p115
    %p117 = scmp.ne.s32.totalorder %s109, %s111
    %p118 = scmp.eq.s32.totalorder %s17, 1
    %p119 = por %p117, %p118
    %p120 = scmp.ne.s32.totalorder %s111, %s112
    %p121 = scmp.eq.s32.totalorder %s17, 0
    %p122 = por %p120, %p121
    %p123 = scmp.ne.s32.totalorder %s111, %s112
    %p124 = scmp.eq.s32.totalorder %s18, 1
    %p125 = por %p123, %p124
    %p127 = scmp.ne.s32.totalorder %s112, %s126
    %p128 = scmp.eq.s32.totalorder %s18, 0
    %p129 = por %p127, %p128
    %s130 = ssub.s32 %s12, %s19
    %p131 = scmp.eq.s32.totalorder %s130, 0
    %s133 = sadd.s32 %s132, 1
    %s134 = scalar_select %p131, %s132, %s133
    %p137 = pneg %p131
    %p138 = scmp.eq.s32.totalorder %s12, 1
    %p139 = por %p137, %p138
    %p140 = scmp.ne.s32.totalorder %s132, %s135
    %p141 = scmp.eq.s32.totalorder %s12, 0
    %p142 = por %p140, %p141
    %p143 = scmp.ne.s32.totalorder %s132, %s135
    %p144 = scmp.eq.s32.totalorder %s17, 1
    %p145 = por %p143, %p144
    %p146 = scmp.ne.s32.totalorder %s135, %s136
    %p147 = scmp.eq.s32.totalorder %s17, 0
    %p148 = por %p146, %p147
    %p149 = scmp.ne.s32.totalorder %s135, %s136
    %p150 = scmp.eq.s32.totalorder %s18, 1
    %p151 = por %p149, %p150
    %p153 = scmp.ne.s32.totalorder %s136, %s152
    %p154 = scmp.eq.s32.totalorder %s18, 0
    %p155 = por %p153, %p154
    %s156 = ssub.s32 %s12, %s19
    %p157 = scmp.eq.s32.totalorder %s156, 0
    %s159 = sadd.s32 %s158, 1
    %s160 = scalar_select %p157, %s158, %s159
    %p163 = pneg %p157
    %p164 = scmp.eq.s32.totalorder %s12, 1
    %p165 = por %p163, %p164
    %p166 = scmp.ne.s32.totalorder %s158, %s161
    %p167 = scmp.eq.s32.totalorder %s12, 0
    %p168 = por %p166, %p167
    %p169 = scmp.ne.s32.totalorder %s158, %s161
    %p170 = scmp.eq.s32.totalorder %s17, 1
    %p171 = por %p169, %p170
    %p172 = scmp.ne.s32.totalorder %s161, %s162
    %p173 = scmp.eq.s32.totalorder %s17, 0
    %p174 = por %p172, %p173
    %p175 = scmp.ne.s32.totalorder %s161, %s162
    %p176 = scmp.eq.s32.totalorder %s18, 1
    %p177 = por %p175, %p176
    %p179 = scmp.ne.s32.totalorder %s162, %s178
    %p180 = scmp.eq.s32.totalorder %s18, 0
    %p181 = por %p179, %p180
    %p182 = scmp.le.s32.totalorder 1, %s12
    %p183 = scmp.lt.s32.totalorder %s12, 3
    %p184 = pnand %p182, %p183
    %p185 = pneg %p184
    // Predicated region
    $region9: #{clipvad_forward.1} parent=5 // pred_check
      _
    $region10: #{clipvad_forward.1} parent=5 // pred_check_branch
      %187 = sbr.rel (%p184) target = $region12
    $region11: #{clipvad_forward.1} parent=5 // pred_region
      %s188 = ssub.s32 %s12, 1
      // Predicated region
      $region13: #{clipvad_forward.1} parent=11 // pred_check
        %p189 = pneg %p59
      $region14: #{clipvad_forward.1} parent=11 // pred_check_branch
        %191 = sbr.rel (%p189) target = $region16
      $region15: #{clipvad_forward.1} parent=11 // pred_region
        _
      $region16: #{clipvad_forward.1} parent=11 // pred_fallthru
        _
      // Predicated region
      $region17: #{clipvad_forward.1} parent=11 // pred_check
        %p192 = pneg %p80
      $region18: #{clipvad_forward.1} parent=11 // pred_check_branch
        %194 = sbr.rel (%p192) target = $region20
      $region19: #{clipvad_forward.1} parent=11 // pred_region
        _
      $region20: #{clipvad_forward.1} parent=11 // pred_fallthru
        _
      // Predicated region
      $region21: #{clipvad_forward.1} parent=11 // pred_check
        %p195 = pneg %p101
      $region22: #{clipvad_forward.1} parent=11 // pred_check_branch
        %197 = sbr.rel (%p195) target = $region24
      $region23: #{clipvad_forward.1} parent=11 // pred_region
        _
      $region24: #{clipvad_forward.1} parent=11 // pred_fallthru
        _
      // Predicated region
      $region25: #{clipvad_forward.1} parent=11 // pred_check
        %p198 = pneg %p122
      $region26: #{clipvad_forward.1} parent=11 // pred_check_branch
        %200 = sbr.rel (%p198) target = $region28
      $region27: #{clipvad_forward.1} parent=11 // pred_region
        _
      $region28: #{clipvad_forward.1} parent=11 // pred_fallthru
        _
    $region12: #{clipvad_forward.1} parent=5 // pred_fallthru
      _
    %p201 = scmp.lt.s32.totalorder %s12, 2
    // Predicated region
    $region29: #{clipvad_forward.1} parent=5 // pred_check
      %p202 = pneg %p201
    $region30: #{clipvad_forward.1} parent=5 // pred_check_branch
      %204 = sbr.rel (%p202) target = $region32
    $region31: #{clipvad_forward.1} parent=5 // pred_region
      // Predicated region
      $region33: #{clipvad_forward.1} parent=31 // pred_check
        %p205 = pneg %p32
      $region34: #{clipvad_forward.1} parent=31 // pred_check_branch
        %207 = sbr.rel (%p205) target = $region36
      $region35: #{clipvad_forward.1} parent=31 // pred_region
        %p208 = scmp.lt.s32.totalorder %s12, 1
        %s209 = scalar_select %p208, %s12, 1
        %s210 = smul.addr %s209, 2
        %s211 = smul.addr %s210, 8
        %s212 = scalar_lea.vmem %s0, %s211
      $region36: #{clipvad_forward.1} parent=31 // pred_fallthru
        _
      // Predicated region
      $region37: #{clipvad_forward.1} parent=31 // pred_check
        %p213 = pneg %p142
      $region38: #{clipvad_forward.1} parent=31 // pred_check_branch
        %215 = sbr.rel (%p213) target = $region40
      $region39: #{clipvad_forward.1} parent=31 // pred_region
        %p216 = scmp.lt.s32.totalorder %s12, 1
        %s217 = scalar_select %p216, %s12, 1
        %s218 = smul.addr %s217, 8
        %s219 = scalar_lea.vmem %s5, %s218
      $region40: #{clipvad_forward.1} parent=31 // pred_fallthru
        _
    $region32: #{clipvad_forward.1} parent=5 // pred_fallthru
      _
    %p220 = scmp.le.s32.totalorder 1, %s12
    %p221 = scmp.lt.s32.totalorder %s12, 3
    %p222 = pnand %p220, %p221
    %p223 = pneg %p222
    // Predicated region
    $region41: #{clipvad_forward.1} parent=5 // pred_check
      _
    $region42: #{clipvad_forward.1} parent=5 // pred_check_branch
      %225 = sbr.rel (%p222) target = $region44
    $region43: #{clipvad_forward.1} parent=5 // pred_region
      %s226 = ssub.s32 %s12, 1
      %p227 = scmp.lt.s32.totalorder %s17, 1
      %s228 = scalar_select %p227, %s17, 1
      %s229 = smul.addr %s228, 2
      %s230 = smul.addr %s229, 8
      %s231 = scalar_lea.vmem %s0, %s230
      %p232 = pneg %p38
      %p233 = pneg %p35
      %p234 = pneg %p59
      %p235 = pneg %p56
      %p236 = pneg %p80
      %p237 = pneg %p77
      %p238 = pneg %p101
      %p239 = pneg %p98
      %p240 = pneg %p122
      %p241 = pneg %p119
      %p242 = scmp.lt.s32.totalorder %s17, 1
      %s243 = scalar_select %p242, %s17, 1
      %s244 = smul.addr %s243, 8
      %s245 = scalar_lea.vmem %s5, %s244
      %p246 = pneg %p148
      %p247 = pneg %p145
      %p248 = pneg %p174
      %p249 = pneg %p171
      %p250 = scmp.lt.s32.totalorder %s17, 1
      %s251 = scalar_select %p250, %s17, 1
      %s252 = smul.addr %s251, 2
      %s253 = smul.addr %s252, 8
      %s254 = scalar_lea.vmem %s6, %s253
      %p255 = scmp.lt.s32.totalorder %s17, 1
      %s256 = scalar_select %p255, %s17, 1
      %s257 = smul.addr %s256, 2
      %s258 = smul.addr %s257, 8
      %s259 = scalar_lea.vmem %s0, %s258
      %p260 = scmp.lt.s32.totalorder %s17, 1
      %s261 = scalar_select %p260, %s17, 1
      %s262 = smul.addr %s261, 8
      %s263 = scalar_lea.vmem %s5, %s262
      %p264 = scmp.lt.s32.totalorder %s17, 1
      %s265 = scalar_select %p264, %s17, 1
      %s266 = smul.addr %s265, 2
      %s267 = smul.addr %s266, 8
      %s268 = scalar_lea.vmem %s6, %s267
      %v270 = vld [vmem:[%s4] sm:$0xff]
      %v271 = vld [vmem:[%s4 + $0x8] sm:$0xff]
      %v272 = vld [vmem:[%s4 + $0x10] sm:$0xff]
      %v273 = vld [vmem:[%s1] sm:$0xff]
      %v274 = vld [vmem:[%s1 + $0x8] sm:$0xff]
      %v275 = vld [vmem:[%s1 + $0x10] sm:$0xff]
      %v276 = vld [vmem:[%s1 + $0x18] sm:$0xff]
      %v277 = vld [vmem:[%s1 + $0x20] sm:$0xff]
      %v278 = vld [vmem:[%s1 + $0x28] sm:$0xff]
      %v279 = vld [vmem:[%s259] sm:$0xff]
      %v280 = vld [vmem:[%s259 + $0x8] sm:$0xff]
      %v281 = vadd.f32 %v279, %v273
      %v282 = vadd.f32 %v280, %v274
      %v283 = vld [vmem:[%s2] sm:$0xf]
      %v284 = vld [vmem:[%s2 + $0x4] sm:$0xf]
      %v285 = vld [vmem:[%s2 + $0x8] sm:$0xf]
      %v286 = vld [vmem:[%s2 + $0xc] sm:$0xf]
      %s287 = scalar_lea.vmem %s2, 16
      %v288 = vld [vmem:[%s287] sm:$0xf]
      %v289 = vld [vmem:[%s287 + $0x4] sm:$0xf]
      %v290 = vld [vmem:[%s287 + $0x8] sm:$0xf]
      %v291 = vld [vmem:[%s287 + $0xc] sm:$0xf]
      %vm292 = vcmask 261120
      %v293 = vsel %vm292, %v281, 0.0
      %294 = vadd.xlane.f32.xlu0 %v293
      %v295 = vpop.xlane.xlu0 %294
      %v296 = vsel %vm292, %v282, 0.0
      %297 = vadd.xlane.f32.xlu0 %v296
      %v298 = vpop.xlane.xlu0 %297
      %v299 = vrcp.pop 32.0
      %v300 = vmul.f32 32.0, %v299
      %v301 = vsub.f32 1.0, %v300
      %v302 = vmul.f32 %v299, %v301
      %v303 = vadd.f32 %v299, %v302
      %vm304 = vweird.f32 %v299
      %v305 = vsel %vm304, %v299, %v303
      %v306 = vmul.f32 %v295, %v305
      %v307 = vmul.f32 %v298, %v305
      %v308 = vmul.f32 %v281, %v281
      %v309 = vmul.f32 %v282, %v282
      %v310 = vsel %vm292, %v308, 0.0
      %311 = vadd.xlane.f32.xlu0 %v310
      %v312 = vpop.xlane.xlu0 %311
      %v313 = vsel %vm292, %v309, 0.0
      %314 = vadd.xlane.f32.xlu0 %v313
      %v315 = vpop.xlane.xlu0 %314
      %v316 = vmul.f32 %v312, %v305
      %v317 = vmul.f32 %v315, %v305
      %v318 = vsub.f32 %v281, %v306
      %v319 = vsub.f32 %v282, %v307
      %v320 = vmul.f32 %v306, %v306
      %v321 = vmul.f32 %v307, %v307
      %v322 = vsub.f32 %v316, %v320
      %v323 = vsub.f32 %v317, %v321
      %v324 = vadd.f32 %v322, 1e-05
      %v325 = vadd.f32 %v323, 1e-05
      %v326 = vrsqrt.pop %v324
      %v327 = vmul.f32 %v326, %v324
      %v328 = vmul.f32 %v327, %v326
      %v329 = vmul.f32 0.5, %v328
      %v330 = vsub.f32 1.5, %v329
      %v331 = vmul.f32 %v326, %v330
      %vm332 = vweird.f32 %v324
      %vm333 = vweird.f32 %v326
      %vm334 = vmor %vm332, %vm333
      %v335 = vsel %vm334, %v326, %v331
      %v336 = vrsqrt.pop %v325
      %v337 = vmul.f32 %v336, %v325
      %v338 = vmul.f32 %v337, %v336
      %v339 = vmul.f32 0.5, %v338
      %v340 = vsub.f32 1.5, %v339
      %v341 = vmul.f32 %v336, %v340
      %vm342 = vweird.f32 %v325
      %vm343 = vweird.f32 %v336
      %vm344 = vmor %vm342, %vm343
      %v345 = vsel %vm344, %v336, %v341
      %v346 = vmul.f32 %v318, %v335
      %v347 = vmul.f32 %v319, %v345
      %v348 = vperm.slane %v270, 0
      %v349 = vmul.f32 %v346, %v348
      %v350 = vmul.f32 %v347, %v348
      %v351 = vperm.slane %v270, 1
      %v352 = vadd.f32 %v349, %v351
      %v353 = vadd.f32 %v350, %v351
      %v354 = vpack.c.bf16 %v353, %v352
      %v359 = vunpack.c.l.b16 %v283
      %v360 = vunpack.c.l.b16 %v284
      %v361 = vunpack.c.l.b16 %v285
      %v362 = vunpack.c.l.b16 %v286
      %v363 = vpack.c.b16 %v360, %v359
      %v364 = vpack.c.b16 %v362, %v361
      %v368 = vsel %vm292, %v354, 0
      %370 = vmatpush.bf16.msra.mxu0 0
      %371 = vmatpush.bf16.msra.mxu0 0
      %372 = vmatpush.bf16.msra.mxu0 0
      %373 = vmatpush.bf16.msra.mxu0 0
      %374 = vmatpush.bf16.msra.mxu0 0
      %375 = vmatpush.bf16.msra.mxu0 0
      %376 = vmatpush.bf16.msra.mxu0 %v364
      %377 = vmatpush.bf16.msra.mxu0 %v363
      %378 = vmatmul.bf16.gmra.mxu0 %v368
      %v379 = vpop.f32.mrf.mxu0
      %v380 = vadd.f32 0.0, %v379
      %v381 = vpop.f32.mrf.mxu0
      %v382 = vadd.f32 0.0, %v381
      %383 = vdwg.mxu0
      %v388 = vunpack.c.l.b16 %v288
      %v389 = vunpack.c.l.b16 %v289
      %v390 = vunpack.c.l.b16 %v290
      %v391 = vunpack.c.l.b16 %v291
      %v392 = vpack.c.b16 %v389, %v388
      %v393 = vpack.c.b16 %v391, %v390
      %396 = vmatpush.bf16.msra.mxu0 0
      %397 = vmatpush.bf16.msra.mxu0 0
      %398 = vmatpush.bf16.msra.mxu0 0
      %399 = vmatpush.bf16.msra.mxu0 0
      %400 = vmatpush.bf16.msra.mxu0 0
      %401 = vmatpush.bf16.msra.mxu0 0
      %402 = vmatpush.bf16.msra.mxu0 %v393
      %403 = vmatpush.bf16.msra.mxu0 %v392
      %404 = vmatmul.bf16.gmra.mxu0 %v368
      %v405 = vpop.f32.mrf.mxu0
      %v406 = vadd.f32 0.0, %v405
      %v407 = vpop.f32.mrf.mxu0
      %v408 = vadd.f32 0.0, %v407
      %409 = vdwg.mxu0
      %v410 = vpack.c.bf16 %v382, %v380
      %v412 = vsel %vm292, %v410, 0
      %414 = vmatpush.bf16.xpose.msra.mxu0 0
      %415 = vmatpush.bf16.xpose.msra.mxu0 0
      %416 = vmatpush.bf16.xpose.msra.mxu0 0
      %417 = vmatpush.bf16.xpose.msra.mxu0 0
      %418 = vmatpush.bf16.xpose.msra.mxu0 0
      %419 = vmatpush.bf16.xpose.msra.mxu0 0
      %420 = vmatpush.bf16.xpose.msra.mxu0 0
      %421 = vmatpush.bf16.xpose.msra.mxu0 %v368
      %422 = vmatmul.bf16.gmra.mxu0 %v412
      %v423 = vpop.f32.mrf.mxu0
      %v424 = vadd.f32 %v275, %v423
      %v425 = vpop.f32.mrf.mxu0
      %v426 = vadd.f32 %v276, %v425
      %427 = vdwg.mxu0
      %vm428 = vcmask 130048
      %v429 = vsel %vm428, %v424, -inf
      %430 = vmax.xlane.f32.xlu0 %v429
      %v431 = vpop.xlane.xlu0 %430
      %v432 = vsel %vm428, %v426, -inf
      %433 = vmax.xlane.f32.xlu0 %v432
      %v434 = vpop.xlane.xlu0 %433
      %v435 = vsub.f32 %v424, %v431
      %v436 = vsub.f32 %v426, %v434
      %v437 = vmul.f32 %v435, 1.442695
      %v438 = vpow.pop %v437
      %v439 = vmul.f32 %v436, 1.442695
      %v440 = vpow.pop %v439
      %v441 = vsel %vm428, %v438, 0.0
      %442 = vadd.xlane.f32.xlu0 %v441
      %v443 = vpop.xlane.xlu0 %442
      %v444 = vsel %vm428, %v440, 0.0
      %445 = vadd.xlane.f32.xlu0 %v444
      %v446 = vpop.xlane.xlu0 %445
      %v447 = vrcp.pop %v443
      %v448 = vrcp.pop %v446
      %v449 = vmul.f32 %v438, %v447
      %v450 = vmul.f32 %v440, %v448
      %v451 = vpack.c.bf16 %v450, %v449
      %v452 = vpack.c.bf16 %v408, %v406
      %454 = vrot.lane.b32.xlu0 %v410, 96
      %v455 = vpop.permute.xlu0 %454
      %v457 = vsel %vm292, %v455, 0
      %459 = vmatpush.bf16.xpose.msra.mxu0 0
      %460 = vmatpush.bf16.xpose.msra.mxu0 0
      %461 = vmatpush.bf16.xpose.msra.mxu0 0
      %462 = vmatpush.bf16.xpose.msra.mxu0 0
      %463 = vmatpush.bf16.xpose.msra.mxu0 0
      %464 = vmatpush.bf16.xpose.msra.mxu0 0
      %465 = vmatpush.bf16.xpose.msra.mxu0 0
      %466 = vmatpush.bf16.xpose.msra.mxu0 %v368
      %467 = vmatmul.bf16.gmra.mxu0 %v457
      %v468 = vpop.f32.mrf.mxu0
      %v469 = vadd.f32 %v275, %v468
      %v470 = vpop.f32.mrf.mxu0
      %v471 = vadd.f32 %v276, %v470
      %472 = vdwg.mxu0
      %v473 = vsel %vm428, %v469, -inf
      %474 = vmax.xlane.f32.xlu0 %v473
      %v475 = vpop.xlane.xlu0 %474
      %v476 = vsel %vm428, %v471, -inf
      %477 = vmax.xlane.f32.xlu0 %v476
      %v478 = vpop.xlane.xlu0 %477
      %v479 = vsub.f32 %v469, %v475
      %v480 = vsub.f32 %v471, %v478
      %v481 = vmul.f32 %v479, 1.442695
      %v482 = vpow.pop %v481
      %v483 = vmul.f32 %v480, 1.442695
      %v484 = vpow.pop %v483
      %v485 = vsel %vm428, %v482, 0.0
      %486 = vadd.xlane.f32.xlu0 %v485
      %v487 = vpop.xlane.xlu0 %486
      %v488 = vsel %vm428, %v484, 0.0
      %489 = vadd.xlane.f32.xlu0 %v488
      %v490 = vpop.xlane.xlu0 %489
      %v491 = vrcp.pop %v487
      %v492 = vrcp.pop %v490
      %v493 = vmul.f32 %v482, %v491
      %v494 = vmul.f32 %v484, %v492
      %v495 = vpack.c.bf16 %v494, %v493
      %497 = vrot.lane.b32.xlu0 %v452, 96
      %v498 = vpop.permute.xlu0 %497
      %v501 = vsel %vm428, %v495, 0
      %503 = vmatpush.bf16.msra.mxu0 0
      %504 = vmatpush.bf16.msra.mxu0 0
      %505 = vmatpush.bf16.msra.mxu0 0
      %506 = vmatpush.bf16.msra.mxu0 0
      %507 = vmatpush.bf16.msra.mxu0 0
      %508 = vmatpush.bf16.msra.mxu0 0
      %509 = vmatpush.bf16.msra.mxu0 0
      %510 = vmatpush.bf16.msra.mxu0 %v498
      %511 = vmatmul.bf16.gmra.mxu0 %v501
      %v512 = vpop.f32.mrf.mxu0
      %v513 = vadd.f32 0.0, %v512
      %v514 = vpop.f32.mrf.mxu0
      %v515 = vadd.f32 0.0, %v514
      %516 = vdwg.mxu0
      %v518 = vsel %vm428, %v451, 0
      %520 = vmatpush.bf16.msra.mxu0 0
      %521 = vmatpush.bf16.msra.mxu0 0
      %522 = vmatpush.bf16.msra.mxu0 0
      %523 = vmatpush.bf16.msra.mxu0 0
      %524 = vmatpush.bf16.msra.mxu0 0
      %525 = vmatpush.bf16.msra.mxu0 0
      %526 = vmatpush.bf16.msra.mxu0 0
      %527 = vmatpush.bf16.msra.mxu0 %v452
      %528 = vmatmul.bf16.gmra.mxu0 %v518
      %v529 = vpop.f32.mrf.mxu0
      %v530 = vadd.f32 %v513, %v529
      %v531 = vpop.f32.mrf.mxu0
      %v532 = vadd.f32 %v515, %v531
      %533 = vdwg.mxu0
      %534 = vrot.lane.b32.xlu0 %v410, 64
      %v535 = vpop.permute.xlu0 %534
      %v537 = vsel %vm292, %v535, 0
      %539 = vmatpush.bf16.xpose.msra.mxu0 0
      %540 = vmatpush.bf16.xpose.msra.mxu0 0
      %541 = vmatpush.bf16.xpose.msra.mxu0 0
      %542 = vmatpush.bf16.xpose.msra.mxu0 0
      %543 = vmatpush.bf16.xpose.msra.mxu0 0
      %544 = vmatpush.bf16.xpose.msra.mxu0 0
      %545 = vmatpush.bf16.xpose.msra.mxu0 0
      %546 = vmatpush.bf16.xpose.msra.mxu0 %v368
      %547 = vmatmul.bf16.gmra.mxu0 %v537
      %v548 = vpop.f32.mrf.mxu0
      %v549 = vadd.f32 %v275, %v548
      %v550 = vpop.f32.mrf.mxu0
      %v551 = vadd.f32 %v276, %v550
      %552 = vdwg.mxu0
      %v553 = vsel %vm428, %v549, -inf
      %554 = vmax.xlane.f32.xlu0 %v553
      %v555 = vpop.xlane.xlu0 %554
      %v556 = vsel %vm428, %v551, -inf
      %557 = vmax.xlane.f32.xlu0 %v556
      %v558 = vpop.xlane.xlu0 %557
      %v559 = vsub.f32 %v549, %v555
      %v560 = vsub.f32 %v551, %v558
      %v561 = vmul.f32 %v559, 1.442695
      %v562 = vpow.pop %v561
      %v563 = vmul.f32 %v560, 1.442695
      %v564 = vpow.pop %v563
      %v565 = vsel %vm428, %v562, 0.0
      %566 = vadd.xlane.f32.xlu0 %v565
      %v567 = vpop.xlane.xlu0 %566
      %v568 = vsel %vm428, %v564, 0.0
      %569 = vadd.xlane.f32.xlu0 %v568
      %v570 = vpop.xlane.xlu0 %569
      %v571 = vrcp.pop %v567
      %v572 = vrcp.pop %v570
      %v573 = vmul.f32 %v562, %v571
      %v574 = vmul.f32 %v564, %v572
      %v575 = vpack.c.bf16 %v574, %v573
      %576 = vrot.lane.b32.xlu0 %v452, 64
      %v577 = vpop.permute.xlu0 %576
      %v580 = vsel %vm428, %v575, 0
      %582 = vmatpush.bf16.msra.mxu0 0
      %583 = vmatpush.bf16.msra.mxu0 0
      %584 = vmatpush.bf16.msra.mxu0 0
      %585 = vmatpush.bf16.msra.mxu0 0
      %586 = vmatpush.bf16.msra.mxu0 0
      %587 = vmatpush.bf16.msra.mxu0 0
      %588 = vmatpush.bf16.msra.mxu0 0
      %589 = vmatpush.bf16.msra.mxu0 %v577
      %590 = vmatmul.bf16.gmra.mxu0 %v580
      %v591 = vpop.f32.mrf.mxu0
      %v592 = vadd.f32 0.0, %v591
      %v593 = vpop.f32.mrf.mxu0
      %v594 = vadd.f32 0.0, %v593
      %595 = vdwg.mxu0
      %v596 = vadd.f32 %v530, %v592
      %v597 = vadd.f32 %v532, %v594
      %598 = vrot.lane.b32.xlu0 %v410, 32
      %v599 = vpop.permute.xlu0 %598
      %v601 = vsel %vm292, %v599, 0
      %603 = vmatpush.bf16.xpose.msra.mxu0 0
      %604 = vmatpush.bf16.xpose.msra.mxu0 0
      %605 = vmatpush.bf16.xpose.msra.mxu0 0
      %606 = vmatpush.bf16.xpose.msra.mxu0 0
      %607 = vmatpush.bf16.xpose.msra.mxu0 0
      %608 = vmatpush.bf16.xpose.msra.mxu0 0
      %609 = vmatpush.bf16.xpose.msra.mxu0 0
      %610 = vmatpush.bf16.xpose.msra.mxu0 %v368
      %611 = vmatmul.bf16.gmra.mxu0 %v601
      %v612 = vpop.f32.mrf.mxu0
      %v613 = vadd.f32 %v275, %v612
      %v614 = vpop.f32.mrf.mxu0
      %v615 = vadd.f32 %v276, %v614
      %616 = vdwg.mxu0
      %v617 = vsel %vm428, %v613, -inf
      %618 = vmax.xlane.f32.xlu0 %v617
      %v619 = vpop.xlane.xlu0 %618
      %v620 = vsel %vm428, %v615, -inf
      %621 = vmax.xlane.f32.xlu0 %v620
      %v622 = vpop.xlane.xlu0 %621
      %v623 = vsub.f32 %v613, %v619
      %v624 = vsub.f32 %v615, %v622
      %v625 = vmul.f32 %v623, 1.442695
      %v626 = vpow.pop %v625
      %v627 = vmul.f32 %v624, 1.442695
      %v628 = vpow.pop %v627
      %v629 = vsel %vm428, %v626, 0.0
      %630 = vadd.xlane.f32.xlu0 %v629
      %v631 = vpop.xlane.xlu0 %630
      %v632 = vsel %vm428, %v628, 0.0
      %633 = vadd.xlane.f32.xlu0 %v632
      %v634 = vpop.xlane.xlu0 %633
      %v635 = vrcp.pop %v631
      %v636 = vrcp.pop %v634
      %v637 = vmul.f32 %v626, %v635
      %v638 = vmul.f32 %v628, %v636
      %v639 = vpack.c.bf16 %v638, %v637
      %640 = vrot.lane.b32.xlu0 %v452, 32
      %v641 = vpop.permute.xlu0 %640
      %v644 = vsel %vm428, %v639, 0
      %646 = vmatpush.bf16.msra.mxu0 0
      %647 = vmatpush.bf16.msra.mxu0 0
      %648 = vmatpush.bf16.msra.mxu0 0
      %649 = vmatpush.bf16.msra.mxu0 0
      %650 = vmatpush.bf16.msra.mxu0 0
      %651 = vmatpush.bf16.msra.mxu0 0
      %652 = vmatpush.bf16.msra.mxu0 0
      %653 = vmatpush.bf16.msra.mxu0 %v641
      %654 = vmatmul.bf16.gmra.mxu0 %v644
      %v655 = vpop.f32.mrf.mxu0
      %v656 = vadd.f32 0.0, %v655
      %v657 = vpop.f32.mrf.mxu0
      %v658 = vadd.f32 0.0, %v657
      %659 = vdwg.mxu0
      %v660 = vadd.f32 %v596, %v656
      %v661 = vadd.f32 %v597, %v658
      %v662 = vadd.f32 %v281, %v660
      %v663 = vadd.f32 %v282, %v661
      %v664 = vperm.slane %v270, 4
      %v665 = vadd.f32 %v662, %v664
      %v666 = vadd.f32 %v663, %v664
      %v667 = vsel %vm292, %v665, 0.0
      %668 = vadd.xlane.f32.xlu0 %v667
      %v669 = vpop.xlane.xlu0 %668
      %v670 = vsel %vm292, %v666, 0.0
      %671 = vadd.xlane.f32.xlu0 %v670
      %v672 = vpop.xlane.xlu0 %671
      %v673 = vmul.f32 %v669, %v305
      %v674 = vmul.f32 %v672, %v305
      %v675 = vmul.f32 %v665, %v665
      %v676 = vmul.f32 %v666, %v666
      %v677 = vsel %vm292, %v675, 0.0
      %678 = vadd.xlane.f32.xlu0 %v677
      %v679 = vpop.xlane.xlu0 %678
      %v680 = vsel %vm292, %v676, 0.0
      %681 = vadd.xlane.f32.xlu0 %v680
      %v682 = vpop.xlane.xlu0 %681
      %v683 = vmul.f32 %v679, %v305
      %v684 = vmul.f32 %v682, %v305
      %v685 = vsub.f32 %v665, %v673
      %v686 = vsub.f32 %v666, %v674
      %v687 = vmul.f32 %v673, %v673
      %v688 = vmul.f32 %v674, %v674
      %v689 = vsub.f32 %v683, %v687
      %v690 = vsub.f32 %v684, %v688
      %v691 = vadd.f32 %v689, 1e-05
      %v692 = vadd.f32 %v690, 1e-05
      %v693 = vrsqrt.pop %v691
      %v694 = vmul.f32 %v693, %v691
      %v695 = vmul.f32 %v694, %v693
      %v696 = vmul.f32 0.5, %v695
      %v697 = vsub.f32 1.5, %v696
      %v698 = vmul.f32 %v693, %v697
      %vm699 = vweird.f32 %v691
      %vm700 = vweird.f32 %v693
      %vm701 = vmor %vm699, %vm700
      %v702 = vsel %vm701, %v693, %v698
      %v703 = vrsqrt.pop %v692
      %v704 = vmul.f32 %v703, %v692
      %v705 = vmul.f32 %v704, %v703
      %v706 = vmul.f32 0.5, %v705
      %v707 = vsub.f32 1.5, %v706
      %v708 = vmul.f32 %v703, %v707
      %vm709 = vweird.f32 %v692
      %vm710 = vweird.f32 %v703
      %vm711 = vmor %vm709, %vm710
      %v712 = vsel %vm711, %v703, %v708
      %v713 = vmul.f32 %v685, %v702
      %v714 = vmul.f32 %v686, %v712
      %v715 = vperm.slane %v270, 2
      %v716 = vmul.f32 %v713, %v715
      %v717 = vmul.f32 %v714, %v715
      %v718 = vperm.slane %v270, 3
      %v719 = vadd.f32 %v716, %v718
      %v720 = vadd.f32 %v717, %v718
      %s721 = scalar_lea.vmem %s2, 64
      %v722 = vld [vmem:[%s721] sm:$0xf]
      %v723 = vld [vmem:[%s721 + $0x4] sm:$0xf]
      %v724 = vld [vmem:[%s721 + $0x8] sm:$0xf]
      %v725 = vld [vmem:[%s721 + $0xc] sm:$0xf]
      %v726 = vpack.c.bf16 %v720, %v719
      %v727 = vperm.slane %v270, 5
      %v732 = vunpack.c.l.b16 %v722
      %v733 = vunpack.c.l.b16 %v723
      %v734 = vunpack.c.l.b16 %v724
      %v735 = vunpack.c.l.b16 %v725
      %v736 = vpack.c.b16 %v733, %v732
      %v737 = vpack.c.b16 %v735, %v734
      %v741 = vsel %vm292, %v726, 0
      %743 = vmatpush.bf16.msra.mxu0 0
      %744 = vmatpush.bf16.msra.mxu0 0
      %745 = vmatpush.bf16.msra.mxu0 0
      %746 = vmatpush.bf16.msra.mxu0 0
      %747 = vmatpush.bf16.msra.mxu0 0
      %748 = vmatpush.bf16.msra.mxu0 0
      %749 = vmatpush.bf16.msra.mxu0 %v737
      %750 = vmatpush.bf16.msra.mxu0 %v736
      %751 = vmatmul.bf16.gmra.mxu0 %v741
      %v752 = vpop.f32.mrf.mxu0
      %v753 = vadd.f32 %v727, %v752
      %v754 = vpop.f32.mrf.mxu0
      %v755 = vadd.f32 %v727, %v754
      %756 = vdwg.mxu0
      %v757 = vmul.f32 %v753, 1.702
      %v758 = vmul.f32 %v755, 1.702
      %v759 = vxor.u32 %v757, 2147483648
      %v760 = vxor.u32 %v758, 2147483648
      %v761 = vmul.f32 %v759, 1.442695
      %v762 = vpow.pop %v761
      %v763 = vmul.f32 %v760, 1.442695
      %v764 = vpow.pop %v763
      %v765 = vadd.f32 %v762, 1.0
      %v766 = vadd.f32 %v764, 1.0
      %v767 = vrcp.pop %v765
      %v768 = vmul.f32 %v765, %v767
      %v769 = vsub.f32 1.0, %v768
      %v770 = vmul.f32 %v767, %v769
      %v771 = vadd.f32 %v767, %v770
      %vm772 = vweird.f32 %v765
      %vm773 = vweird.f32 %v767
      %vm774 = vmor %vm772, %vm773
      %v775 = vsel %vm774, %v767, %v771
      %v776 = vand.u32 2147483647, %v765
      %vm777 = vcmp.eq.f32.partialorder %v776, 8.507059e+37
      %v778 = vand.u32 %v765, 2147483648
      %v779 = vor.u32 1.1754944e-38, %v778
      %v780 = vsel %vm777, %v779, %v775
      %v781 = vmul.f32 1.0, %v780
      %v782 = vrcp.pop %v766
      %v783 = vmul.f32 %v766, %v782
      %v784 = vsub.f32 1.0, %v783
      %v785 = vmul.f32 %v782, %v784
      %v786 = vadd.f32 %v782, %v785
      %vm787 = vweird.f32 %v766
      %vm788 = vweird.f32 %v782
      %vm789 = vmor %vm787, %vm788
      %v790 = vsel %vm789, %v782, %v786
      %v791 = vand.u32 2147483647, %v766
      %vm792 = vcmp.eq.f32.partialorder %v791, 8.507059e+37
      %v793 = vand.u32 %v766, 2147483648
      %v794 = vor.u32 1.1754944e-38, %v793
      %v795 = vsel %vm792, %v794, %v790
      %v796 = vmul.f32 1.0, %v795
      %v797 = vmul.f32 %v753, %v781
      %v798 = vmul.f32 %v755, %v796
      %v799 = vld [vmem:[%s3] sm:$0xf]
      %v800 = vld [vmem:[%s3 + $0x4] sm:$0xf]
      %v801 = vld [vmem:[%s3 + $0x8] sm:$0xf]
      %v802 = vld [vmem:[%s3 + $0xc] sm:$0xf]
      %v803 = vld [vmem:[%s3 + $0x10] sm:$0xf]
      %v804 = vld [vmem:[%s3 + $0x14] sm:$0xf]
      %v805 = vld [vmem:[%s3 + $0x18] sm:$0xf]
      %v806 = vld [vmem:[%s3 + $0x1c] sm:$0xf]
      %v807 = vld [vmem:[%s3 + $0x20] sm:$0xf]
      %v808 = vld [vmem:[%s3 + $0x24] sm:$0xf]
      %v809 = vld [vmem:[%s3 + $0x28] sm:$0xf]
      %v810 = vld [vmem:[%s3 + $0x2c] sm:$0xf]
      %v811 = vld [vmem:[%s3 + $0x30] sm:$0xf]
      %v812 = vld [vmem:[%s3 + $0x34] sm:$0xf]
      %v813 = vld [vmem:[%s3 + $0x38] sm:$0xf]
      %v814 = vld [vmem:[%s3 + $0x3c] sm:$0xf]
      %v815 = vpack.c.bf16 %v798, %v797
      %v832 = vunpack.c.l.b16 %v799
      %v833 = vunpack.c.l.b16 %v800
      %v834 = vunpack.c.l.b16 %v801
      %v835 = vunpack.c.l.b16 %v802
      %v836 = vunpack.c.l.b16 %v803
      %v837 = vunpack.c.l.b16 %v804
      %v838 = vunpack.c.l.b16 %v805
      %v839 = vunpack.c.l.b16 %v806
      %v840 = vunpack.c.l.b16 %v807
      %v841 = vunpack.c.l.b16 %v808
      %v842 = vunpack.c.l.b16 %v809
      %v843 = vunpack.c.l.b16 %v810
      %v844 = vunpack.c.l.b16 %v811
      %v845 = vunpack.c.l.b16 %v812
      %v846 = vunpack.c.l.b16 %v813
      %v847 = vunpack.c.l.b16 %v814
      %v848 = vpack.c.b16 %v833, %v832
      %v849 = vpack.c.b16 %v835, %v834
      %v850 = vpack.c.b16 %v837, %v836
      %v851 = vpack.c.b16 %v839, %v838
      %v852 = vpack.c.b16 %v841, %v840
      %v853 = vpack.c.b16 %v843, %v842
      %v854 = vpack.c.b16 %v845, %v844
      %v855 = vpack.c.b16 %v847, %v846
      %864 = vmatpush.bf16.msra.mxu0 %v855
      %865 = vmatpush.bf16.msra.mxu0 %v854
      %866 = vmatpush.bf16.msra.mxu0 %v853
      %867 = vmatpush.bf16.msra.mxu0 %v852
      %868 = vmatpush.bf16.msra.mxu0 %v851
      %869 = vmatpush.bf16.msra.mxu0 %v850
      %870 = vmatpush.bf16.msra.mxu0 %v849
      %871 = vmatpush.bf16.msra.mxu0 %v848
      %872 = vmatmul.bf16.gmra.mxu0 %v815
      %v873 = vpop.f32.mrf.mxu0
      %v874 = vadd.f32 0.0, %v873
      %v875 = vpop.f32.mrf.mxu0
      %v876 = vadd.f32 0.0, %v875
      %877 = vdwg.mxu0
      %v878 = vadd.f32 %v665, %v874
      %v879 = vadd.f32 %v666, %v876
      %v880 = vperm.slane %v270, 6
      %v881 = vadd.f32 %v878, %v880
      %v882 = vadd.f32 %v879, %v880
      %s883 = scalar_lea.vmem %s2, 32
      %v884 = vld [vmem:[%s883] sm:$0xf]
      %v885 = vld [vmem:[%s883 + $0x4] sm:$0xf]
      %v886 = vld [vmem:[%s883 + $0x8] sm:$0xf]
      %v887 = vld [vmem:[%s883 + $0xc] sm:$0xf]
      %s888 = scalar_lea.vmem %s2, 48
      %v889 = vld [vmem:[%s888] sm:$0xf]
      %v890 = vld [vmem:[%s888 + $0x4] sm:$0xf]
      %v891 = vld [vmem:[%s888 + $0x8] sm:$0xf]
      %v892 = vld [vmem:[%s888 + $0xc] sm:$0xf]
      %v893 = vsel %vm292, %v881, 0.0
      %894 = vadd.xlane.f32.xlu0 %v893
      %v895 = vpop.xlane.xlu0 %894
      %v896 = vsel %vm292, %v882, 0.0
      %897 = vadd.xlane.f32.xlu0 %v896
      %v898 = vpop.xlane.xlu0 %897
      %v899 = vmul.f32 %v895, %v305
      %v900 = vmul.f32 %v898, %v305
      %v901 = vmul.f32 %v881, %v881
      %v902 = vmul.f32 %v882, %v882
      %v903 = vsel %vm292, %v901, 0.0
      %904 = vadd.xlane.f32.xlu0 %v903
      %v905 = vpop.xlane.xlu0 %904
      %v906 = vsel %vm292, %v902, 0.0
      %907 = vadd.xlane.f32.xlu0 %v906
      %v908 = vpop.xlane.xlu0 %907
      %v909 = vmul.f32 %v905, %v305
      %v910 = vmul.f32 %v908, %v305
      %v911 = vsub.f32 %v881, %v899
      %v912 = vsub.f32 %v882, %v900
      %v913 = vmul.f32 %v899, %v899
      %v914 = vmul.f32 %v900, %v900
      %v915 = vsub.f32 %v909, %v913
      %v916 = vsub.f32 %v910, %v914
      %v917 = vadd.f32 %v915, 1e-05
      %v918 = vadd.f32 %v916, 1e-05
      %v919 = vrsqrt.pop %v917
      %v920 = vmul.f32 %v919, %v917
      %v921 = vmul.f32 %v920, %v919
      %v922 = vmul.f32 0.5, %v921
      %v923 = vsub.f32 1.5, %v922
      %v924 = vmul.f32 %v919, %v923
      %vm925 = vweird.f32 %v917
      %vm926 = vweird.f32 %v919
      %vm927 = vmor %vm925, %vm926
      %v928 = vsel %vm927, %v919, %v924
      %v929 = vrsqrt.pop %v918
      %v930 = vmul.f32 %v929, %v918
      %v931 = vmul.f32 %v930, %v929
      %v932 = vmul.f32 0.5, %v931
      %v933 = vsub.f32 1.5, %v932
      %v934 = vmul.f32 %v929, %v933
      %vm935 = vweird.f32 %v918
      %vm936 = vweird.f32 %v929
      %vm937 = vmor %vm935, %vm936
      %v938 = vsel %vm937, %v929, %v934
      %v939 = vmul.f32 %v911, %v928
      %v940 = vmul.f32 %v912, %v938
      %v941 = vperm.slane %v270, 7
      %v942 = vmul.f32 %v939, %v941
      %v943 = vmul.f32 %v940, %v941
      %v944 = vperm.slane %v271, 0
      %v945 = vadd.f32 %v942, %v944
      %v946 = vadd.f32 %v943, %v944
      %v947 = vpack.c.bf16 %v946, %v945
      %v952 = vunpack.c.l.b16 %v884
      %v953 = vunpack.c.l.b16 %v885
      %v954 = vunpack.c.l.b16 %v886
      %v955 = vunpack.c.l.b16 %v887
      %v956 = vpack.c.b16 %v953, %v952
      %v957 = vpack.c.b16 %v955, %v954
      %v961 = vsel %vm292, %v947, 0
      %963 = vmatpush.bf16.msra.mxu0 0
      %964 = vmatpush.bf16.msra.mxu0 0
      %965 = vmatpush.bf16.msra.mxu0 0
      %966 = vmatpush.bf16.msra.mxu0 0
      %967 = vmatpush.bf16.msra.mxu0 0
      %968 = vmatpush.bf16.msra.mxu0 0
      %969 = vmatpush.bf16.msra.mxu0 %v957
      %970 = vmatpush.bf16.msra.mxu0 %v956
      %971 = vmatmul.bf16.gmra.mxu0 %v961
      %v972 = vpop.f32.mrf.mxu0
      %v973 = vadd.f32 0.0, %v972
      %v974 = vpop.f32.mrf.mxu0
      %v975 = vadd.f32 0.0, %v974
      %976 = vdwg.mxu0
      %v981 = vunpack.c.l.b16 %v889
      %v982 = vunpack.c.l.b16 %v890
      %v983 = vunpack.c.l.b16 %v891
      %v984 = vunpack.c.l.b16 %v892
      %v985 = vpack.c.b16 %v982, %v981
      %v986 = vpack.c.b16 %v984, %v983
      %989 = vmatpush.bf16.msra.mxu0 0
      %990 = vmatpush.bf16.msra.mxu0 0
      %991 = vmatpush.bf16.msra.mxu0 0
      %992 = vmatpush.bf16.msra.mxu0 0
      %993 = vmatpush.bf16.msra.mxu0 0
      %994 = vmatpush.bf16.msra.mxu0 0
      %995 = vmatpush.bf16.msra.mxu0 %v986
      %996 = vmatpush.bf16.msra.mxu0 %v985
      %997 = vmatmul.bf16.gmra.mxu0 %v961
      %v998 = vpop.f32.mrf.mxu0
      %v999 = vadd.f32 0.0, %v998
      %v1000 = vpop.f32.mrf.mxu0
      %v1001 = vadd.f32 0.0, %v1000
      %1002 = vdwg.mxu0
      %v1003 = vpack.c.bf16 %v975, %v973
      %v1005 = vsel %vm292, %v1003, 0
      %1007 = vmatpush.bf16.xpose.msra.mxu0 0
      %1008 = vmatpush.bf16.xpose.msra.mxu0 0
      %1009 = vmatpush.bf16.xpose.msra.mxu0 0
      %1010 = vmatpush.bf16.xpose.msra.mxu0 0
      %1011 = vmatpush.bf16.xpose.msra.mxu0 0
      %1012 = vmatpush.bf16.xpose.msra.mxu0 0
      %1013 = vmatpush.bf16.xpose.msra.mxu0 0
      %1014 = vmatpush.bf16.xpose.msra.mxu0 %v961
      %1015 = vmatmul.bf16.gmra.mxu0 %v1005
      %v1016 = vpop.f32.mrf.mxu0
      %v1017 = vadd.f32 %v275, %v1016
      %v1018 = vpop.f32.mrf.mxu0
      %v1019 = vadd.f32 %v276, %v1018
      %1020 = vdwg.mxu0
      %v1021 = vsel %vm428, %v1017, -inf
      %1022 = vmax.xlane.f32.xlu0 %v1021
      %v1023 = vpop.xlane.xlu0 %1022
      %v1024 = vsel %vm428, %v1019, -inf
      %1025 = vmax.xlane.f32.xlu0 %v1024
      %v1026 = vpop.xlane.xlu0 %1025
      %v1027 = vsub.f32 %v1017, %v1023
      %v1028 = vsub.f32 %v1019, %v1026
      %v1029 = vmul.f32 %v1027, 1.442695
      %v1030 = vpow.pop %v1029
      %v1031 = vmul.f32 %v1028, 1.442695
      %v1032 = vpow.pop %v1031
      %v1033 = vsel %vm428, %v1030, 0.0
      %1034 = vadd.xlane.f32.xlu0 %v1033
      %v1035 = vpop.xlane.xlu0 %1034
      %v1036 = vsel %vm428, %v1032, 0.0
      %1037 = vadd.xlane.f32.xlu0 %v1036
      %v1038 = vpop.xlane.xlu0 %1037
      %v1039 = vrcp.pop %v1035
      %v1040 = vrcp.pop %v1038
      %v1041 = vmul.f32 %v1030, %v1039
      %v1042 = vmul.f32 %v1032, %v1040
      %v1043 = vpack.c.bf16 %v1042, %v1041
      %v1044 = vpack.c.bf16 %v1001, %v999
      %1046 = vrot.lane.b32.xlu0 %v1003, 96
      %v1047 = vpop.permute.xlu0 %1046
      %v1049 = vsel %vm292, %v1047, 0
      %1051 = vmatpush.bf16.xpose.msra.mxu0 0
      %1052 = vmatpush.bf16.xpose.msra.mxu0 0
      %1053 = vmatpush.bf16.xpose.msra.mxu0 0
      %1054 = vmatpush.bf16.xpose.msra.mxu0 0
      %1055 = vmatpush.bf16.xpose.msra.mxu0 0
      %1056 = vmatpush.bf16.xpose.msra.mxu0 0
      %1057 = vmatpush.bf16.xpose.msra.mxu0 0
      %1058 = vmatpush.bf16.xpose.msra.mxu0 %v961
      %1059 = vmatmul.bf16.gmra.mxu0 %v1049
      %v1060 = vpop.f32.mrf.mxu0
      %v1061 = vadd.f32 %v275, %v1060
      %v1062 = vpop.f32.mrf.mxu0
      %v1063 = vadd.f32 %v276, %v1062
      %1064 = vdwg.mxu0
      %v1065 = vsel %vm428, %v1061, -inf
      %1066 = vmax.xlane.f32.xlu0 %v1065
      %v1067 = vpop.xlane.xlu0 %1066
      %v1068 = vsel %vm428, %v1063, -inf
      %1069 = vmax.xlane.f32.xlu0 %v1068
      %v1070 = vpop.xlane.xlu0 %1069
      %v1071 = vsub.f32 %v1061, %v1067
      %v1072 = vsub.f32 %v1063, %v1070
      %v1073 = vmul.f32 %v1071, 1.442695
      %v1074 = vpow.pop %v1073
      %v1075 = vmul.f32 %v1072, 1.442695
      %v1076 = vpow.pop %v1075
      %v1077 = vsel %vm428, %v1074, 0.0
      %1078 = vadd.xlane.f32.xlu0 %v1077
      %v1079 = vpop.xlane.xlu0 %1078
      %v1080 = vsel %vm428, %v1076, 0.0
      %1081 = vadd.xlane.f32.xlu0 %v1080
      %v1082 = vpop.xlane.xlu0 %1081
      %v1083 = vrcp.pop %v1079
      %v1084 = vrcp.pop %v1082
      %v1085 = vmul.f32 %v1074, %v1083
      %v1086 = vmul.f32 %v1076, %v1084
      %v1087 = vpack.c.bf16 %v1086, %v1085
      %1089 = vrot.lane.b32.xlu0 %v1044, 96
      %v1090 = vpop.permute.xlu0 %1089
      %v1093 = vsel %vm428, %v1087, 0
      %1095 = vmatpush.bf16.msra.mxu0 0
      %1096 = vmatpush.bf16.msra.mxu0 0
      %1097 = vmatpush.bf16.msra.mxu0 0
      %1098 = vmatpush.bf16.msra.mxu0 0
      %1099 = vmatpush.bf16.msra.mxu0 0
      %1100 = vmatpush.bf16.msra.mxu0 0
      %1101 = vmatpush.bf16.msra.mxu0 0
      %1102 = vmatpush.bf16.msra.mxu0 %v1090
      %1103 = vmatmul.bf16.gmra.mxu0 %v1093
      %v1104 = vpop.f32.mrf.mxu0
      %v1105 = vadd.f32 0.0, %v1104
      %v1106 = vpop.f32.mrf.mxu0
      %v1107 = vadd.f32 0.0, %v1106
      %1108 = vdwg.mxu0
      %v1110 = vsel %vm428, %v1043, 0
      %1112 = vmatpush.bf16.msra.mxu0 0
      %1113 = vmatpush.bf16.msra.mxu0 0
      %1114 = vmatpush.bf16.msra.mxu0 0
      %1115 = vmatpush.bf16.msra.mxu0 0
      %1116 = vmatpush.bf16.msra.mxu0 0
      %1117 = vmatpush.bf16.msra.mxu0 0
      %1118 = vmatpush.bf16.msra.mxu0 0
      %1119 = vmatpush.bf16.msra.mxu0 %v1044
      %1120 = vmatmul.bf16.gmra.mxu0 %v1110
      %v1121 = vpop.f32.mrf.mxu0
      %v1122 = vadd.f32 %v1105, %v1121
      %v1123 = vpop.f32.mrf.mxu0
      %v1124 = vadd.f32 %v1107, %v1123
      %1125 = vdwg.mxu0
      %1126 = vrot.lane.b32.xlu0 %v1003, 64
      %v1127 = vpop.permute.xlu0 %1126
      %v1129 = vsel %vm292, %v1127, 0
      %1131 = vmatpush.bf16.xpose.msra.mxu0 0
      %1132 = vmatpush.bf16.xpose.msra.mxu0 0
      %1133 = vmatpush.bf16.xpose.msra.mxu0 0
      %1134 = vmatpush.bf16.xpose.msra.mxu0 0
      %1135 = vmatpush.bf16.xpose.msra.mxu0 0
      %1136 = vmatpush.bf16.xpose.msra.mxu0 0
      %1137 = vmatpush.bf16.xpose.msra.mxu0 0
      %1138 = vmatpush.bf16.xpose.msra.mxu0 %v961
      %1139 = vmatmul.bf16.gmra.mxu0 %v1129
      %v1140 = vpop.f32.mrf.mxu0
      %v1141 = vadd.f32 %v275, %v1140
      %v1142 = vpop.f32.mrf.mxu0
      %v1143 = vadd.f32 %v276, %v1142
      %1144 = vdwg.mxu0
      %v1145 = vsel %vm428, %v1141, -inf
      %1146 = vmax.xlane.f32.xlu0 %v1145
      %v1147 = vpop.xlane.xlu0 %1146
      %v1148 = vsel %vm428, %v1143, -inf
      %1149 = vmax.xlane.f32.xlu0 %v1148
      %v1150 = vpop.xlane.xlu0 %1149
      %v1151 = vsub.f32 %v1141, %v1147
      %v1152 = vsub.f32 %v1143, %v1150
      %v1153 = vmul.f32 %v1151, 1.442695
      %v1154 = vpow.pop %v1153
      %v1155 = vmul.f32 %v1152, 1.442695
      %v1156 = vpow.pop %v1155
      %v1157 = vsel %vm428, %v1154, 0.0
      %1158 = vadd.xlane.f32.xlu0 %v1157
      %v1159 = vpop.xlane.xlu0 %1158
      %v1160 = vsel %vm428, %v1156, 0.0
      %1161 = vadd.xlane.f32.xlu0 %v1160
      %v1162 = vpop.xlane.xlu0 %1161
      %v1163 = vrcp.pop %v1159
      %v1164 = vrcp.pop %v1162
      %v1165 = vmul.f32 %v1154, %v1163
      %v1166 = vmul.f32 %v1156, %v1164
      %v1167 = vpack.c.bf16 %v1166, %v1165
      %1168 = vrot.lane.b32.xlu0 %v1044, 64
      %v1169 = vpop.permute.xlu0 %1168
      %v1172 = vsel %vm428, %v1167, 0
      %1174 = vmatpush.bf16.msra.mxu0 0
      %1175 = vmatpush.bf16.msra.mxu0 0
      %1176 = vmatpush.bf16.msra.mxu0 0
      %1177 = vmatpush.bf16.msra.mxu0 0
      %1178 = vmatpush.bf16.msra.mxu0 0
      %1179 = vmatpush.bf16.msra.mxu0 0
      %1180 = vmatpush.bf16.msra.mxu0 0
      %1181 = vmatpush.bf16.msra.mxu0 %v1169
      %1182 = vmatmul.bf16.gmra.mxu0 %v1172
      %v1183 = vpop.f32.mrf.mxu0
      %v1184 = vadd.f32 0.0, %v1183
      %v1185 = vpop.f32.mrf.mxu0
      %v1186 = vadd.f32 0.0, %v1185
      %1187 = vdwg.mxu0
      %v1188 = vadd.f32 %v1122, %v1184
      %v1189 = vadd.f32 %v1124, %v1186
      %1190 = vrot.lane.b32.xlu0 %v1003, 32
      %v1191 = vpop.permute.xlu0 %1190
      %v1193 = vsel %vm292, %v1191, 0
      %1195 = vmatpush.bf16.xpose.msra.mxu0 0
      %1196 = vmatpush.bf16.xpose.msra.mxu0 0
      %1197 = vmatpush.bf16.xpose.msra.mxu0 0
      %1198 = vmatpush.bf16.xpose.msra.mxu0 0
      %1199 = vmatpush.bf16.xpose.msra.mxu0 0
      %1200 = vmatpush.bf16.xpose.msra.mxu0 0
      %1201 = vmatpush.bf16.xpose.msra.mxu0 0
      %1202 = vmatpush.bf16.xpose.msra.mxu0 %v961
      %1203 = vmatmul.bf16.gmra.mxu0 %v1193
      %v1204 = vpop.f32.mrf.mxu0
      %v1205 = vadd.f32 %v275, %v1204
      %v1206 = vpop.f32.mrf.mxu0
      %v1207 = vadd.f32 %v276, %v1206
      %1208 = vdwg.mxu0
      %v1209 = vsel %vm428, %v1205, -inf
      %1210 = vmax.xlane.f32.xlu0 %v1209
      %v1211 = vpop.xlane.xlu0 %1210
      %v1212 = vsel %vm428, %v1207, -inf
      %1213 = vmax.xlane.f32.xlu0 %v1212
      %v1214 = vpop.xlane.xlu0 %1213
      %v1215 = vsub.f32 %v1205, %v1211
      %v1216 = vsub.f32 %v1207, %v1214
      %v1217 = vmul.f32 %v1215, 1.442695
      %v1218 = vpow.pop %v1217
      %v1219 = vmul.f32 %v1216, 1.442695
      %v1220 = vpow.pop %v1219
      %v1221 = vsel %vm428, %v1218, 0.0
      %1222 = vadd.xlane.f32.xlu0 %v1221
      %v1223 = vpop.xlane.xlu0 %1222
      %v1224 = vsel %vm428, %v1220, 0.0
      %1225 = vadd.xlane.f32.xlu0 %v1224
      %v1226 = vpop.xlane.xlu0 %1225
      %v1227 = vrcp.pop %v1223
      %v1228 = vrcp.pop %v1226
      %v1229 = vmul.f32 %v1218, %v1227
      %v1230 = vmul.f32 %v1220, %v1228
      %v1231 = vpack.c.bf16 %v1230, %v1229
      %1232 = vrot.lane.b32.xlu0 %v1044, 32
      %v1233 = vpop.permute.xlu0 %1232
      %v1236 = vsel %vm428, %v1231, 0
      %1238 = vmatpush.bf16.msra.mxu0 0
      %1239 = vmatpush.bf16.msra.mxu0 0
      %1240 = vmatpush.bf16.msra.mxu0 0
      %1241 = vmatpush.bf16.msra.mxu0 0
      %1242 = vmatpush.bf16.msra.mxu0 0
      %1243 = vmatpush.bf16.msra.mxu0 0
      %1244 = vmatpush.bf16.msra.mxu0 0
      %1245 = vmatpush.bf16.msra.mxu0 %v1233
      %1246 = vmatmul.bf16.gmra.mxu0 %v1236
      %v1247 = vpop.f32.mrf.mxu0
      %v1248 = vadd.f32 0.0, %v1247
      %v1249 = vpop.f32.mrf.mxu0
      %v1250 = vadd.f32 0.0, %v1249
      %1251 = vdwg.mxu0
      %v1252 = vadd.f32 %v1188, %v1248
      %v1253 = vadd.f32 %v1189, %v1250
      %v1254 = vadd.f32 %v881, %v1252
      %v1255 = vadd.f32 %v882, %v1253
      %v1256 = vperm.slane %v271, 3
      %v1257 = vadd.f32 %v1254, %v1256
      %v1258 = vadd.f32 %v1255, %v1256
      %v1259 = vsel %vm292, %v1257, 0.0
      %1260 = vadd.xlane.f32.xlu0 %v1259
      %v1261 = vpop.xlane.xlu0 %1260
      %v1262 = vsel %vm292, %v1258, 0.0
      %1263 = vadd.xlane.f32.xlu0 %v1262
      %v1264 = vpop.xlane.xlu0 %1263
      %v1265 = vmul.f32 %v1261, %v305
      %v1266 = vmul.f32 %v1264, %v305
      %v1267 = vmul.f32 %v1257, %v1257
      %v1268 = vmul.f32 %v1258, %v1258
      %v1269 = vsel %vm292, %v1267, 0.0
      %1270 = vadd.xlane.f32.xlu0 %v1269
      %v1271 = vpop.xlane.xlu0 %1270
      %v1272 = vsel %vm292, %v1268, 0.0
      %1273 = vadd.xlane.f32.xlu0 %v1272
      %v1274 = vpop.xlane.xlu0 %1273
      %v1275 = vmul.f32 %v1271, %v305
      %v1276 = vmul.f32 %v1274, %v305
      %v1277 = vsub.f32 %v1257, %v1265
      %v1278 = vsub.f32 %v1258, %v1266
      %v1279 = vmul.f32 %v1265, %v1265
      %v1280 = vmul.f32 %v1266, %v1266
      %v1281 = vsub.f32 %v1275, %v1279
      %v1282 = vsub.f32 %v1276, %v1280
      %v1283 = vadd.f32 %v1281, 1e-05
      %v1284 = vadd.f32 %v1282, 1e-05
      %v1285 = vrsqrt.pop %v1283
      %v1286 = vmul.f32 %v1285, %v1283
      %v1287 = vmul.f32 %v1286, %v1285
      %v1288 = vmul.f32 0.5, %v1287
      %v1289 = vsub.f32 1.5, %v1288
      %v1290 = vmul.f32 %v1285, %v1289
      %vm1291 = vweird.f32 %v1283
      %vm1292 = vweird.f32 %v1285
      %vm1293 = vmor %vm1291, %vm1292
      %v1294 = vsel %vm1293, %v1285, %v1290
      %v1295 = vrsqrt.pop %v1284
      %v1296 = vmul.f32 %v1295, %v1284
      %v1297 = vmul.f32 %v1296, %v1295
      %v1298 = vmul.f32 0.5, %v1297
      %v1299 = vsub.f32 1.5, %v1298
      %v1300 = vmul.f32 %v1295, %v1299
      %vm1301 = vweird.f32 %v1284
      %vm1302 = vweird.f32 %v1295
      %vm1303 = vmor %vm1301, %vm1302
      %v1304 = vsel %vm1303, %v1295, %v1300
      %v1305 = vmul.f32 %v1277, %v1294
      %v1306 = vmul.f32 %v1278, %v1304
      %v1307 = vperm.slane %v271, 1
      %v1308 = vmul.f32 %v1305, %v1307
      %v1309 = vmul.f32 %v1306, %v1307
      %v1310 = vperm.slane %v271, 2
      %v1311 = vadd.f32 %v1308, %v1310
      %v1312 = vadd.f32 %v1309, %v1310
      %s1313 = scalar_lea.vmem %s2, 80
      %v1314 = vld [vmem:[%s1313] sm:$0xf]
      %v1315 = vld [vmem:[%s1313 + $0x4] sm:$0xf]
      %v1316 = vld [vmem:[%s1313 + $0x8] sm:$0xf]
      %v1317 = vld [vmem:[%s1313 + $0xc] sm:$0xf]
      %v1318 = vpack.c.bf16 %v1312, %v1311
      %v1319 = vperm.slane %v271, 4
      %v1324 = vunpack.c.l.b16 %v1314
      %v1325 = vunpack.c.l.b16 %v1315
      %v1326 = vunpack.c.l.b16 %v1316
      %v1327 = vunpack.c.l.b16 %v1317
      %v1328 = vpack.c.b16 %v1325, %v1324
      %v1329 = vpack.c.b16 %v1327, %v1326
      %v1333 = vsel %vm292, %v1318, 0
      %1335 = vmatpush.bf16.msra.mxu0 0
      %1336 = vmatpush.bf16.msra.mxu0 0
      %1337 = vmatpush.bf16.msra.mxu0 0
      %1338 = vmatpush.bf16.msra.mxu0 0
      %1339 = vmatpush.bf16.msra.mxu0 0
      %1340 = vmatpush.bf16.msra.mxu0 0
      %1341 = vmatpush.bf16.msra.mxu0 %v1329
      %1342 = vmatpush.bf16.msra.mxu0 %v1328
      %1343 = vmatmul.bf16.gmra.mxu0 %v1333
      %v1344 = vpop.f32.mrf.mxu0
      %v1345 = vadd.f32 %v1319, %v1344
      %v1346 = vpop.f32.mrf.mxu0
      %v1347 = vadd.f32 %v1319, %v1346
      %1348 = vdwg.mxu0
      %v1349 = vmul.f32 %v1345, 1.702
      %v1350 = vmul.f32 %v1347, 1.702
      %v1351 = vxor.u32 %v1349, 2147483648
      %v1352 = vxor.u32 %v1350, 2147483648
      %v1353 = vmul.f32 %v1351, 1.442695
      %v1354 = vpow.pop %v1353
      %v1355 = vmul.f32 %v1352, 1.442695
      %v1356 = vpow.pop %v1355
      %v1357 = vadd.f32 %v1354, 1.0
      %v1358 = vadd.f32 %v1356, 1.0
      %v1359 = vrcp.pop %v1357
      %v1360 = vmul.f32 %v1357, %v1359
      %v1361 = vsub.f32 1.0, %v1360
      %v1362 = vmul.f32 %v1359, %v1361
      %v1363 = vadd.f32 %v1359, %v1362
      %vm1364 = vweird.f32 %v1357
      %vm1365 = vweird.f32 %v1359
      %vm1366 = vmor %vm1364, %vm1365
      %v1367 = vsel %vm1366, %v1359, %v1363
      %v1368 = vand.u32 2147483647, %v1357
      %vm1369 = vcmp.eq.f32.partialorder %v1368, 8.507059e+37
      %v1370 = vand.u32 %v1357, 2147483648
      %v1371 = vor.u32 1.1754944e-38, %v1370
      %v1372 = vsel %vm1369, %v1371, %v1367
      %v1373 = vmul.f32 1.0, %v1372
      %v1374 = vrcp.pop %v1358
      %v1375 = vmul.f32 %v1358, %v1374
      %v1376 = vsub.f32 1.0, %v1375
      %v1377 = vmul.f32 %v1374, %v1376
      %v1378 = vadd.f32 %v1374, %v1377
      %vm1379 = vweird.f32 %v1358
      %vm1380 = vweird.f32 %v1374
      %vm1381 = vmor %vm1379, %vm1380
      %v1382 = vsel %vm1381, %v1374, %v1378
      %v1383 = vand.u32 2147483647, %v1358
      %vm1384 = vcmp.eq.f32.partialorder %v1383, 8.507059e+37
      %v1385 = vand.u32 %v1358, 2147483648
      %v1386 = vor.u32 1.1754944e-38, %v1385
      %v1387 = vsel %vm1384, %v1386, %v1382
      %v1388 = vmul.f32 1.0, %v1387
      %v1389 = vmul.f32 %v1345, %v1373
      %v1390 = vmul.f32 %v1347, %v1388
      %s1391 = scalar_lea.vmem %s3, 64
      %v1392 = vld [vmem:[%s1391] sm:$0xf]
      %v1393 = vld [vmem:[%s1391 + $0x4] sm:$0xf]
      %v1394 = vld [vmem:[%s1391 + $0x8] sm:$0xf]
      %v1395 = vld [vmem:[%s1391 + $0xc] sm:$0xf]
      %v1396 = vld [vmem:[%s1391 + $0x10] sm:$0xf]
      %v1397 = vld [vmem:[%s1391 + $0x14] sm:$0xf]
      %v1398 = vld [vmem:[%s1391 + $0x18] sm:$0xf]
      %v1399 = vld [vmem:[%s1391 + $0x1c] sm:$0xf]
      %v1400 = vld [vmem:[%s1391 + $0x20] sm:$0xf]
      %v1401 = vld [vmem:[%s1391 + $0x24] sm:$0xf]
      %v1402 = vld [vmem:[%s1391 + $0x28] sm:$0xf]
      %v1403 = vld [vmem:[%s1391 + $0x2c] sm:$0xf]
      %v1404 = vld [vmem:[%s1391 + $0x30] sm:$0xf]
      %v1405 = vld [vmem:[%s1391 + $0x34] sm:$0xf]
      %v1406 = vld [vmem:[%s1391 + $0x38] sm:$0xf]
      %v1407 = vld [vmem:[%s1391 + $0x3c] sm:$0xf]
      %v1408 = vpack.c.bf16 %v1390, %v1389
      %v1425 = vunpack.c.l.b16 %v1392
      %v1426 = vunpack.c.l.b16 %v1393
      %v1427 = vunpack.c.l.b16 %v1394
      %v1428 = vunpack.c.l.b16 %v1395
      %v1429 = vunpack.c.l.b16 %v1396
      %v1430 = vunpack.c.l.b16 %v1397
      %v1431 = vunpack.c.l.b16 %v1398
      %v1432 = vunpack.c.l.b16 %v1399
      %v1433 = vunpack.c.l.b16 %v1400
      %v1434 = vunpack.c.l.b16 %v1401
      %v1435 = vunpack.c.l.b16 %v1402
      %v1436 = vunpack.c.l.b16 %v1403
      %v1437 = vunpack.c.l.b16 %v1404
      %v1438 = vunpack.c.l.b16 %v1405
      %v1439 = vunpack.c.l.b16 %v1406
      %v1440 = vunpack.c.l.b16 %v1407
      %v1441 = vpack.c.b16 %v1426, %v1425
      %v1442 = vpack.c.b16 %v1428, %v1427
      %v1443 = vpack.c.b16 %v1430, %v1429
      %v1444 = vpack.c.b16 %v1432, %v1431
      %v1445 = vpack.c.b16 %v1434, %v1433
      %v1446 = vpack.c.b16 %v1436, %v1435
      %v1447 = vpack.c.b16 %v1438, %v1437
      %v1448 = vpack.c.b16 %v1440, %v1439
      %1457 = vmatpush.bf16.msra.mxu0 %v1448
      %1458 = vmatpush.bf16.msra.mxu0 %v1447
      %1459 = vmatpush.bf16.msra.mxu0 %v1446
      %1460 = vmatpush.bf16.msra.mxu0 %v1445
      %1461 = vmatpush.bf16.msra.mxu0 %v1444
      %1462 = vmatpush.bf16.msra.mxu0 %v1443
      %1463 = vmatpush.bf16.msra.mxu0 %v1442
      %1464 = vmatpush.bf16.msra.mxu0 %v1441
      %1465 = vmatmul.bf16.gmra.mxu0 %v1408
      %v1466 = vpop.f32.mrf.mxu0
      %v1467 = vadd.f32 0.0, %v1466
      %v1468 = vpop.f32.mrf.mxu0
      %v1469 = vadd.f32 0.0, %v1468
      %1470 = vdwg.mxu0
      %v1471 = vadd.f32 %v1257, %v1467
      %v1472 = vadd.f32 %v1258, %v1469
      %v1473 = vperm.slane %v271, 5
      %v1474 = vadd.f32 %v1471, %v1473
      %v1475 = vadd.f32 %v1472, %v1473
      %v1476 = vmul.f32 %v1474, %v1474
      %v1477 = vmul.f32 %v1475, %v1475
      %v1478 = vsel %vm292, %v1476, 0.0
      %1479 = vadd.xlane.f32.xlu0 %v1478
      %v1480 = vpop.xlane.xlu0 %1479
      %v1481 = vsel %vm292, %v1477, 0.0
      %1482 = vadd.xlane.f32.xlu0 %v1481
      %v1483 = vpop.xlane.xlu0 %1482
      %v1484 = vadd.f32 %v1480, 1e-12
      %v1485 = vadd.f32 %v1483, 1e-12
      %v1486 = vrsqrt.pop %v1484
      %v1487 = vmul.f32 %v1486, %v1484
      %v1488 = vmul.f32 %v1487, %v1486
      %v1489 = vmul.f32 0.5, %v1488
      %v1490 = vsub.f32 1.5, %v1489
      %v1491 = vmul.f32 %v1486, %v1490
      %vm1492 = vweird.f32 %v1484
      %vm1493 = vweird.f32 %v1486
      %vm1494 = vmor %vm1492, %vm1493
      %v1495 = vsel %vm1494, %v1486, %v1491
      %v1496 = vrsqrt.pop %v1485
      %v1497 = vmul.f32 %v1496, %v1485
      %v1498 = vmul.f32 %v1497, %v1496
      %v1499 = vmul.f32 0.5, %v1498
      %v1500 = vsub.f32 1.5, %v1499
      %v1501 = vmul.f32 %v1496, %v1500
      %vm1502 = vweird.f32 %v1485
      %vm1503 = vweird.f32 %v1496
      %vm1504 = vmor %vm1502, %vm1503
      %v1505 = vsel %vm1504, %v1496, %v1501
      %v1506 = vmul.f32 %v1474, %v1495
      %v1507 = vmul.f32 %v1475, %v1505
      %v1508 = vpack.c.bf16 %v1507, %v1506
      %v1510 = vsel %vm292, %v1508, 0
      %1512 = vmatpush.bf16.xpose.msra.mxu0 0
      %1513 = vmatpush.bf16.xpose.msra.mxu0 0
      %1514 = vmatpush.bf16.xpose.msra.mxu0 0
      %1515 = vmatpush.bf16.xpose.msra.mxu0 0
      %1516 = vmatpush.bf16.xpose.msra.mxu0 0
      %1517 = vmatpush.bf16.xpose.msra.mxu0 0
      %1518 = vmatpush.bf16.xpose.msra.mxu0 0
      %1519 = vmatpush.bf16.xpose.msra.mxu0 %v1510
      %1520 = vmatmul.bf16.gmra.mxu0 %v1510
      %v1521 = vpop.f32.mrf.mxu0
      %v1522 = vadd.f32 0.0, %v1521
      %v1523 = vpop.f32.mrf.mxu0
      %v1524 = vadd.f32 0.0, %v1523
      %1525 = vdwg.mxu0
      %vm1526 = vcmp.gt.f32.partialorder %v1522, 0.7
      %vm1527 = vcmp.gt.f32.partialorder %v1524, 0.7
      %v1528 = vsel %vm1526, %v1522, 0.0
      %v1529 = vsel %vm1527, %v1524, 0.0
      %v1530 = vsel %vm428, %v1528, -inf
      %1531 = vmax.xlane.f32.xlu0 %v1530
      %v1532 = vpop.xlane.xlu0 %1531
      %v1533 = vsel %vm428, %v1529, -inf
      %1534 = vmax.xlane.f32.xlu0 %v1533
      %v1535 = vpop.xlane.xlu0 %1534
      %v1536 = vsub.f32 %v1528, %v1532
      %v1537 = vsub.f32 %v1529, %v1535
      %v1538 = vmul.f32 %v1536, 1.442695
      %v1539 = vpow.pop %v1538
      %v1540 = vmul.f32 %v1537, 1.442695
      %v1541 = vpow.pop %v1540
      %v1542 = vsel %vm428, %v1539, 0.0
      %1543 = vadd.xlane.f32.xlu0 %v1542
      %v1544 = vpop.xlane.xlu0 %1543
      %v1545 = vsel %vm428, %v1541, 0.0
      %1546 = vadd.xlane.f32.xlu0 %v1545
      %v1547 = vpop.xlane.xlu0 %1546
      %v1548 = vrcp.pop %v1544
      %v1549 = vrcp.pop %v1547
      %v1550 = vmul.f32 %v1539, %v1548
      %v1551 = vmul.f32 %v1541, %v1549
      %s1552 = scalar_lea.vmem %s2, 128
      %v1553 = vld [vmem:[%s1552] sm:$0xf]
      %v1554 = vld [vmem:[%s1552 + $0x4] sm:$0xf]
      %v1555 = vld [vmem:[%s1552 + $0x8] sm:$0xf]
      %v1556 = vld [vmem:[%s1552 + $0xc] sm:$0xf]
      %v1557 = vpack.c.bf16 %v1475, %v1474
      %v1562 = vunpack.c.l.b16 %v1553
      %v1563 = vunpack.c.l.b16 %v1554
      %v1564 = vunpack.c.l.b16 %v1555
      %v1565 = vunpack.c.l.b16 %v1556
      %v1566 = vpack.c.b16 %v1563, %v1562
      %v1567 = vpack.c.b16 %v1565, %v1564
      %v1571 = vsel %vm292, %v1557, 0
      %1573 = vmatpush.bf16.msra.mxu0 0
      %1574 = vmatpush.bf16.msra.mxu0 0
      %1575 = vmatpush.bf16.msra.mxu0 0
      %1576 = vmatpush.bf16.msra.mxu0 0
      %1577 = vmatpush.bf16.msra.mxu0 0
      %1578 = vmatpush.bf16.msra.mxu0 0
      %1579 = vmatpush.bf16.msra.mxu0 %v1567
      %1580 = vmatpush.bf16.msra.mxu0 %v1566
      %1581 = vmatmul.bf16.gmra.mxu0 %v1571
      %v1582 = vpop.f32.mrf.mxu0
      %v1583 = vadd.f32 0.0, %v1582
      %v1584 = vpop.f32.mrf.mxu0
      %v1585 = vadd.f32 0.0, %v1584
      %1586 = vdwg.mxu0
      %v1587 = vpack.c.bf16 %v1551, %v1550
      %v1588 = vpack.c.bf16 %v1585, %v1583
      %1589 = vrot.lane.b32.xlu0 %v1566, 112
      %v1590 = vpop.permute.xlu0 %1589
      %1591 = vrot.lane.b32.xlu0 %v1567, 112
      %v1592 = vpop.permute.xlu0 %1591
      %1595 = vmatpush.bf16.msra.mxu0 0
      %1596 = vmatpush.bf16.msra.mxu0 0
      %1597 = vmatpush.bf16.msra.mxu0 0
      %1598 = vmatpush.bf16.msra.mxu0 0
      %1599 = vmatpush.bf16.msra.mxu0 0
      %1600 = vmatpush.bf16.msra.mxu0 0
      %1601 = vmatpush.bf16.msra.mxu0 %v1592
      %1602 = vmatpush.bf16.msra.mxu0 %v1590
      %1603 = vmatmul.bf16.gmra.mxu0 %v1571
      %v1604 = vpop.f32.mrf.mxu0
      %v1605 = vadd.f32 0.0, %v1604
      %v1606 = vpop.f32.mrf.mxu0
      %v1607 = vadd.f32 0.0, %v1606
      %1608 = vdwg.mxu0
      %v1610 = vsel %vm428, %v1587, 0
      %1612 = vmatpush.bf16.msra.mxu0 0
      %1613 = vmatpush.bf16.msra.mxu0 0
      %1614 = vmatpush.bf16.msra.mxu0 0
      %1615 = vmatpush.bf16.msra.mxu0 0
      %1616 = vmatpush.bf16.msra.mxu0 0
      %1617 = vmatpush.bf16.msra.mxu0 0
      %1618 = vmatpush.bf16.msra.mxu0 0
      %1619 = vmatpush.bf16.msra.mxu0 %v1588
      %1620 = vmatmul.bf16.gmra.mxu0 %v1610
      %v1621 = vpop.f32.mrf.mxu0
      %v1622 = vadd.f32 %v1605, %v1621
      %v1623 = vpop.f32.mrf.mxu0
      %v1624 = vadd.f32 %v1607, %v1623
      %1625 = vdwg.mxu0
      %v1626 = vmul.f32 %v1622, 1.702
      %v1627 = vmul.f32 %v1624, 1.702
      %v1628 = vxor.u32 %v1626, 2147483648
      %v1629 = vxor.u32 %v1627, 2147483648
      %v1630 = vmul.f32 %v1628, 1.442695
      %v1631 = vpow.pop %v1630
      %v1632 = vmul.f32 %v1629, 1.442695
      %v1633 = vpow.pop %v1632
      %v1634 = vadd.f32 %v1631, 1.0
      %v1635 = vadd.f32 %v1633, 1.0
      %v1636 = vrcp.pop %v1634
      %v1637 = vmul.f32 %v1634, %v1636
      %v1638 = vsub.f32 1.0, %v1637
      %v1639 = vmul.f32 %v1636, %v1638
      %v1640 = vadd.f32 %v1636, %v1639
      %vm1641 = vweird.f32 %v1634
      %vm1642 = vweird.f32 %v1636
      %vm1643 = vmor %vm1641, %vm1642
      %v1644 = vsel %vm1643, %v1636, %v1640
      %v1645 = vand.u32 2147483647, %v1634
      %vm1646 = vcmp.eq.f32.partialorder %v1645, 8.507059e+37
      %v1647 = vand.u32 %v1634, 2147483648
      %v1648 = vor.u32 1.1754944e-38, %v1647
      %v1649 = vsel %vm1646, %v1648, %v1644
      %v1650 = vmul.f32 1.0, %v1649
      %v1651 = vrcp.pop %v1635
      %v1652 = vmul.f32 %v1635, %v1651
      %v1653 = vsub.f32 1.0, %v1652
      %v1654 = vmul.f32 %v1651, %v1653
      %v1655 = vadd.f32 %v1651, %v1654
      %vm1656 = vweird.f32 %v1635
      %vm1657 = vweird.f32 %v1651
      %vm1658 = vmor %vm1656, %vm1657
      %v1659 = vsel %vm1658, %v1651, %v1655
      %v1660 = vand.u32 2147483647, %v1635
      %vm1661 = vcmp.eq.f32.partialorder %v1660, 8.507059e+37
      %v1662 = vand.u32 %v1635, 2147483648
      %v1663 = vor.u32 1.1754944e-38, %v1662
      %v1664 = vsel %vm1661, %v1663, %v1659
      %v1665 = vmul.f32 1.0, %v1664
      %v1666 = vmul.f32 %v1622, %v1650
      %v1667 = vmul.f32 %v1624, %v1665
      %v1668 = vpack.c.bf16 %v1667, %v1666
      %1669 = vrot.lane.b32.xlu0 %v1566, 64
      %v1670 = vpop.permute.xlu0 %1669
      %v1673 = vsel %vm428, %v1668, 0
      %1675 = vmatpush.bf16.msra.mxu0 0
      %1676 = vmatpush.bf16.msra.mxu0 0
      %1677 = vmatpush.bf16.msra.mxu0 0
      %1678 = vmatpush.bf16.msra.mxu0 0
      %1679 = vmatpush.bf16.msra.mxu0 0
      %1680 = vmatpush.bf16.msra.mxu0 0
      %1681 = vmatpush.bf16.msra.mxu0 0
      %1682 = vmatpush.bf16.msra.mxu0 %v1670
      %1683 = vmatmul.bf16.gmra.mxu0 %v1673
      %v1684 = vpop.f32.mrf.mxu0
      %v1685 = vadd.f32 0.0, %v1684
      %v1686 = vpop.f32.mrf.mxu0
      %v1687 = vadd.f32 0.0, %v1686
      %1688 = vdwg.mxu0
      %v1689 = vpack.c.bf16 %v1687, %v1685
      %1690 = vmatpush.bf16.msra.mxu0 0
      %1691 = vmatpush.bf16.msra.mxu0 0
      %1692 = vmatpush.bf16.msra.mxu0 0
      %1693 = vmatpush.bf16.msra.mxu0 0
      %1694 = vmatpush.bf16.msra.mxu0 0
      %1695 = vmatpush.bf16.msra.mxu0 0
      %1696 = vmatpush.bf16.msra.mxu0 0
      %1697 = vmatpush.bf16.msra.mxu0 %v1689
      %1698 = vmatmul.bf16.gmra.mxu0 %v1610
      %v1699 = vpop.f32.mrf.mxu0
      %v1700 = vadd.f32 %v1666, %v1699
      %v1701 = vpop.f32.mrf.mxu0
      %v1702 = vadd.f32 %v1667, %v1701
      %1703 = vdwg.mxu0
      %v1704 = vmul.f32 %v1700, 1.702
      %v1705 = vmul.f32 %v1702, 1.702
      %v1706 = vxor.u32 %v1704, 2147483648
      %v1707 = vxor.u32 %v1705, 2147483648
      %v1708 = vmul.f32 %v1706, 1.442695
      %v1709 = vpow.pop %v1708
      %v1710 = vmul.f32 %v1707, 1.442695
      %v1711 = vpow.pop %v1710
      %v1712 = vadd.f32 %v1709, 1.0
      %v1713 = vadd.f32 %v1711, 1.0
      %v1714 = vrcp.pop %v1712
      %v1715 = vmul.f32 %v1712, %v1714
      %v1716 = vsub.f32 1.0, %v1715
      %v1717 = vmul.f32 %v1714, %v1716
      %v1718 = vadd.f32 %v1714, %v1717
      %vm1719 = vweird.f32 %v1712
      %vm1720 = vweird.f32 %v1714
      %vm1721 = vmor %vm1719, %vm1720
      %v1722 = vsel %vm1721, %v1714, %v1718
      %v1723 = vand.u32 2147483647, %v1712
      %vm1724 = vcmp.eq.f32.partialorder %v1723, 8.507059e+37
      %v1725 = vand.u32 %v1712, 2147483648
      %v1726 = vor.u32 1.1754944e-38, %v1725
      %v1727 = vsel %vm1724, %v1726, %v1722
      %v1728 = vmul.f32 1.0, %v1727
      %v1729 = vrcp.pop %v1713
      %v1730 = vmul.f32 %v1713, %v1729
      %v1731 = vsub.f32 1.0, %v1730
      %v1732 = vmul.f32 %v1729, %v1731
      %v1733 = vadd.f32 %v1729, %v1732
      %vm1734 = vweird.f32 %v1713
      %vm1735 = vweird.f32 %v1729
      %vm1736 = vmor %vm1734, %vm1735
      %v1737 = vsel %vm1736, %v1729, %v1733
      %v1738 = vand.u32 2147483647, %v1713
      %vm1739 = vcmp.eq.f32.partialorder %v1738, 8.507059e+37
      %v1740 = vand.u32 %v1713, 2147483648
      %v1741 = vor.u32 1.1754944e-38, %v1740
      %v1742 = vsel %vm1739, %v1741, %v1737
      %v1743 = vmul.f32 1.0, %v1742
      %v1744 = vmul.f32 %v1700, %v1728
      %v1745 = vmul.f32 %v1702, %v1743
      %1746 = vrot.lane.b32.xlu0 %v1566, 96
      %v1747 = vpop.permute.xlu0 %1746
      %1748 = vrot.lane.b32.xlu0 %v1567, 96
      %v1749 = vpop.permute.xlu0 %1748
      %1752 = vmatpush.bf16.msra.mxu0 0
      %1753 = vmatpush.bf16.msra.mxu0 0
      %1754 = vmatpush.bf16.msra.mxu0 0
      %1755 = vmatpush.bf16.msra.mxu0 0
      %1756 = vmatpush.bf16.msra.mxu0 0
      %1757 = vmatpush.bf16.msra.mxu0 0
      %1758 = vmatpush.bf16.msra.mxu0 %v1749
      %1759 = vmatpush.bf16.msra.mxu0 %v1747
      %1760 = vmatmul.bf16.gmra.mxu0 %v1571
      %v1761 = vpop.f32.mrf.mxu0
      %v1762 = vadd.f32 0.0, %v1761
      %v1763 = vpop.f32.mrf.mxu0
      %v1764 = vadd.f32 0.0, %v1763
      %1765 = vdwg.mxu0
      %v1766 = vpack.c.bf16 %v278, %v277
      %v1767 = vpack.c.bf16 %v1764, %v1762
      %1768 = vrot.lane.b32.xlu0 %v1566, 80
      %v1769 = vpop.permute.xlu0 %1768
      %1770 = vrot.lane.b32.xlu0 %v1567, 80
      %v1771 = vpop.permute.xlu0 %1770
      %1774 = vmatpush.bf16.msra.mxu0 0
      %1775 = vmatpush.bf16.msra.mxu0 0
      %1776 = vmatpush.bf16.msra.mxu0 0
      %1777 = vmatpush.bf16.msra.mxu0 0
      %1778 = vmatpush.bf16.msra.mxu0 0
      %1779 = vmatpush.bf16.msra.mxu0 0
      %1780 = vmatpush.bf16.msra.mxu0 %v1771
      %1781 = vmatpush.bf16.msra.mxu0 %v1769
      %1782 = vmatmul.bf16.gmra.mxu0 %v1571
      %v1783 = vpop.f32.mrf.mxu0
      %v1784 = vadd.f32 0.0, %v1783
      %v1785 = vpop.f32.mrf.mxu0
      %v1786 = vadd.f32 0.0, %v1785
      %1787 = vdwg.mxu0
      %v1789 = vsel %vm428, %v1766, 0
      %1791 = vmatpush.bf16.msra.mxu0 0
      %1792 = vmatpush.bf16.msra.mxu0 0
      %1793 = vmatpush.bf16.msra.mxu0 0
      %1794 = vmatpush.bf16.msra.mxu0 0
      %1795 = vmatpush.bf16.msra.mxu0 0
      %1796 = vmatpush.bf16.msra.mxu0 0
      %1797 = vmatpush.bf16.msra.mxu0 0
      %1798 = vmatpush.bf16.msra.mxu0 %v1767
      %1799 = vmatmul.bf16.gmra.mxu0 %v1789
      %v1800 = vpop.f32.mrf.mxu0
      %v1801 = vadd.f32 %v1784, %v1800
      %v1802 = vpop.f32.mrf.mxu0
      %v1803 = vadd.f32 %v1786, %v1802
      %1804 = vdwg.mxu0
      %v1805 = vmul.f32 %v1801, 1.702
      %v1806 = vmul.f32 %v1803, 1.702
      %v1807 = vxor.u32 %v1805, 2147483648
      %v1808 = vxor.u32 %v1806, 2147483648
      %v1809 = vmul.f32 %v1807, 1.442695
      %v1810 = vpow.pop %v1809
      %v1811 = vmul.f32 %v1808, 1.442695
      %v1812 = vpow.pop %v1811
      %v1813 = vadd.f32 %v1810, 1.0
      %v1814 = vadd.f32 %v1812, 1.0
      %v1815 = vrcp.pop %v1813
      %v1816 = vmul.f32 %v1813, %v1815
      %v1817 = vsub.f32 1.0, %v1816
      %v1818 = vmul.f32 %v1815, %v1817
      %v1819 = vadd.f32 %v1815, %v1818
      %vm1820 = vweird.f32 %v1813
      %vm1821 = vweird.f32 %v1815
      %vm1822 = vmor %vm1820, %vm1821
      %v1823 = vsel %vm1822, %v1815, %v1819
      %v1824 = vand.u32 2147483647, %v1813
      %vm1825 = vcmp.eq.f32.partialorder %v1824, 8.507059e+37
      %v1826 = vand.u32 %v1813, 2147483648
      %v1827 = vor.u32 1.1754944e-38, %v1826
      %v1828 = vsel %vm1825, %v1827, %v1823
      %v1829 = vmul.f32 1.0, %v1828
      %v1830 = vrcp.pop %v1814
      %v1831 = vmul.f32 %v1814, %v1830
      %v1832 = vsub.f32 1.0, %v1831
      %v1833 = vmul.f32 %v1830, %v1832
      %v1834 = vadd.f32 %v1830, %v1833
      %vm1835 = vweird.f32 %v1814
      %vm1836 = vweird.f32 %v1830
      %vm1837 = vmor %vm1835, %vm1836
      %v1838 = vsel %vm1837, %v1830, %v1834
      %v1839 = vand.u32 2147483647, %v1814
      %vm1840 = vcmp.eq.f32.partialorder %v1839, 8.507059e+37
      %v1841 = vand.u32 %v1814, 2147483648
      %v1842 = vor.u32 1.1754944e-38, %v1841
      %v1843 = vsel %vm1840, %v1842, %v1838
      %v1844 = vmul.f32 1.0, %v1843
      %v1845 = vmul.f32 %v1801, %v1829
      %v1846 = vmul.f32 %v1803, %v1844
      %v1847 = vpack.c.bf16 %v1846, %v1845
      %1848 = vrot.lane.b32.xlu0 %v1566, 48
      %v1849 = vpop.permute.xlu0 %1848
      %v1852 = vsel %vm428, %v1847, 0
      %1854 = vmatpush.bf16.msra.mxu0 0
      %1855 = vmatpush.bf16.msra.mxu0 0
      %1856 = vmatpush.bf16.msra.mxu0 0
      %1857 = vmatpush.bf16.msra.mxu0 0
      %1858 = vmatpush.bf16.msra.mxu0 0
      %1859 = vmatpush.bf16.msra.mxu0 0
      %1860 = vmatpush.bf16.msra.mxu0 0
      %1861 = vmatpush.bf16.msra.mxu0 %v1849
      %1862 = vmatmul.bf16.gmra.mxu0 %v1852
      %v1863 = vpop.f32.mrf.mxu0
      %v1864 = vadd.f32 0.0, %v1863
      %v1865 = vpop.f32.mrf.mxu0
      %v1866 = vadd.f32 0.0, %v1865
      %1867 = vdwg.mxu0
      %v1868 = vpack.c.bf16 %v1866, %v1864
      %1869 = vmatpush.bf16.msra.mxu0 0
      %1870 = vmatpush.bf16.msra.mxu0 0
      %1871 = vmatpush.bf16.msra.mxu0 0
      %1872 = vmatpush.bf16.msra.mxu0 0
      %1873 = vmatpush.bf16.msra.mxu0 0
      %1874 = vmatpush.bf16.msra.mxu0 0
      %1875 = vmatpush.bf16.msra.mxu0 0
      %1876 = vmatpush.bf16.msra.mxu0 %v1868
      %1877 = vmatmul.bf16.gmra.mxu0 %v1789
      %v1878 = vpop.f32.mrf.mxu0
      %v1879 = vadd.f32 %v1845, %v1878
      %v1880 = vpop.f32.mrf.mxu0
      %v1881 = vadd.f32 %v1846, %v1880
      %1882 = vdwg.mxu0
      %v1883 = vmul.f32 %v1879, 1.702
      %v1884 = vmul.f32 %v1881, 1.702
      %v1885 = vxor.u32 %v1883, 2147483648
      %v1886 = vxor.u32 %v1884, 2147483648
      %v1887 = vmul.f32 %v1885, 1.442695
      %v1888 = vpow.pop %v1887
      %v1889 = vmul.f32 %v1886, 1.442695
      %v1890 = vpow.pop %v1889
      %v1891 = vadd.f32 %v1888, 1.0
      %v1892 = vadd.f32 %v1890, 1.0
      %v1893 = vrcp.pop %v1891
      %v1894 = vmul.f32 %v1891, %v1893
      %v1895 = vsub.f32 1.0, %v1894
      %v1896 = vmul.f32 %v1893, %v1895
      %v1897 = vadd.f32 %v1893, %v1896
      %vm1898 = vweird.f32 %v1891
      %vm1899 = vweird.f32 %v1893
      %vm1900 = vmor %vm1898, %vm1899
      %v1901 = vsel %vm1900, %v1893, %v1897
      %v1902 = vand.u32 2147483647, %v1891
      %vm1903 = vcmp.eq.f32.partialorder %v1902, 8.507059e+37
      %v1904 = vand.u32 %v1891, 2147483648
      %v1905 = vor.u32 1.1754944e-38, %v1904
      %v1906 = vsel %vm1903, %v1905, %v1901
      %v1907 = vmul.f32 1.0, %v1906
      %v1908 = vrcp.pop %v1892
      %v1909 = vmul.f32 %v1892, %v1908
      %v1910 = vsub.f32 1.0, %v1909
      %v1911 = vmul.f32 %v1908, %v1910
      %v1912 = vadd.f32 %v1908, %v1911
      %vm1913 = vweird.f32 %v1892
      %vm1914 = vweird.f32 %v1908
      %vm1915 = vmor %vm1913, %vm1914
      %v1916 = vsel %vm1915, %v1908, %v1912
      %v1917 = vand.u32 2147483647, %v1892
      %vm1918 = vcmp.eq.f32.partialorder %v1917, 8.507059e+37
      %v1919 = vand.u32 %v1892, 2147483648
      %v1920 = vor.u32 1.1754944e-38, %v1919
      %v1921 = vsel %vm1918, %v1920, %v1916
      %v1922 = vmul.f32 1.0, %v1921
      %v1923 = vmul.f32 %v1879, %v1907
      %v1924 = vmul.f32 %v1881, %v1922
      %s1925 = scalar_lea.vmem %s2, 112
      %v1926 = vld [vmem:[%s1925] sm:$0xf]
      %v1927 = vld [vmem:[%s1925 + $0x4] sm:$0xf]
      %v1928 = vld [vmem:[%s1925 + $0x8] sm:$0xf]
      %v1929 = vld [vmem:[%s1925 + $0xc] sm:$0xf]
      %1932 = vrot.lane.b32.xlu0 %v1923, 16
      %v1933 = vpop.permute.xlu0 %1932
      %1934 = vrot.lane.b32.xlu0 %v1924, 16
      %v1935 = vpop.permute.xlu0 %1934
      %v1938 = vsel %vm428, %v1744, %v1933
      %v1939 = vsel %vm428, %v1745, %v1935
      %v1940 = vpack.c.bf16 %v1939, %v1938
      %v1941 = vperm.slane %v271, 6
      %v1946 = vunpack.c.l.b16 %v1926
      %v1947 = vunpack.c.l.b16 %v1927
      %v1948 = vunpack.c.l.b16 %v1928
      %v1949 = vunpack.c.l.b16 %v1929
      %v1950 = vpack.c.b16 %v1947, %v1946
      %v1951 = vpack.c.b16 %v1949, %v1948
      %1952 = vrot.lane.b32.xlu0 %v1950, 32
      %v1953 = vpop.permute.xlu0 %1952
      %1954 = vrot.lane.b32.xlu0 %v1951, 32
      %v1955 = vpop.permute.xlu0 %1954
      %v1959 = vsel %vm292, %v1940, 0
      %1961 = vmatpush.bf16.msra.mxu0 0
      %1962 = vmatpush.bf16.msra.mxu0 0
      %1963 = vmatpush.bf16.msra.mxu0 0
      %1964 = vmatpush.bf16.msra.mxu0 0
      %1965 = vmatpush.bf16.msra.mxu0 0
      %1966 = vmatpush.bf16.msra.mxu0 0
      %1967 = vmatpush.bf16.msra.mxu0 %v1955
      %1968 = vmatpush.bf16.msra.mxu0 %v1953
      %1969 = vmatmul.bf16.gmra.mxu0 %v1959
      %v1970 = vpop.f32.mrf.mxu0
      %v1971 = vadd.f32 %v1941, %v1970
      %v1972 = vpop.f32.mrf.mxu0
      %v1973 = vadd.f32 %v1941, %v1972
      %1974 = vdwg.mxu0
      %v1975 = vld [vmem:[%s263] sm:$0x1f]
      %v1976 = vpack.c.bf16 %v1973, %v1971
      %v1977 = vperm.slane %v271, 7
      %v1981 = vsel %vm292, %v1976, 0
      %1983 = vmatpush.bf16.msra.mxu0 0
      %1984 = vmatpush.bf16.msra.mxu0 0
      %1985 = vmatpush.bf16.msra.mxu0 0
      %1986 = vmatpush.bf16.msra.mxu0 0
      %1987 = vmatpush.bf16.msra.mxu0 0
      %1988 = vmatpush.bf16.msra.mxu0 0
      %1989 = vmatpush.bf16.msra.mxu0 %v1951
      %1990 = vmatpush.bf16.msra.mxu0 %v1950
      %1991 = vmatmul.bf16.gmra.mxu0 %v1981
      %v1992 = vpop.f32.mrf.mxu0
      %v1993 = vadd.f32 %v1977, %v1992
      %v1994 = vpop.f32.mrf.mxu0
      %v1995 = vadd.f32 %v1977, %v1994
      %1996 = vdwg.mxu0
      %v1997 = vpack.c.bf16 %v1975, %v1975
      %1998 = vrot.lane.b32.xlu0 %v1950, 96
      %v1999 = vpop.permute.xlu0 %1998
      %2000 = vrot.lane.b32.xlu0 %v1951, 96
      %v2001 = vpop.permute.xlu0 %2000
      %2005 = vrot.lane.b32.xlu0 %v1977, 96
      %v2006 = vpop.permute.xlu0 %2005
      %v2009 = vsel %vm292, %v1997, 0
      %2011 = vmatpush.bf16.msra.mxu0 0
      %2012 = vmatpush.bf16.msra.mxu0 0
      %2013 = vmatpush.bf16.msra.mxu0 0
      %2014 = vmatpush.bf16.msra.mxu0 0
      %2015 = vmatpush.bf16.msra.mxu0 0
      %2016 = vmatpush.bf16.msra.mxu0 0
      %2017 = vmatpush.bf16.msra.mxu0 %v2001
      %2018 = vmatpush.bf16.msra.mxu0 %v1999
      %2019 = vmatmul.bf16.gmra.mxu0 %v2009
      %v2020 = vpop.f32.mrf.mxu0
      %v2021 = vadd.f32 %v2006, %v2020
      %v2022 = vpop.f32.mrf.mxu0
      %2023 = vdwg.mxu0
      %v2024 = vpack.c.bf16 %v1995, %v1993
      %v2025 = vpack.c.bf16 %v2021, %v2021
      %v2027 = vsel %vm292, %v2024, 0
      %v2030 = vsel %vm292, %v2025, 0
      %2032 = vmatpush.bf16.xpose.msra.mxu0 0
      %2033 = vmatpush.bf16.xpose.msra.mxu0 0
      %2034 = vmatpush.bf16.xpose.msra.mxu0 0
      %2035 = vmatpush.bf16.xpose.msra.mxu0 0
      %2036 = vmatpush.bf16.xpose.msra.mxu0 0
      %2037 = vmatpush.bf16.xpose.msra.mxu0 0
      %2038 = vmatpush.bf16.xpose.msra.mxu0 0
      %2039 = vmatpush.bf16.xpose.msra.mxu0 %v2030
      %2040 = vmatmul.bf16.gmra.mxu0 %v2027
      %v2041 = vpop.f32.mrf.mxu0
      %v2042 = vadd.f32 0.0, %v2041
      %v2043 = vpop.f32.mrf.mxu0
      %v2044 = vadd.f32 0.0, %v2043
      %2045 = vdwg.mxu0
      %vm2046 = vcmask 31744
      %v2047 = vsel %vm2046, %v2042, -inf
      %2048 = vmax.xlane.f32.xlu0 %v2047
      %v2049 = vpop.xlane.xlu0 %2048
      %v2050 = vsel %vm2046, %v2044, -inf
      %2051 = vmax.xlane.f32.xlu0 %v2050
      %v2052 = vpop.xlane.xlu0 %2051
      %v2053 = vsub.f32 %v2042, %v2049
      %v2054 = vsub.f32 %v2044, %v2052
      %v2055 = vmul.f32 %v2053, 1.442695
      %v2056 = vpow.pop %v2055
      %v2057 = vmul.f32 %v2054, 1.442695
      %v2058 = vpow.pop %v2057
      %v2059 = vsel %vm2046, %v2056, 0.0
      %2060 = vadd.xlane.f32.xlu0 %v2059
      %v2061 = vpop.xlane.xlu0 %2060
      %v2062 = vsel %vm2046, %v2058, 0.0
      %2063 = vadd.xlane.f32.xlu0 %v2062
      %v2064 = vpop.xlane.xlu0 %2063
      %v2065 = vrcp.pop %v2061
      %v2066 = vrcp.pop %v2064
      %v2067 = vmul.f32 %v2056, %v2065
      %v2068 = vmul.f32 %v2058, %v2066
      %v2069 = vperm.slane %v1975, 4
      %v2070 = vmul.f32 %v2067, %v2069
      %v2071 = vmul.f32 %v2068, %v2069
      %v2072 = vsel %vm2046, %v2070, 0.0
      %2073 = vadd.xlane.f32.xlu0 %v2072
      %v2074 = vpop.xlane.xlu0 %2073
      %v2075 = vsel %vm2046, %v2071, 0.0
      %2076 = vadd.xlane.f32.xlu0 %v2075
      %v2077 = vpop.xlane.xlu0 %2076
      %v2078 = vadd.f32 %v2074, 1e-06
      %v2079 = vadd.f32 %v2077, 1e-06
      %v2080 = vrcp.pop %v2078
      %v2081 = vrcp.pop %v2079
      %v2082 = vmul.f32 %v2070, %v2080
      %v2083 = vmul.f32 %v2071, %v2081
      %v2084 = vpack.c.bf16 %v2083, %v2082
      %2086 = vrot.lane.b32.xlu0 %v2025, 96
      %v2087 = vpop.permute.xlu0 %2086
      %v2089 = vsel %vm2046, %v2084, 0
      %vm2091 = vcmask 1041408
      %v2093 = vsel %vm2091, %v2087, 0
      %2095 = vmatpush.bf16.msra.mxu0 0
      %2096 = vmatpush.bf16.msra.mxu0 0
      %2097 = vmatpush.bf16.msra.mxu0 0
      %2098 = vmatpush.bf16.msra.mxu0 0
      %2099 = vmatpush.bf16.msra.mxu0 0
      %2100 = vmatpush.bf16.msra.mxu0 0
      %2101 = vmatpush.bf16.msra.mxu0 0
      %2102 = vmatpush.bf16.msra.mxu0 %v2093
      %2103 = vmatmul.bf16.gmra.mxu0 %v2089
      %v2104 = vpop.f32.mrf.mxu0
      %v2105 = vadd.f32 0.0, %v2104
      %v2106 = vpop.f32.mrf.mxu0
      %v2107 = vadd.f32 0.0, %v2106
      %2108 = vdwg.mxu0
      %v2109 = vadd.f32 %v1971, %v2105
      %v2110 = vadd.f32 %v1973, %v2107
      %v2111 = vpack.c.bf16 %v2110, %v2109
      %2112 = vrot.lane.b32.xlu0 %v1566, 32
      %v2113 = vpop.permute.xlu0 %2112
      %2114 = vrot.lane.b32.xlu0 %v1567, 32
      %v2115 = vpop.permute.xlu0 %2114
      %v2119 = vsel %vm292, %v2111, 0
      %2121 = vmatpush.bf16.msra.mxu0 0
      %2122 = vmatpush.bf16.msra.mxu0 0
      %2123 = vmatpush.bf16.msra.mxu0 0
      %2124 = vmatpush.bf16.msra.mxu0 0
      %2125 = vmatpush.bf16.msra.mxu0 0
      %2126 = vmatpush.bf16.msra.mxu0 0
      %2127 = vmatpush.bf16.msra.mxu0 %v2115
      %2128 = vmatpush.bf16.msra.mxu0 %v2113
      %2129 = vmatmul.bf16.gmra.mxu0 %v2119
      %v2130 = vpop.f32.mrf.mxu0
      %v2131 = vadd.f32 0.0, %v2130
      %v2132 = vpop.f32.mrf.mxu0
      %v2133 = vadd.f32 0.0, %v2132
      %2134 = vdwg.mxu0
      %v2135 = vperm.slane %v272, 0
      %v2136 = vadd.f32 %v2131, %v2135
      %v2137 = vadd.f32 %v2133, %v2135
      %2139 = vset.pattern.permute.xlu0 0
      %2140 = vperm.xlu0 %2139, %v2136
      %v2141 = vpop.permute.xlu0 %2140
      %2144 = vset.pattern.permute.xlu0 0
      %2145 = vperm.xlu0 %2144, %v2137
      %v2146 = vpop.permute.xlu0 %2145
      %v2148 = vmul.f32 %v2141, %v1971
      %v2149 = vmul.f32 %v2146, %v1973
      %v2150 = vsel %vm292, %v2148, 0.0
      %v2151 = vsel %vm292, %v2149, 0.0
      %v2152 = vadd.f32 %v2150, %v2151
      %v2153 = vrot.slane %v2152, 4
      %v2154 = vadd.f32 %v2152, %v2153
      %v2155 = vrot.slane %v2154, 2
      %v2156 = vadd.f32 %v2154, %v2155
      %v2157 = vrot.slane %v2156, 1
      %v2158 = vadd.f32 %v2156, %v2157
      %v2159 = vmul.f32 %v2158, %v2158
      %v2160 = vsel %vm292, %v2159, 0.0
      %2161 = vadd.xlane.f32.xlu0 %v2160
      %v2162 = vpop.xlane.xlu0 %2161
      %v2163 = vadd.f32 %v2162, 1e-12
      %v2164 = vrsqrt.pop %v2163
      %v2165 = vmul.f32 %v2164, %v2163
      %v2166 = vmul.f32 %v2165, %v2164
      %v2167 = vmul.f32 0.5, %v2166
      %v2168 = vsub.f32 1.5, %v2167
      %v2169 = vmul.f32 %v2164, %v2168
      %vm2170 = vweird.f32 %v2163
      %vm2171 = vweird.f32 %v2164
      %vm2172 = vmor %vm2170, %vm2171
      %v2173 = vsel %vm2172, %v2164, %v2169
      %v2174 = vmul.f32 %v2158, %v2173
      %v2175 = vadd.f32 %v272, %v2174
      %s2176 = scalar_lea.vmem %s2, 96
      %v2177 = vld [vmem:[%s2176] sm:$0xf]
      %v2178 = vld [vmem:[%s2176 + $0x4] sm:$0xf]
      %v2179 = vld [vmem:[%s2176 + $0x8] sm:$0xf]
      %v2180 = vld [vmem:[%s2176 + $0xc] sm:$0xf]
      %v2181 = vpack.c.bf16 %v2175, %v2175
      %v2182 = vperm.slane %v272, 1
      %v2184 = vshrl.u32 %v2181, 16
      %v2186 = vrot.slane %v2184, 1
      %v2187 = vshll.u32 %v2181, 16
      %v2189 = vrot.slane %v2187, 2
      %v2190 = vor.u32 %v2186, %v2189
      %v2195 = vunpack.c.l.b16 %v2177
      %v2196 = vunpack.c.l.b16 %v2178
      %v2197 = vunpack.c.l.b16 %v2179
      %v2198 = vunpack.c.l.b16 %v2180
      %v2199 = vpack.c.b16 %v2196, %v2195
      %v2200 = vpack.c.b16 %v2198, %v2197
      %v2204 = vsel %vm292, %v2190, 0
      %2206 = vmatpush.bf16.msra.mxu0 0
      %2207 = vmatpush.bf16.msra.mxu0 0
      %2208 = vmatpush.bf16.msra.mxu0 0
      %2209 = vmatpush.bf16.msra.mxu0 0
      %2210 = vmatpush.bf16.msra.mxu0 0
      %2211 = vmatpush.bf16.msra.mxu0 0
      %2212 = vmatpush.bf16.msra.mxu0 %v2200
      %2213 = vmatpush.bf16.msra.mxu0 %v2199
      %2214 = vmatmul.bf16.gmra.mxu0 %v2204
      %v2215 = vpop.f32.mrf.mxu0
      %v2216 = vadd.f32 %v2182, %v2215
      %v2217 = vpop.f32.mrf.mxu0
      %2218 = vdwg.mxu0
      %v2219 = vmul.f32 %v2216, 1.702
      %v2220 = vxor.u32 %v2219, 2147483648
      %v2221 = vmul.f32 %v2220, 1.442695
      %v2222 = vpow.pop %v2221
      %v2223 = vadd.f32 %v2222, 1.0
      %v2224 = vrcp.pop %v2223
      %v2225 = vmul.f32 %v2223, %v2224
      %v2226 = vsub.f32 1.0, %v2225
      %v2227 = vmul.f32 %v2224, %v2226
      %v2228 = vadd.f32 %v2224, %v2227
      %vm2229 = vweird.f32 %v2223
      %vm2230 = vweird.f32 %v2224
      %vm2231 = vmor %vm2229, %vm2230
      %v2232 = vsel %vm2231, %v2224, %v2228
      %v2233 = vand.u32 2147483647, %v2223
      %vm2234 = vcmp.eq.f32.partialorder %v2233, 8.507059e+37
      %v2235 = vand.u32 %v2223, 2147483648
      %v2236 = vor.u32 1.1754944e-38, %v2235
      %v2237 = vsel %vm2234, %v2236, %v2232
      %v2238 = vmul.f32 1.0, %v2237
      %v2239 = vmul.f32 %v2216, %v2238
      %s2240 = scalar_lea.vmem %s3, 128
      %v2241 = vld [vmem:[%s2240] sm:$0xf]
      %v2242 = vld [vmem:[%s2240 + $0x4] sm:$0xf]
      %v2243 = vld [vmem:[%s2240 + $0x8] sm:$0xf]
      %v2244 = vld [vmem:[%s2240 + $0xc] sm:$0xf]
      %v2245 = vld [vmem:[%s2240 + $0x10] sm:$0xf]
      %v2246 = vld [vmem:[%s2240 + $0x14] sm:$0xf]
      %v2247 = vld [vmem:[%s2240 + $0x18] sm:$0xf]
      %v2248 = vld [vmem:[%s2240 + $0x1c] sm:$0xf]
      %v2249 = vld [vmem:[%s2240 + $0x20] sm:$0xf]
      %v2250 = vld [vmem:[%s2240 + $0x24] sm:$0xf]
      %v2251 = vld [vmem:[%s2240 + $0x28] sm:$0xf]
      %v2252 = vld [vmem:[%s2240 + $0x2c] sm:$0xf]
      %v2253 = vld [vmem:[%s2240 + $0x30] sm:$0xf]
      %v2254 = vld [vmem:[%s2240 + $0x34] sm:$0xf]
      %v2255 = vld [vmem:[%s2240 + $0x38] sm:$0xf]
      %v2256 = vld [vmem:[%s2240 + $0x3c] sm:$0xf]
      %v2257 = vpack.c.bf16 %v2239, %v2239
      %v2274 = vunpack.c.l.b16 %v2241
      %v2275 = vunpack.c.l.b16 %v2242
      %v2276 = vunpack.c.l.b16 %v2243
      %v2277 = vunpack.c.l.b16 %v2244
      %v2278 = vunpack.c.l.b16 %v2245
      %v2279 = vunpack.c.l.b16 %v2246
      %v2280 = vunpack.c.l.b16 %v2247
      %v2281 = vunpack.c.l.b16 %v2248
      %v2282 = vunpack.c.l.b16 %v2249
      %v2283 = vunpack.c.l.b16 %v2250
      %v2284 = vunpack.c.l.b16 %v2251
      %v2285 = vunpack.c.l.b16 %v2252
      %v2286 = vunpack.c.l.b16 %v2253
      %v2287 = vunpack.c.l.b16 %v2254
      %v2288 = vunpack.c.l.b16 %v2255
      %v2289 = vunpack.c.l.b16 %v2256
      %v2290 = vpack.c.b16 %v2275, %v2274
      %v2291 = vpack.c.b16 %v2277, %v2276
      %v2292 = vpack.c.b16 %v2279, %v2278
      %v2293 = vpack.c.b16 %v2281, %v2280
      %v2294 = vpack.c.b16 %v2283, %v2282
      %v2295 = vpack.c.b16 %v2285, %v2284
      %v2296 = vpack.c.b16 %v2287, %v2286
      %v2297 = vpack.c.b16 %v2289, %v2288
      %2306 = vmatpush.bf16.msra.mxu0 %v2297
      %2307 = vmatpush.bf16.msra.mxu0 %v2296
      %2308 = vmatpush.bf16.msra.mxu0 %v2295
      %2309 = vmatpush.bf16.msra.mxu0 %v2294
      %2310 = vmatpush.bf16.msra.mxu0 %v2293
      %2311 = vmatpush.bf16.msra.mxu0 %v2292
      %2312 = vmatpush.bf16.msra.mxu0 %v2291
      %2313 = vmatpush.bf16.msra.mxu0 %v2290
      %2314 = vmatmul.bf16.gmra.mxu0 %v2257
      %v2315 = vpop.f32.mrf.mxu0
      %v2316 = vadd.f32 0.0, %v2315
      %v2317 = vpop.f32.mrf.mxu0
      %2318 = vdwg.mxu0
      %v2320 = vrot.slane %v2316, 5
      %v2322 = vadd.f32 %v2175, %v2320
      %v2323 = vperm.slane %v272, 2
      %v2324 = vadd.f32 %v2322, %v2323
      %v2325 = vmul.f32 %v1971, %v1971
      %v2326 = vmul.f32 %v1973, %v1973
      %v2327 = vsel %vm292, %v2325, 0.0
      %2328 = vadd.xlane.f32.xlu0 %v2327
      %v2329 = vpop.xlane.xlu0 %2328
      %v2330 = vsel %vm292, %v2326, 0.0
      %2331 = vadd.xlane.f32.xlu0 %v2330
      %v2332 = vpop.xlane.xlu0 %2331
      %v2333 = vadd.f32 %v2329, 1e-12
      %v2334 = vadd.f32 %v2332, 1e-12
      %v2335 = vrsqrt.pop %v2333
      %v2336 = vmul.f32 %v2335, %v2333
      %v2337 = vmul.f32 %v2336, %v2335
      %v2338 = vmul.f32 0.5, %v2337
      %v2339 = vsub.f32 1.5, %v2338
      %v2340 = vmul.f32 %v2335, %v2339
      %vm2341 = vweird.f32 %v2333
      %vm2342 = vweird.f32 %v2335
      %vm2343 = vmor %vm2341, %vm2342
      %v2344 = vsel %vm2343, %v2335, %v2340
      %v2345 = vrsqrt.pop %v2334
      %v2346 = vmul.f32 %v2345, %v2334
      %v2347 = vmul.f32 %v2346, %v2345
      %v2348 = vmul.f32 0.5, %v2347
      %v2349 = vsub.f32 1.5, %v2348
      %v2350 = vmul.f32 %v2345, %v2349
      %vm2351 = vweird.f32 %v2334
      %vm2352 = vweird.f32 %v2345
      %vm2353 = vmor %vm2351, %vm2352
      %v2354 = vsel %vm2353, %v2345, %v2350
      %v2355 = vmul.f32 %v1971, %v2344
      %v2356 = vmul.f32 %v1973, %v2354
      %v2357 = vmul.f32 %v2324, %v2324
      %vm2358 = vcmask 260099
      %v2359 = vsel %vm2358, %v2357, 0.0
      %2360 = vadd.xlane.f32.xlu0 %v2359
      %v2361 = vpop.xlane.xlu0 %2360
      %v2362 = vadd.f32 %v2361, 1e-12
      %v2363 = vrsqrt.pop %v2362
      %v2364 = vmul.f32 %v2363, %v2362
      %v2365 = vmul.f32 %v2364, %v2363
      %v2366 = vmul.f32 0.5, %v2365
      %v2367 = vsub.f32 1.5, %v2366
      %v2368 = vmul.f32 %v2363, %v2367
      %vm2369 = vweird.f32 %v2362
      %vm2370 = vweird.f32 %v2363
      %vm2371 = vmor %vm2369, %vm2370
      %v2372 = vsel %vm2371, %v2363, %v2368
      %v2373 = vmul.f32 %v2324, %v2372
      %v2374 = vpack.c.bf16 %v2356, %v2355
      %v2375 = vpack.c.bf16 %v2373, %v2373
      %v2377 = vshrl.u32 %v2375, 16
      %v2379 = vrot.slane %v2377, 1
      %v2380 = vshll.u32 %v2375, 16
      %v2382 = vrot.slane %v2380, 2
      %v2383 = vor.u32 %v2379, %v2382
      %v2385 = vsel %vm292, %v2374, 0
      %v2388 = vsel %vm292, %v2383, 0
      %2390 = vmatpush.bf16.xpose.msra.mxu0 0
      %2391 = vmatpush.bf16.xpose.msra.mxu0 0
      %2392 = vmatpush.bf16.xpose.msra.mxu0 0
      %2393 = vmatpush.bf16.xpose.msra.mxu0 0
      %2394 = vmatpush.bf16.xpose.msra.mxu0 0
      %2395 = vmatpush.bf16.xpose.msra.mxu0 0
      %2396 = vmatpush.bf16.xpose.msra.mxu0 0
      %2397 = vmatpush.bf16.xpose.msra.mxu0 %v2388
      %2398 = vmatmul.bf16.gmra.mxu0 %v2385
      %v2399 = vpop.f32.mrf.mxu0
      %v2400 = vadd.f32 0.0, %v2399
      %v2401 = vpop.f32.mrf.mxu0
      %v2402 = vadd.f32 0.0, %v2401
      %2403 = vdwg.mxu0
      %v2404 = vmul.f32 %v2400, 14.285714
      %v2405 = vmul.f32 %v2402, 14.285714
      %2406 = vrot.lane.b32.xlu0 %v2136, 4
      %v2407 = vpop.permute.xlu0 %2406
      %2408 = vrot.lane.b32.xlu0 %v2137, 4
      %v2409 = vpop.permute.xlu0 %2408
      %v2412 = vsel %vm2046, %v2404, %v2407
      %v2413 = vsel %vm2046, %v2405, %v2409
      %vm2414 = vcmask 39936
      %v2415 = vsel %vm2414, %v2412, 0.0
      %v2416 = vsel %vm2414, %v2413, 0.0
      %2417 = vst [vmem:[%s268] sm:$0xff] %v2415
      %2418 = vst [vmem:[%s268 + $0x8] sm:$0xff] %v2416
      %p2419 = scmp.lt.s32.totalorder %s17, 1
      %s2420 = scalar_select %p2419, %s17, 1
      %s2421 = smul.addr %s2420, 2
      %s2422 = smul.addr %s2421, 8
      %s2423 = scalar_lea.vmem %s6, %s2422
      // Predicated region
      $region45: #{clipvad_forward.1} parent=43 // pred_check
        %p2424 = pneg %p171
      $region46: #{clipvad_forward.1} parent=43 // pred_check_branch
        %2426 = sbr.rel (%p2424) target = $region48
      $region47: #{clipvad_forward.1} parent=43 // pred_region
        _
      $region48: #{clipvad_forward.1} parent=43 // pred_fallthru
        _
    $region44: #{clipvad_forward.1} parent=5 // pred_fallthru
      _
    %p2427 = scmp.le.s32.totalorder 2, %s12
    // Predicated region
    $region49: #{clipvad_forward.1} parent=5 // pred_check
      %p2428 = pneg %p2427
    $region50: #{clipvad_forward.1} parent=5 // pred_check_branch
      %2430 = sbr.rel (%p2428) target = $region52
    $region51: #{clipvad_forward.1} parent=5 // pred_region
      %s2431 = ssub.s32 %s12, 2
      // Predicated region
      $region53: #{clipvad_forward.1} parent=51 // pred_check
        %p2432 = pneg %p177
      $region54: #{clipvad_forward.1} parent=51 // pred_check_branch
        %2434 = sbr.rel (%p2432) target = $region56
      $region55: #{clipvad_forward.1} parent=51 // pred_region
        %p2435 = scmp.lt.s32.totalorder %s18, 1
        %s2436 = scalar_select %p2435, %s18, 1
        %s2437 = smul.addr %s2436, 2
        %s2438 = smul.addr %s2437, 8
        %s2439 = scalar_lea.vmem %s6, %s2438
      $region56: #{clipvad_forward.1} parent=51 // pred_fallthru
        _
    $region52: #{clipvad_forward.1} parent=5 // pred_fallthru
      _
  $region6: #{clipvad_forward.1} parent=0 // loop_footer
    %s16 = sadd.s32 1, %s12
  $region7: #{clipvad_forward.1} parent=0 // loop_footer_branch
    %11 = sbr.rel target = $region3
  $region8: #{clipvad_forward.1} parent=0 // loop_exit
    _

</llo_original>
